<compile_context>
chip_gen: v6e
topology: v6e:2x2x1
jax: 0.10.0
libtpu: 0.0.40
codegen_flags: <defaults>
</compile_context>

<pallas_src>
import functools
import math

import jax
import jax.numpy as jnp
from jax.experimental import pallas as pl
from jax.experimental.pallas import tpu as pltpu


# ---------------------------------------------------------------------------
# Shared per-tile compute: "same"-padded correlation of one output row tile.
# ---------------------------------------------------------------------------
def _conv_tile(tap, w_ref, b_ref, o_ref, col_ref, *, M, KH, KW, Cin, Cout,
               use_im2col):
    """tap(kh, kw) -> (M, Cin) input patch for kernel tap (kh, kw)."""
    if use_im2col:
        # Small Cin: fold all taps into the contraction dim so one MXU matmul
        # sees K = KH*KW*Cin.  (Padded lanes of col_ref beyond K are never
        # read.)
        # TODO(synk): for Cin << 128 these tap writes are lane-masked width-Cin
        # stores; a (K, M)-transposed col + dot_general(contract lhs dim 0)
        # would make them lane-dense (perf-only, not done here).
        for kh in range(KH):
            for kw in range(KW):
                t = kh * KW + kw
                col_ref[:, t * Cin:(t + 1) * Cin] = tap(kh, kw)
        acc = jnp.dot(col_ref[...], w_ref[...],
                      preferred_element_type=jnp.float32)
    else:
        # Cin >= 128: each tap already fills the MXU contraction depth; skip
        # the im2col slab (saves a full write+read of the activations/step).
        acc = jnp.zeros((M, Cout), jnp.float32)
        for kh in range(KH):
            for kw in range(KW):
                acc = acc + jnp.dot(tap(kh, kw), w_ref[kh * KW + kw],
                                    preferred_element_type=jnp.float32)

    acc = acc + b_ref[...]
    # TODO(synk): conv_clamp / non-linear bias_act activations would be extra
    # elementwise ops here; only activation='linear', clamp=None implemented.
    o_ref[...] = acc.reshape(o_ref.shape).astype(o_ref.dtype)


# ---------------------------------------------------------------------------
# Case A: whole (batched) padded images per grid step, auto-pipelined.
# ---------------------------------------------------------------------------
def _whole_image_kernel(x_ref, w_ref, b_ref, o_ref, *scratch, B, TH, W, KH,
                        KW, Cin, Cout, use_im2col):
    col_ref = scratch[0] if use_im2col else None
    M = B * TH * W

    def tap(kh, kw):
        return x_ref[:, kh:kh + TH, kw:kw + W, :].reshape(M, Cin)

    _conv_tile(tap, w_ref, b_ref, o_ref, col_ref, M=M, KH=KH, KW=KW, Cin=Cin,
               Cout=Cout, use_im2col=use_im2col)


# ---------------------------------------------------------------------------
# Case B: large images.  Input stays in HBM; overlapping row strips are
# fetched with a manual, cross-step double-buffered DMA (no halo duplication).
# ---------------------------------------------------------------------------
def _strip_kernel(x_hbm, w_ref, b_ref, o_ref, xbuf, sem, *scratch, S, TH, THp,
                  W, KH, KW, Cin, Cout, use_im2col):
    col_ref = scratch[0] if use_im2col else None
    b = pl.program_id(0)          # image ("parallel" axis)
    r = pl.program_id(1)          # row strip ("arbitrary" axis, innermost)

    def start_fetch(row_strip, slot):
        pltpu.make_async_copy(
            x_hbm.at[b, pl.ds(row_strip * TH, THp)],
            xbuf.at[slot],
            sem.at[slot],
        ).start()

    # Prime the double buffer at the first strip of every image.  Because the
    # strip axis is innermost, r == 0 occurs on every TensorCore regardless of
    # how the parallel image axis is sharded (megacore-safe).
    @pl.when(r == 0)
    def _():
        start_fetch(0, 0)

    # Prefetch the next strip into the other slot while computing this one.
    @pl.when(r + 1 < S)
    def _():
        start_fetch(r + 1, (r + 1) % 2)

    slot = r % 2
    pltpu.make_async_copy(
        x_hbm.at[b, pl.ds(r * TH, THp)], xbuf.at[slot], sem.at[slot]).wait()

    x_val = xbuf[slot]            # (THp, Wp, Cin)
    M = TH * W

    def tap(kh, kw):
        return x_val[kh:kh + TH, kw:kw + W, :].reshape(M, Cin)

    _conv_tile(tap, w_ref, b_ref, o_ref, col_ref, M=M, KH=KH, KW=KW, Cin=Cin,
               Cout=Cout, use_im2col=use_im2col)


# ---------------------------------------------------------------------------
# Wrapper: tiling plan + gain folding + pallas_call.
# ---------------------------------------------------------------------------
def _divisors_desc(n):
    return [d for d in range(n, 0, -1) if n % d == 0]


def _padded_tile_bytes(shape, itemsize):
    """Crude VMEM footprint of a tile (minor dim -> 128 lanes, 2nd -> 8)."""
    dims = list(shape)
    dims[-1] = -(-dims[-1] // 128) * 128
    if len(dims) >= 2:
        dims[-2] = -(-dims[-2] // 8) * 8
    n = 1
    for d in dims:
        n *= d
    return n * itemsize


def conv2d_layer_forward(x_nchw, weight_oihw, bias, *, gain=1.0,
                         activation="linear", compute_dtype=jnp.bfloat16,
                         m_target=512, vmem_budget_bytes=36 * 1024 * 1024):
    """Pallas implementation of Conv2dLayer.forward (up=down=1, 'linear')."""
    assert activation == "linear", "only activation='linear' implemented"
    N, Cin, H, W = x_nchw.shape
    Cout, Cin_w, KH, KW = weight_oihw.shape
    assert Cin == Cin_w and KH == KW
    assert KH % 2 == 1, "odd kernel sizes only (matches PyTorch padding=k//2)"
    pad = KH // 2
    if bias is None:
        bias = jnp.zeros((Cout,), jnp.float32)

    out_dtype = x_nchw.dtype
    cbytes = jnp.dtype(compute_dtype).itemsize
    obytes = jnp.dtype(out_dtype).itemsize

    use_im2col = Cin < 128
    K = KH * KW * Cin
    Wp = W + 2 * pad
    Hp = H + 2 * pad

    # ---- VMEM-budget-driven tile planning ---------------------------------
    w_bytes = 2 * _padded_tile_bytes((K, Cout), cbytes)       # double-buffered
    b_bytes = 2 * _padded_tile_bytes((8, Cout), 4)

    def need_bytes(B, TH):
        M = B * TH * W
        x_b = 2 * _padded_tile_bytes((B, TH + 2 * pad, Wp, Cin), cbytes)
        o_b = 2 * _padded_tile_bytes((B, TH * W, Cout), obytes)
        col_b = _padded_tile_bytes((M, K), cbytes) if use_im2col else 0
        acc_b = _padded_tile_bytes((M, Cout), 4)               # f32 acc values
        return w_bytes + b_bytes + x_b + o_b + col_b + acc_b

    whole_image = need_bytes(1, H) <= vmem_budget_bytes
    if whole_image:
        # Batch small images per step so B_tile*H*W approaches m_target rows.
        B_tile = 1
        for d in _divisors_desc(N):
            if (d * H * W <= max(m_target, H * W)
                    and need_bytes(d, H) <= vmem_budget_bytes):
                B_tile = d
                break
        TH, S, H_pad = H, 1, H
        need = need_bytes(B_tile, H)
    else:
        # Row strips: TH*W ~ m_target rows, kept a multiple of 8 sublanes.
        B_tile = 1
        th_step = 8 // math.gcd(W, 8)
        TH = max(1, min(H, -(-m_target // W)))
        TH = -(-TH // th_step) * th_step
        while TH > th_step and need_bytes(1, TH) > vmem_budget_bytes:
            TH -= th_step
        S = -(-H // TH)
        H_pad = S * TH            # ragged last strip handled by padding H once
        need = need_bytes(1, TH)

    vmem_limit = int(min(max(need * 3 // 2 + (2 << 20), 32 << 20), 56 << 20))

    # ---- fold gains, convert layouts (one XLA pass each) -------------------
    weight_gain = 1.0 / math.sqrt(Cin * KH * KW)
    act_gain = 1.0 * float(gain)                 # def_gain('linear') == 1.0

    x_nhwc = jnp.transpose(x_nchw, (0, 2, 3, 1)).astype(compute_dtype)

    w_hwio = (jnp.transpose(weight_oihw, (2, 3, 1, 0)).astype(jnp.float32)
              * (weight_gain * act_gain))
    if use_im2col:
        w_arr = w_hwio.reshape(K, Cout).astype(compute_dtype)
        w_block = (K, Cout)
    else:
        w_arr = w_hwio.reshape(KH * KW, Cin, Cout).astype(compute_dtype)
        w_block = (KH * KW, Cin, Cout)
    b_arr = (bias.astype(jnp.float32) * act_gain).reshape(1, Cout)

    if whole_image:
        x_padded = jnp.pad(x_nhwc, ((0, 0), (pad, pad), (pad, pad), (0, 0)))
        kernel = functools.partial(
            _whole_image_kernel, B=B_tile, TH=H, W=W, KH=KH, KW=KW, Cin=Cin,
            Cout=Cout, use_im2col=use_im2col)
        scratch = []
        if use_im2col:
            scratch.append(pltpu.VMEM((B_tile * H * W, K), compute_dtype))
        w_idx = (lambda g: (0, 0)) if use_im2col else (lambda g: (0, 0, 0))
        out = pl.pallas_call(
            kernel,
            out_shape=jax.ShapeDtypeStruct((N, H * W, Cout), out_dtype),
            grid_spec=pltpu.PrefetchScalarGridSpec(
                num_scalar_prefetch=0,
                grid=(N // B_tile,),
                in_specs=[
                    pl.BlockSpec((B_tile, Hp, Wp, Cin),
                                 lambda g: (g, 0, 0, 0)),
                    pl.BlockSpec(w_block, w_idx),          # grid-constant
                    pl.BlockSpec((1, Cout), lambda g: (0, 0)),
                ],
                out_specs=pl.BlockSpec((B_tile, H * W, Cout),
                                       lambda g: (g, 0, 0)),
                scratch_shapes=scratch),
            compiler_params=pltpu.CompilerParams(
                dimension_semantics=("parallel",),
                vmem_limit_bytes=vmem_limit),
        )(x_padded, w_arr, b_arr)
        out = out.reshape(N, H, W, Cout)
    else:
        THp = TH + 2 * pad
        # Single spatial pad; bottom rows also absorb the ragged-H padding.
        x_padded = jnp.pad(
            x_nhwc, ((0, 0), (pad, pad + (H_pad - H)), (pad, pad), (0, 0)))
        kernel = functools.partial(
            _strip_kernel, S=S, TH=TH, THp=THp, W=W, KH=KH, KW=KW, Cin=Cin,
            Cout=Cout, use_im2col=use_im2col)
        scratch = [pltpu.VMEM((2, THp, Wp, Cin), compute_dtype),
                   pltpu.SemaphoreType.DMA((2,))]
        if use_im2col:
            scratch.append(pltpu.VMEM((TH * W, K), compute_dtype))
        w_idx = ((lambda b, r: (0, 0)) if use_im2col
                 else (lambda b, r: (0, 0, 0)))
        out = pl.pallas_call(
            kernel,
            out_shape=jax.ShapeDtypeStruct((N, H_pad * W, Cout), out_dtype),
            grid_spec=pltpu.PrefetchScalarGridSpec(
                num_scalar_prefetch=0,
                grid=(N, S),
                in_specs=[
                    pl.BlockSpec(memory_space=pl.ANY),     # stays in HBM
                    pl.BlockSpec(w_block, w_idx),          # grid-constant
                    pl.BlockSpec((1, Cout), lambda b, r: (0, 0)),
                ],
                out_specs=pl.BlockSpec((1, TH * W, Cout),
                                       lambda b, r: (b, r, 0)),
                scratch_shapes=scratch),
            compiler_params=pltpu.CompilerParams(
                dimension_semantics=("parallel", "arbitrary"),
                vmem_limit_bytes=vmem_limit),
        )(x_padded, w_arr, b_arr)
        out = out.reshape(N, H_pad, W, Cout)[:, :H]

    return jnp.transpose(out, (0, 3, 1, 2))                  # N, C, H, W


# ---------------------------------------------------------------------------
# Reference (lax conv with the same bf16 operand rounding as the kernel).
# ---------------------------------------------------------------------------
def _reference(x_nchw, weight_oihw, bias, gain=1.0,
               compute_dtype=jnp.bfloat16):
    Cin = x_nchw.shape[1]
    k = weight_oihw.shape[-1]
    wg = 1.0 / math.sqrt(Cin * k * k)
    xb = x_nchw.astype(compute_dtype)
    wb = (weight_oihw * wg).astype(compute_dtype)
    y = jax.lax.conv_general_dilated(
        xb, wb, window_strides=(1, 1), padding="SAME",
        dimension_numbers=("NCHW", "OIHW", "NCHW"),
        preferred_element_type=jnp.float32)
    y = (y + bias[None, :, None, None]) * gain
    return y.astype(x_nchw.dtype)


if __name__ == "__main__":
    root = jax.random.PRNGKey(0)

    test_cases = [
        # name,            N, Cin,  H,  W, Cout, ksz, gain, extra kwargs
        ("base_16x16",     4,   4, 16, 16,    8,   3, 1.0, {}),
        # Small VMEM budget forces the manual-DMA strip path (+ ragged H).
        ("strip_path",     1,   8, 36, 32,   16,   3, 2.0,
         {"vmem_budget_bytes": 1_500_000}),
        # Wide channels: per-tap MXU accumulation path + image batching.
        ("wide_cin_batch", 2, 128,  8,  8,  128,   3, 1.0, {}),
        ("conv1x1",        1,   4,  8,  8,    8,   1, 1.0, {}),
    ]

    for idx, (name, N, Cin, H, W, Cout, ksz, gain, extra) in \
            enumerate(test_cases):
        kx, kwgt, kb = jax.random.split(jax.random.fold_in(root, idx), 3)
        x = jax.random.normal(kx, (N, Cin, H, W), dtype=jnp.float32)
        weight = jax.random.normal(kwgt, (Cout, Cin, ksz, ksz),
                                   dtype=jnp.float32)
        bias = 0.1 * jax.random.normal(kb, (Cout,), dtype=jnp.float32)

        out = conv2d_layer_forward(x, weight, bias, gain=gain, **extra)
        out = jax.block_until_ready(out)

        ref = _reference(x, weight, bias, gain=gain)
        assert out.shape == (N, Cout, H, W), (name, out.shape)
        err = float(jnp.max(jnp.abs(out - ref)))
        assert jnp.allclose(out, ref, atol=3e-2, rtol=3e-2), (name, err)

    print("KERNEL_OK")
</pallas_src>

<mosaic_0001>
module attributes {stable_mosaic.version = 11 : i64} {
  func.func @_whole_image_kernel(%arg0: i32, %arg1: memref<2x18x18x4xbf16, #tpu.memory_space<vmem>>, %arg2: memref<36x8xbf16, #tpu.memory_space<vmem>>, %arg3: memref<1x8xf32, #tpu.memory_space<vmem>>, %arg4: memref<2x256x8xf32, #tpu.memory_space<vmem>>, %arg5: memref<512x36xbf16, #tpu.memory_space<vmem>>) attributes {dimension_semantics = [#tpu.dimension_semantics<parallel>], iteration_bounds = array<i64: 2>, scalar_prefetch = 0 : i64, scratch_operands = 1 : i64, tpu.core_type = #tpu.core_type<tc>, window_params = [{transform_indices = @transform_0, window_bounds = array<i64: 2, 18, 18, 4>}, {pipeline_mode = #tpu.pipeline_mode<synchronous>, transform_indices = @transform_1, window_bounds = array<i64: 36, 8>}, {pipeline_mode = #tpu.pipeline_mode<synchronous>, transform_indices = @transform_2, window_bounds = array<i64: 1, 8>}, {transform_indices = @transform_3, window_bounds = array<i64: 2, 256, 8>}]} {
    %c0 = arith.constant 0 : index
    %c0_0 = arith.constant 0 : index
    %c0_1 = arith.constant 0 : index
    %c0_2 = arith.constant 0 : index
    %0 = vector.load %arg1[%c0, %c0_0, %c0_1, %c0_2] : memref<2x18x18x4xbf16, #tpu.memory_space<vmem>>, vector<2x16x16x4xbf16>
    %1 = vector.shape_cast %0 : vector<2x16x16x4xbf16> to vector<512x4xbf16>
    %c0_3 = arith.constant 0 : index
    %c0_4 = arith.constant 0 : index
    %2 = vector.load %arg5[%c0_3, %c0_4] : memref<512x36xbf16, #tpu.memory_space<vmem>>, vector<512x4xbf16>
    tpu.vector_store %arg5[%c0_3, %c0_4], %1 {strides = array<i32>} : memref<512x36xbf16, #tpu.memory_space<vmem>>, vector<512x4xbf16>,
    %c0_5 = arith.constant 0 : index
    %c0_6 = arith.constant 0 : index
    %c1 = arith.constant 1 : index
    %c0_7 = arith.constant 0 : index
    %3 = vector.load %arg1[%c0_5, %c0_6, %c1, %c0_7] : memref<2x18x18x4xbf16, #tpu.memory_space<vmem>>, vector<2x16x16x4xbf16>
    %4 = vector.shape_cast %3 : vector<2x16x16x4xbf16> to vector<512x4xbf16>
    %c0_8 = arith.constant 0 : index
    %c4 = arith.constant 4 : index
    %5 = vector.load %arg5[%c0_8, %c4] : memref<512x36xbf16, #tpu.memory_space<vmem>>, vector<512x4xbf16>
    tpu.vector_store %arg5[%c0_8, %c4], %4 {strides = array<i32>} : memref<512x36xbf16, #tpu.memory_space<vmem>>, vector<512x4xbf16>,
    %c0_9 = arith.constant 0 : index
    %c0_10 = arith.constant 0 : index
    %c2 = arith.constant 2 : index
    %c0_11 = arith.constant 0 : index
    %6 = vector.load %arg1[%c0_9, %c0_10, %c2, %c0_11] : memref<2x18x18x4xbf16, #tpu.memory_space<vmem>>, vector<2x16x16x4xbf16>
    %7 = vector.shape_cast %6 : vector<2x16x16x4xbf16> to vector<512x4xbf16>
    %c0_12 = arith.constant 0 : index
    %c8 = arith.constant 8 : index
    %8 = vector.load %arg5[%c0_12, %c8] : memref<512x36xbf16, #tpu.memory_space<vmem>>, vector<512x4xbf16>
    tpu.vector_store %arg5[%c0_12, %c8], %7 {strides = array<i32>} : memref<512x36xbf16, #tpu.memory_space<vmem>>, vector<512x4xbf16>,
    %c0_13 = arith.constant 0 : index
    %c1_14 = arith.constant 1 : index
    %c0_15 = arith.constant 0 : index
    %c0_16 = arith.constant 0 : index
    %9 = vector.load %arg1[%c0_13, %c1_14, %c0_15, %c0_16] : memref<2x18x18x4xbf16, #tpu.memory_space<vmem>>, vector<2x16x16x4xbf16>
    %10 = vector.shape_cast %9 : vector<2x16x16x4xbf16> to vector<512x4xbf16>
    %c0_17 = arith.constant 0 : index
    %c12 = arith.constant 12 : index
    %11 = vector.load %arg5[%c0_17, %c12] : memref<512x36xbf16, #tpu.memory_space<vmem>>, vector<512x4xbf16>
    tpu.vector_store %arg5[%c0_17, %c12], %10 {strides = array<i32>} : memref<512x36xbf16, #tpu.memory_space<vmem>>, vector<512x4xbf16>,
    %c0_18 = arith.constant 0 : index
    %c1_19 = arith.constant 1 : index
    %c1_20 = arith.constant 1 : index
    %c0_21 = arith.constant 0 : index
    %12 = vector.load %arg1[%c0_18, %c1_19, %c1_20, %c0_21] : memref<2x18x18x4xbf16, #tpu.memory_space<vmem>>, vector<2x16x16x4xbf16>
    %13 = vector.shape_cast %12 : vector<2x16x16x4xbf16> to vector<512x4xbf16>
    %c0_22 = arith.constant 0 : index
    %c16 = arith.constant 16 : index
    %14 = vector.load %arg5[%c0_22, %c16] : memref<512x36xbf16, #tpu.memory_space<vmem>>, vector<512x4xbf16>
    tpu.vector_store %arg5[%c0_22, %c16], %13 {strides = array<i32>} : memref<512x36xbf16, #tpu.memory_space<vmem>>, vector<512x4xbf16>,
    %c0_23 = arith.constant 0 : index
    %c1_24 = arith.constant 1 : index
    %c2_25 = arith.constant 2 : index
    %c0_26 = arith.constant 0 : index
    %15 = vector.load %arg1[%c0_23, %c1_24, %c2_25, %c0_26] : memref<2x18x18x4xbf16, #tpu.memory_space<vmem>>, vector<2x16x16x4xbf16>
    %16 = vector.shape_cast %15 : vector<2x16x16x4xbf16> to vector<512x4xbf16>
    %c0_27 = arith.constant 0 : index
    %c20 = arith.constant 20 : index
    %17 = vector.load %arg5[%c0_27, %c20] : memref<512x36xbf16, #tpu.memory_space<vmem>>, vector<512x4xbf16>
    tpu.vector_store %arg5[%c0_27, %c20], %16 {strides = array<i32>} : memref<512x36xbf16, #tpu.memory_space<vmem>>, vector<512x4xbf16>,
    %c0_28 = arith.constant 0 : index
    %c2_29 = arith.constant 2 : index
    %c0_30 = arith.constant 0 : index
    %c0_31 = arith.constant 0 : index
    %18 = vector.load %arg1[%c0_28, %c2_29, %c0_30, %c0_31] : memref<2x18x18x4xbf16, #tpu.memory_space<vmem>>, vector<2x16x16x4xbf16>
    %19 = vector.shape_cast %18 : vector<2x16x16x4xbf16> to vector<512x4xbf16>
    %c0_32 = arith.constant 0 : index
    %c24 = arith.constant 24 : index
    %20 = vector.load %arg5[%c0_32, %c24] : memref<512x36xbf16, #tpu.memory_space<vmem>>, vector<512x4xbf16>
    tpu.vector_store %arg5[%c0_32, %c24], %19 {strides = array<i32>} : memref<512x36xbf16, #tpu.memory_space<vmem>>, vector<512x4xbf16>,
    %c0_33 = arith.constant 0 : index
    %c2_34 = arith.constant 2 : index
    %c1_35 = arith.constant 1 : index
    %c0_36 = arith.constant 0 : index
    %21 = vector.load %arg1[%c0_33, %c2_34, %c1_35, %c0_36] : memref<2x18x18x4xbf16, #tpu.memory_space<vmem>>, vector<2x16x16x4xbf16>
    %22 = vector.shape_cast %21 : vector<2x16x16x4xbf16> to vector<512x4xbf16>
    %c0_37 = arith.constant 0 : index
    %c28 = arith.constant 28 : index
    %23 = vector.load %arg5[%c0_37, %c28] : memref<512x36xbf16, #tpu.memory_space<vmem>>, vector<512x4xbf16>
    tpu.vector_store %arg5[%c0_37, %c28], %22 {strides = array<i32>} : memref<512x36xbf16, #tpu.memory_space<vmem>>, vector<512x4xbf16>,
    %c0_38 = arith.constant 0 : index
    %c2_39 = arith.constant 2 : index
    %c2_40 = arith.constant 2 : index
    %c0_41 = arith.constant 0 : index
    %24 = vector.load %arg1[%c0_38, %c2_39, %c2_40, %c0_41] : memref<2x18x18x4xbf16, #tpu.memory_space<vmem>>, vector<2x16x16x4xbf16>
    %25 = vector.shape_cast %24 : vector<2x16x16x4xbf16> to vector<512x4xbf16>
    %c0_42 = arith.constant 0 : index
    %c32 = arith.constant 32 : index
    %26 = vector.load %arg5[%c0_42, %c32] : memref<512x36xbf16, #tpu.memory_space<vmem>>, vector<512x4xbf16>
    tpu.vector_store %arg5[%c0_42, %c32], %25 {strides = array<i32>} : memref<512x36xbf16, #tpu.memory_space<vmem>>, vector<512x4xbf16>,
    %c0_43 = arith.constant 0 : index
    %c0_44 = arith.constant 0 : index
    %27 = vector.load %arg5[%c0_43, %c0_44] : memref<512x36xbf16, #tpu.memory_space<vmem>>, vector<512x36xbf16>
    %c0_45 = arith.constant 0 : index
    %c0_46 = arith.constant 0 : index
    %28 = vector.load %arg2[%c0_45, %c0_46] : memref<36x8xbf16, #tpu.memory_space<vmem>>, vector<36x8xbf16>
    %cst = arith.constant dense<0.000000e+00> : vector<512x8xf32>
    %29 = tpu.matmul %27, %28, %cst {dimension_numbers = #tpu.dot_dimension_numbers<[1], [0], [0], [1], [0, 0, 1, 1], [], []>} : vector<512x36xbf16>, vector<36x8xbf16>, vector<512x8xf32> -> vector<512x8xf32>
    %c0_47 = arith.constant 0 : index
    %c0_48 = arith.constant 0 : index
    %30 = vector.load %arg3[%c0_47, %c0_48] : memref<1x8xf32, #tpu.memory_space<vmem>>, vector<1x8xf32>
    %31 = vector.broadcast %30 : vector<1x8xf32> to vector<512x8xf32>
    %32 = arith.addf %29, %31 : vector<512x8xf32>
    %33 = vector.shape_cast %32 : vector<512x8xf32> to vector<2x256x8xf32>
    %c0_49 = arith.constant 0 : index
    %c0_50 = arith.constant 0 : index
    %c0_51 = arith.constant 0 : index
    %34 = vector.load %arg4[%c0_49, %c0_50, %c0_51] : memref<2x256x8xf32, #tpu.memory_space<vmem>>, vector<2x256x8xf32>
    tpu.vector_store %arg4[%c0_49, %c0_50, %c0_51], %33 {strides = array<i32>} : memref<2x256x8xf32, #tpu.memory_space<vmem>>, vector<2x256x8xf32>,
    return
  }
  func.func @transform_0(%arg0: i32) -> (i32, i32, i32, i32) {
    %c0_i32 = arith.constant 0 : i32
    %c0_i32_0 = arith.constant 0 : i32
    %c0_i32_1 = arith.constant 0 : i32
    %c0_i32_2 = arith.constant 0 : i32
    return %arg0, %c0_i32, %c0_i32_0, %c0_i32_1 : i32, i32, i32, i32
  }
  func.func @transform_1(%arg0: i32) -> (i32, i32) {
    %c0_i32 = arith.constant 0 : i32
    %c0_i32_0 = arith.constant 0 : i32
    %c0_i32_1 = arith.constant 0 : i32
    return %c0_i32, %c0_i32_0 : i32, i32
  }
  func.func @transform_2(%arg0: i32) -> (i32, i32) {
    %c0_i32 = arith.constant 0 : i32
    %c0_i32_0 = arith.constant 0 : i32
    %c0_i32_1 = arith.constant 0 : i32
    return %c0_i32, %c0_i32_0 : i32, i32
  }
  func.func @transform_3(%arg0: i32) -> (i32, i32, i32) {
    %c0_i32 = arith.constant 0 : i32
    %c0_i32_0 = arith.constant 0 : i32
    %c0_i32_1 = arith.constant 0 : i32
    return %arg0, %c0_i32, %c0_i32_0 : i32, i32, i32
  }
}

</mosaic_0001>

<llo_original>
// kernel: tpu_custom_call.1
$region0: #{tpu_custom_call.1}
  #allocation0 [shape = 'u32[]', space=smem, size = 0x4, offset = 0x4, fixed_abs, tag = 'smem constant byte address 0x4 - core index']
  #allocation1 [shape = 'u32[144,128]{1,0:T(1,128)}', space=vmem, size = 0x12000, scoped, tag = 'internal scratch']
  #allocation2 [shape = 'bf16[512,36]{1,0:T(8,128)(2,1)}', space=vmem, size = 0x20000, scoped, tag = 'scratch operand']
  %s0 = inlined_call_operand.vmem [shape: bf16[4,18,18,4], index: 0, kind: input, shape index: {}]
  %s1 = inlined_call_operand.vmem [shape: bf16[36,8], index: 1, kind: input, shape index: {}]
  %s2 = inlined_call_operand.vmem [shape: f32[1,8], index: 2, kind: input, shape index: {}]
  %s3 = inlined_call_operand.vmem [shape: f32[4,256,8], index: 3, kind: output, shape index: {}]
  %s4 = sld [smem:[#allocation0]]
  $region45: #{tpu_custom_call.1} parent=0
    _
  %s6 = ssub.s32 1, %s4
  %s7 = scalar_select 0, %s6, %s4
  loop: start=0, step=1, limit=4
  $region2: #{tpu_custom_call.1} parent=0 // loop_pre_header
    _
  $region3: #{tpu_custom_call.1} parent=0 // loop_header
    %s9 = sphi 0, %s13
    %p10 = scmp.ge.s32.totalorder %s9, 4
    %s19 = sphi 0, %s21
    %s22 = sphi 0, %s19
    %s23 = sphi 0, %s22
    %s39 = sphi 0, %s23
    %s43 = sphi 0, %s43
    %s45 = sphi 0, %s43
    %s46 = sphi 0, %s45
    %s60 = sphi 0, %s46
    %s64 = sphi 0, %s64
    %s66 = sphi 0, %s64
    %s67 = sphi 0, %s66
    %s81 = sphi 0, %s67
    %s87 = sphi 0, %s89
    %s90 = sphi 0, %s87
    %s91 = sphi 0, %s90
    %s107 = sphi 0, %s91
  $region4: #{tpu_custom_call.1} parent=0 // loop_header_branch
    %12 = sbr.rel (%p10) target = $region8
  $region5: #{tpu_custom_call.1} parent=0 // loop_body
    %s14 = ssub.s32 %s9, 1
    %s15 = ssub.s32 %s9, 2
    %s16 = sadd.s32 %s9, 1
    %s17 = ssub.s32 %s9, %s16
    %p18 = scmp.eq.s32.totalorder %s17, 0
    %s20 = sadd.s32 %s19, 1
    %s21 = scalar_select %p18, %s19, %s20
    %p24 = pneg %p18
    %p25 = scmp.eq.s32.totalorder %s9, 1
    %p26 = por %p24, %p25
    %p27 = scmp.ne.s32.totalorder %s19, %s22
    %p28 = scmp.eq.s32.totalorder %s9, 0
    %p29 = por %p27, %p28
    %p30 = scmp.ne.s32.totalorder %s19, %s22
    %p31 = scmp.eq.s32.totalorder %s14, 1
    %p32 = por %p30, %p31
    %p33 = scmp.ne.s32.totalorder %s22, %s23
    %p34 = scmp.eq.s32.totalorder %s14, 0
    %p35 = por %p33, %p34
    %p36 = scmp.ne.s32.totalorder %s22, %s23
    %p37 = scmp.eq.s32.totalorder %s15, 1
    %p38 = por %p36, %p37
    %p40 = scmp.ne.s32.totalorder %s23, %s39
    %p41 = scmp.eq.s32.totalorder %s15, 0
    %p42 = por %p40, %p41
    %s44 = sadd.s32 %s43, 1
    %p47 = scmp.eq.s32.totalorder %s9, 1
    %p48 = scmp.ne.s32.totalorder %s43, %s45
    %p49 = scmp.eq.s32.totalorder %s9, 0
    %p50 = por %p48, %p49
    %p51 = scmp.ne.s32.totalorder %s43, %s45
    %p52 = scmp.eq.s32.totalorder %s14, 1
    %p53 = por %p51, %p52
    %p54 = scmp.ne.s32.totalorder %s45, %s46
    %p55 = scmp.eq.s32.totalorder %s14, 0
    %p56 = por %p54, %p55
    %p57 = scmp.ne.s32.totalorder %s45, %s46
    %p58 = scmp.eq.s32.totalorder %s15, 1
    %p59 = por %p57, %p58
    %p61 = scmp.ne.s32.totalorder %s46, %s60
    %p62 = scmp.eq.s32.totalorder %s15, 0
    %p63 = por %p61, %p62
    %s65 = sadd.s32 %s64, 1
    %p68 = scmp.eq.s32.totalorder %s9, 1
    %p69 = scmp.ne.s32.totalorder %s64, %s66
    %p70 = scmp.eq.s32.totalorder %s9, 0
    %p71 = por %p69, %p70
    %p72 = scmp.ne.s32.totalorder %s64, %s66
    %p73 = scmp.eq.s32.totalorder %s14, 1
    %p74 = por %p72, %p73
    %p75 = scmp.ne.s32.totalorder %s66, %s67
    %p76 = scmp.eq.s32.totalorder %s14, 0
    %p77 = por %p75, %p76
    %p78 = scmp.ne.s32.totalorder %s66, %s67
    %p79 = scmp.eq.s32.totalorder %s15, 1
    %p80 = por %p78, %p79
    %p82 = scmp.ne.s32.totalorder %s67, %s81
    %p83 = scmp.eq.s32.totalorder %s15, 0
    %p84 = por %p82, %p83
    %s85 = ssub.s32 %s9, %s16
    %p86 = scmp.eq.s32.totalorder %s85, 0
    %s88 = sadd.s32 %s87, 1
    %s89 = scalar_select %p86, %s87, %s88
    %p92 = pneg %p86
    %p93 = scmp.eq.s32.totalorder %s9, 1
    %p94 = por %p92, %p93
    %p95 = scmp.ne.s32.totalorder %s87, %s90
    %p96 = scmp.eq.s32.totalorder %s9, 0
    %p97 = por %p95, %p96
    %p98 = scmp.ne.s32.totalorder %s87, %s90
    %p99 = scmp.eq.s32.totalorder %s14, 1
    %p100 = por %p98, %p99
    %p101 = scmp.ne.s32.totalorder %s90, %s91
    %p102 = scmp.eq.s32.totalorder %s14, 0
    %p103 = por %p101, %p102
    %p104 = scmp.ne.s32.totalorder %s90, %s91
    %p105 = scmp.eq.s32.totalorder %s15, 1
    %p106 = por %p104, %p105
    %p108 = scmp.ne.s32.totalorder %s91, %s107
    %p109 = scmp.eq.s32.totalorder %s15, 0
    %p110 = por %p108, %p109
    %p111 = scmp.le.s32.totalorder 1, %s9
    %p112 = scmp.lt.s32.totalorder %s9, 3
    %p113 = pnand %p111, %p112
    %p114 = pneg %p113
    // Predicated region
    $region9: #{tpu_custom_call.1} parent=5 // pred_check
      _
    $region10: #{tpu_custom_call.1} parent=5 // pred_check_branch
      %116 = sbr.rel (%p113) target = $region12
    $region11: #{tpu_custom_call.1} parent=5 // pred_region
      %s117 = ssub.s32 %s9, 1
      // Predicated region
      $region13: #{tpu_custom_call.1} parent=11 // pred_check
        %p118 = pneg %p56
      $region14: #{tpu_custom_call.1} parent=11 // pred_check_branch
        %120 = sbr.rel (%p118) target = $region16
      $region15: #{tpu_custom_call.1} parent=11 // pred_region
        _
      $region16: #{tpu_custom_call.1} parent=11 // pred_fallthru
        _
      // Predicated region
      $region17: #{tpu_custom_call.1} parent=11 // pred_check
        %p121 = pneg %p77
      $region18: #{tpu_custom_call.1} parent=11 // pred_check_branch
        %123 = sbr.rel (%p121) target = $region20
      $region19: #{tpu_custom_call.1} parent=11 // pred_region
        _
      $region20: #{tpu_custom_call.1} parent=11 // pred_fallthru
        _
    $region12: #{tpu_custom_call.1} parent=5 // pred_fallthru
      _
    %p124 = scmp.lt.s32.totalorder %s9, 2
    // Predicated region
    $region21: #{tpu_custom_call.1} parent=5 // pred_check
      %p125 = pneg %p124
    $region22: #{tpu_custom_call.1} parent=5 // pred_check_branch
      %127 = sbr.rel (%p125) target = $region24
    $region23: #{tpu_custom_call.1} parent=5 // pred_region
      // Predicated region
      $region25: #{tpu_custom_call.1} parent=23 // pred_check
        %p128 = pneg %p29
      $region26: #{tpu_custom_call.1} parent=23 // pred_check_branch
        %130 = sbr.rel (%p128) target = $region28
      $region27: #{tpu_custom_call.1} parent=23 // pred_region
        %s131 = smul.u32 2, %s9
        %p132 = scmp.lt.s32.totalorder %s131, 3
        %s133 = scalar_select %p132, %s131, 3
        %s134 = smul.addr %s133, 54
        %s135 = smul.addr %s134, 4
        %s136 = scalar_lea.vmem %s0, %s135
        %s137 = smul.u32 2, %s9
      $region28: #{tpu_custom_call.1} parent=23 // pred_fallthru
        _
    $region24: #{tpu_custom_call.1} parent=5 // pred_fallthru
      _
    %p138 = scmp.le.s32.totalorder 1, %s9
    %p139 = scmp.lt.s32.totalorder %s9, 3
    %p140 = pnand %p138, %p139
    %p141 = pneg %p140
    // Predicated region
    $region29: #{tpu_custom_call.1} parent=5 // pred_check
      _
    $region30: #{tpu_custom_call.1} parent=5 // pred_check_branch
      %143 = sbr.rel (%p140) target = $region32
    $region31: #{tpu_custom_call.1} parent=5 // pred_region
      %s144 = ssub.s32 %s9, 1
      %s145 = smul.u32 2, %s14
      %p146 = scmp.lt.s32.totalorder %s145, 3
      %s147 = scalar_select %p146, %s145, 3
      %s148 = smul.addr %s147, 54
      %s149 = smul.addr %s148, 4
      %s150 = scalar_lea.vmem %s0, %s149
      %p151 = pneg %p35
      %p152 = pneg %p32
      %p153 = pneg %p56
      %p154 = pneg %p53
      %p155 = pneg %p77
      %p156 = pneg %p74
      %p157 = pneg %p103
      %p158 = pneg %p100
      %s159 = smul.u32 2, %s14
      %p160 = scmp.lt.s32.totalorder %s159, 3
      %s161 = scalar_select %p160, %s159, 3
      %s162 = smul.addr %s161, 32
      %s163 = smul.addr %s162, 8
      %s164 = scalar_lea.vmem %s3, %s163
      %s165 = smul.u32 2, %s14
      %p166 = scmp.lt.s32.totalorder %s165, 3
      %s167 = scalar_select %p166, %s165, 3
      %s168 = smul.addr %s167, 54
      %s169 = smul.addr %s168, 4
      %s170 = scalar_lea.vmem %s0, %s169
      %s171 = smul.u32 2, %s14
      %s172 = smul.u32 2, %s14
      %p173 = scmp.lt.s32.totalorder %s172, 3
      %s174 = scalar_select %p173, %s172, 3
      %s175 = smul.addr %s174, 32
      %s176 = smul.addr %s175, 8
      %s177 = scalar_lea.vmem %s3, %s176
      %s178 = smul.u32 2, %s14
      %v180 = vld [vmem:[%s170] sm:$0xf]
      %v181 = vld [vmem:[%s170 + $0x4] sm:$0xf]
      %v182 = vld [vmem:[%s170 + $0xc] sm:$0xf]
      %v183 = vld [vmem:[%s170 + $0x10] sm:$0xf]
      %v184 = vld [vmem:[%s170 + $0x18] sm:$0xf]
      %v185 = vld [vmem:[%s170 + $0x1c] sm:$0xf]
      %v186 = vld [vmem:[%s170 + $0x24] sm:$0xf]
      %v187 = vld [vmem:[%s170 + $0x28] sm:$0xf]
      %v188 = vld [vmem:[%s170 + $0x30] sm:$0xf]
      %v189 = vld [vmem:[%s170 + $0x34] sm:$0xf]
      %v190 = vld [vmem:[%s170 + $0x3c] sm:$0xf]
      %v191 = vld [vmem:[%s170 + $0x40] sm:$0xf]
      %v192 = vld [vmem:[%s170 + $0x48] sm:$0xf]
      %v193 = vld [vmem:[%s170 + $0x4c] sm:$0xf]
      %v194 = vld [vmem:[%s170 + $0x54] sm:$0xf]
      %v195 = vld [vmem:[%s170 + $0x58] sm:$0xf]
      %v196 = vld [vmem:[%s170 + $0x60] sm:$0xf]
      %v197 = vld [vmem:[%s170 + $0x64] sm:$0xf]
      %v198 = vld [vmem:[%s170 + $0x6c] sm:$0xf]
      %v199 = vld [vmem:[%s170 + $0x70] sm:$0xf]
      %v200 = vld [vmem:[%s170 + $0x78] sm:$0xf]
      %v201 = vld [vmem:[%s170 + $0x7c] sm:$0xf]
      %v202 = vld [vmem:[%s170 + $0x84] sm:$0xf]
      %v203 = vld [vmem:[%s170 + $0x88] sm:$0xf]
      %v204 = vld [vmem:[%s170 + $0x90] sm:$0xf]
      %v205 = vld [vmem:[%s170 + $0x94] sm:$0xf]
      %v206 = vld [vmem:[%s170 + $0x9c] sm:$0xf]
      %v207 = vld [vmem:[%s170 + $0xa0] sm:$0xf]
      %v208 = vld [vmem:[%s170 + $0xa8] sm:$0xf]
      %v209 = vld [vmem:[%s170 + $0xac] sm:$0xf]
      %v210 = vld [vmem:[%s170 + $0xb4] sm:$0xf]
      %v211 = vld [vmem:[%s170 + $0xb8] sm:$0xf]
      %v212 = vld [vmem:[%s170 + $0xd8] sm:$0xf]
      %v213 = vld [vmem:[%s170 + $0xdc] sm:$0xf]
      %v214 = vld [vmem:[%s170 + $0xe4] sm:$0xf]
      %v215 = vld [vmem:[%s170 + $0xe8] sm:$0xf]
      %v216 = vld [vmem:[%s170 + $0xf0] sm:$0xf]
      %v217 = vld [vmem:[%s170 + $0xf4] sm:$0xf]
      %v218 = vld [vmem:[%s170 + $0xfc] sm:$0xf]
      %v219 = vld [vmem:[%s170 + $0x100] sm:$0xf]
      %v220 = vld [vmem:[%s170 + $0x108] sm:$0xf]
      %v221 = vld [vmem:[%s170 + $0x10c] sm:$0xf]
      %v222 = vld [vmem:[%s170 + $0x114] sm:$0xf]
      %v223 = vld [vmem:[%s170 + $0x118] sm:$0xf]
      %v224 = vld [vmem:[%s170 + $0x120] sm:$0xf]
      %v225 = vld [vmem:[%s170 + $0x124] sm:$0xf]
      %v226 = vld [vmem:[%s170 + $0x12c] sm:$0xf]
      %v227 = vld [vmem:[%s170 + $0x130] sm:$0xf]
      %v228 = vld [vmem:[%s170 + $0x138] sm:$0xf]
      %v229 = vld [vmem:[%s170 + $0x13c] sm:$0xf]
      %v230 = vld [vmem:[%s170 + $0x144] sm:$0xf]
      %v231 = vld [vmem:[%s170 + $0x148] sm:$0xf]
      %v232 = vld [vmem:[%s170 + $0x150] sm:$0xf]
      %v233 = vld [vmem:[%s170 + $0x154] sm:$0xf]
      %v234 = vld [vmem:[%s170 + $0x15c] sm:$0xf]
      %v235 = vld [vmem:[%s170 + $0x160] sm:$0xf]
      %v236 = vld [vmem:[%s170 + $0x168] sm:$0xf]
      %v237 = vld [vmem:[%s170 + $0x16c] sm:$0xf]
      %v238 = vld [vmem:[%s170 + $0x174] sm:$0xf]
      %v239 = vld [vmem:[%s170 + $0x178] sm:$0xf]
      %v240 = vld [vmem:[%s170 + $0x180] sm:$0xf]
      %v241 = vld [vmem:[%s170 + $0x184] sm:$0xf]
      %v242 = vld [vmem:[%s170 + $0x18c] sm:$0xf]
      %v243 = vld [vmem:[%s170 + $0x190] sm:$0xf]
      %vm244 = vcmask 27648
      %245 = vst.msk [vmem:[#allocation2] sm:$0xf] %vm244, %v180
      %246 = vst.msk [vmem:[#allocation2 + $0x4] sm:$0xf] %vm244, %v181
      %247 = vst.msk [vmem:[#allocation2 + $0x8] sm:$0xf] %vm244, %v182
      %248 = vst.msk [vmem:[#allocation2 + $0xc] sm:$0xf] %vm244, %v183
      %249 = vst.msk [vmem:[#allocation2 + $0x10] sm:$0xf] %vm244, %v184
      %250 = vst.msk [vmem:[#allocation2 + $0x14] sm:$0xf] %vm244, %v185
      %251 = vst.msk [vmem:[#allocation2 + $0x18] sm:$0xf] %vm244, %v186
      %252 = vst.msk [vmem:[#allocation2 + $0x1c] sm:$0xf] %vm244, %v187
      %253 = vst.msk [vmem:[#allocation2 + $0x20] sm:$0xf] %vm244, %v188
      %254 = vst.msk [vmem:[#allocation2 + $0x24] sm:$0xf] %vm244, %v189
      %255 = vst.msk [vmem:[#allocation2 + $0x28] sm:$0xf] %vm244, %v190
      %256 = vst.msk [vmem:[#allocation2 + $0x2c] sm:$0xf] %vm244, %v191
      %257 = vst.msk [vmem:[#allocation2 + $0x30] sm:$0xf] %vm244, %v192
      %258 = vst.msk [vmem:[#allocation2 + $0x34] sm:$0xf] %vm244, %v193
      %259 = vst.msk [vmem:[#allocation2 + $0x38] sm:$0xf] %vm244, %v194
      %260 = vst.msk [vmem:[#allocation2 + $0x3c] sm:$0xf] %vm244, %v195
      %261 = vst.msk [vmem:[#allocation2 + $0x40] sm:$0xf] %vm244, %v196
      %262 = vst.msk [vmem:[#allocation2 + $0x44] sm:$0xf] %vm244, %v197
      %263 = vst.msk [vmem:[#allocation2 + $0x48] sm:$0xf] %vm244, %v198
      %264 = vst.msk [vmem:[#allocation2 + $0x4c] sm:$0xf] %vm244, %v199
      %265 = vst.msk [vmem:[#allocation2 + $0x50] sm:$0xf] %vm244, %v200
      %266 = vst.msk [vmem:[#allocation2 + $0x54] sm:$0xf] %vm244, %v201
      %267 = vst.msk [vmem:[#allocation2 + $0x58] sm:$0xf] %vm244, %v202
      %268 = vst.msk [vmem:[#allocation2 + $0x5c] sm:$0xf] %vm244, %v203
      %269 = vst.msk [vmem:[#allocation2 + $0x60] sm:$0xf] %vm244, %v204
      %270 = vst.msk [vmem:[#allocation2 + $0x64] sm:$0xf] %vm244, %v205
      %271 = vst.msk [vmem:[#allocation2 + $0x68] sm:$0xf] %vm244, %v206
      %272 = vst.msk [vmem:[#allocation2 + $0x6c] sm:$0xf] %vm244, %v207
      %273 = vst.msk [vmem:[#allocation2 + $0x70] sm:$0xf] %vm244, %v208
      %274 = vst.msk [vmem:[#allocation2 + $0x74] sm:$0xf] %vm244, %v209
      %275 = vst.msk [vmem:[#allocation2 + $0x78] sm:$0xf] %vm244, %v210
      %276 = vst.msk [vmem:[#allocation2 + $0x7c] sm:$0xf] %vm244, %v211
      %277 = vst.msk [vmem:[#allocation2 + $0x80] sm:$0xf] %vm244, %v212
      %278 = vst.msk [vmem:[#allocation2 + $0x84] sm:$0xf] %vm244, %v213
      %279 = vst.msk [vmem:[#allocation2 + $0x88] sm:$0xf] %vm244, %v214
      %280 = vst.msk [vmem:[#allocation2 + $0x8c] sm:$0xf] %vm244, %v215
      %281 = vst.msk [vmem:[#allocation2 + $0x90] sm:$0xf] %vm244, %v216
      %282 = vst.msk [vmem:[#allocation2 + $0x94] sm:$0xf] %vm244, %v217
      %283 = vst.msk [vmem:[#allocation2 + $0x98] sm:$0xf] %vm244, %v218
      %284 = vst.msk [vmem:[#allocation2 + $0x9c] sm:$0xf] %vm244, %v219
      %285 = vst.msk [vmem:[#allocation2 + $0xa0] sm:$0xf] %vm244, %v220
      %286 = vst.msk [vmem:[#allocation2 + $0xa4] sm:$0xf] %vm244, %v221
      %287 = vst.msk [vmem:[#allocation2 + $0xa8] sm:$0xf] %vm244, %v222
      %288 = vst.msk [vmem:[#allocation2 + $0xac] sm:$0xf] %vm244, %v223
      %289 = vst.msk [vmem:[#allocation2 + $0xb0] sm:$0xf] %vm244, %v224
      %290 = vst.msk [vmem:[#allocation2 + $0xb4] sm:$0xf] %vm244, %v225
      %291 = vst.msk [vmem:[#allocation2 + $0xb8] sm:$0xf] %vm244, %v226
      %292 = vst.msk [vmem:[#allocation2 + $0xbc] sm:$0xf] %vm244, %v227
      %293 = vst.msk [vmem:[#allocation2 + $0xc0] sm:$0xf] %vm244, %v228
      %294 = vst.msk [vmem:[#allocation2 + $0xc4] sm:$0xf] %vm244, %v229
      %295 = vst.msk [vmem:[#allocation2 + $0xc8] sm:$0xf] %vm244, %v230
      %296 = vst.msk [vmem:[#allocation2 + $0xcc] sm:$0xf] %vm244, %v231
      %297 = vst.msk [vmem:[#allocation2 + $0xd0] sm:$0xf] %vm244, %v232
      %298 = vst.msk [vmem:[#allocation2 + $0xd4] sm:$0xf] %vm244, %v233
      %299 = vst.msk [vmem:[#allocation2 + $0xd8] sm:$0xf] %vm244, %v234
      %300 = vst.msk [vmem:[#allocation2 + $0xdc] sm:$0xf] %vm244, %v235
      %301 = vst.msk [vmem:[#allocation2 + $0xe0] sm:$0xf] %vm244, %v236
      %302 = vst.msk [vmem:[#allocation2 + $0xe4] sm:$0xf] %vm244, %v237
      %303 = vst.msk [vmem:[#allocation2 + $0xe8] sm:$0xf] %vm244, %v238
      %304 = vst.msk [vmem:[#allocation2 + $0xec] sm:$0xf] %vm244, %v239
      %305 = vst.msk [vmem:[#allocation2 + $0xf0] sm:$0xf] %vm244, %v240
      %306 = vst.msk [vmem:[#allocation2 + $0xf4] sm:$0xf] %vm244, %v241
      %307 = vst.msk [vmem:[#allocation2 + $0xf8] sm:$0xf] %vm244, %v242
      %308 = vst.msk [vmem:[#allocation2 + $0xfc] sm:$0xf] %vm244, %v243
      %v309 = vld [vmem:[%s170] sm:$0xf]
      %v310 = vld [vmem:[%s170 + $0x4] sm:$0xf]
      %v311 = vld [vmem:[%s170 + $0x8] sm:$0x1]
      %v312 = vld [vmem:[%s170 + $0xc] sm:$0xf]
      %v313 = vld [vmem:[%s170 + $0x10] sm:$0xf]
      %v314 = vld [vmem:[%s170 + $0x14] sm:$0x1]
      %v315 = vld [vmem:[%s170 + $0x18] sm:$0xf]
      %v316 = vld [vmem:[%s170 + $0x1c] sm:$0xf]
      %v317 = vld [vmem:[%s170 + $0x20] sm:$0x1]
      %v318 = vld [vmem:[%s170 + $0x24] sm:$0xf]
      %v319 = vld [vmem:[%s170 + $0x28] sm:$0xf]
      %v320 = vld [vmem:[%s170 + $0x2c] sm:$0x1]
      %v321 = vld [vmem:[%s170 + $0x30] sm:$0xf]
      %v322 = vld [vmem:[%s170 + $0x34] sm:$0xf]
      %v323 = vld [vmem:[%s170 + $0x38] sm:$0x1]
      %v324 = vld [vmem:[%s170 + $0x3c] sm:$0xf]
      %v325 = vld [vmem:[%s170 + $0x40] sm:$0xf]
      %v326 = vld [vmem:[%s170 + $0x44] sm:$0x1]
      %v327 = vld [vmem:[%s170 + $0x48] sm:$0xf]
      %v328 = vld [vmem:[%s170 + $0x4c] sm:$0xf]
      %v329 = vld [vmem:[%s170 + $0x50] sm:$0x1]
      %v330 = vld [vmem:[%s170 + $0x54] sm:$0xf]
      %v331 = vld [vmem:[%s170 + $0x58] sm:$0xf]
      %v332 = vld [vmem:[%s170 + $0x5c] sm:$0x1]
      %v333 = vld [vmem:[%s170 + $0x60] sm:$0xf]
      %v334 = vld [vmem:[%s170 + $0x64] sm:$0xf]
      %v335 = vld [vmem:[%s170 + $0x68] sm:$0x1]
      %v336 = vld [vmem:[%s170 + $0x6c] sm:$0xf]
      %v337 = vld [vmem:[%s170 + $0x70] sm:$0xf]
      %v338 = vld [vmem:[%s170 + $0x74] sm:$0x1]
      %v339 = vld [vmem:[%s170 + $0x78] sm:$0xf]
      %v340 = vld [vmem:[%s170 + $0x7c] sm:$0xf]
      %v341 = vld [vmem:[%s170 + $0x80] sm:$0x1]
      %v342 = vld [vmem:[%s170 + $0x84] sm:$0xf]
      %v343 = vld [vmem:[%s170 + $0x88] sm:$0xf]
      %v344 = vld [vmem:[%s170 + $0x8c] sm:$0x1]
      %v345 = vld [vmem:[%s170 + $0x90] sm:$0xf]
      %v346 = vld [vmem:[%s170 + $0x94] sm:$0xf]
      %v347 = vld [vmem:[%s170 + $0x98] sm:$0x1]
      %v348 = vld [vmem:[%s170 + $0x9c] sm:$0xf]
      %v349 = vld [vmem:[%s170 + $0xa0] sm:$0xf]
      %v350 = vld [vmem:[%s170 + $0xa4] sm:$0x1]
      %v351 = vld [vmem:[%s170 + $0xa8] sm:$0xf]
      %v352 = vld [vmem:[%s170 + $0xac] sm:$0xf]
      %v353 = vld [vmem:[%s170 + $0xb0] sm:$0x1]
      %v354 = vld [vmem:[%s170 + $0xb4] sm:$0xf]
      %v355 = vld [vmem:[%s170 + $0xb8] sm:$0xf]
      %v356 = vld [vmem:[%s170 + $0xbc] sm:$0x1]
      %v357 = vld [vmem:[%s170 + $0xd8] sm:$0xf]
      %v358 = vld [vmem:[%s170 + $0xdc] sm:$0xf]
      %v359 = vld [vmem:[%s170 + $0xe0] sm:$0x1]
      %v360 = vld [vmem:[%s170 + $0xe4] sm:$0xf]
      %v361 = vld [vmem:[%s170 + $0xe8] sm:$0xf]
      %v362 = vld [vmem:[%s170 + $0xec] sm:$0x1]
      %v363 = vld [vmem:[%s170 + $0xf0] sm:$0xf]
      %v364 = vld [vmem:[%s170 + $0xf4] sm:$0xf]
      %v365 = vld [vmem:[%s170 + $0xf8] sm:$0x1]
      %v366 = vld [vmem:[%s170 + $0xfc] sm:$0xf]
      %v367 = vld [vmem:[%s170 + $0x100] sm:$0xf]
      %v368 = vld [vmem:[%s170 + $0x104] sm:$0x1]
      %v369 = vld [vmem:[%s170 + $0x108] sm:$0xf]
      %v370 = vld [vmem:[%s170 + $0x10c] sm:$0xf]
      %v371 = vld [vmem:[%s170 + $0x110] sm:$0x1]
      %v372 = vld [vmem:[%s170 + $0x114] sm:$0xf]
      %v373 = vld [vmem:[%s170 + $0x118] sm:$0xf]
      %v374 = vld [vmem:[%s170 + $0x11c] sm:$0x1]
      %v375 = vld [vmem:[%s170 + $0x120] sm:$0xf]
      %v376 = vld [vmem:[%s170 + $0x124] sm:$0xf]
      %v377 = vld [vmem:[%s170 + $0x128] sm:$0x1]
      %v378 = vld [vmem:[%s170 + $0x12c] sm:$0xf]
      %v379 = vld [vmem:[%s170 + $0x130] sm:$0xf]
      %v380 = vld [vmem:[%s170 + $0x134] sm:$0x1]
      %v381 = vld [vmem:[%s170 + $0x138] sm:$0xf]
      %v382 = vld [vmem:[%s170 + $0x13c] sm:$0xf]
      %v383 = vld [vmem:[%s170 + $0x140] sm:$0x1]
      %v384 = vld [vmem:[%s170 + $0x144] sm:$0xf]
      %v385 = vld [vmem:[%s170 + $0x148] sm:$0xf]
      %v386 = vld [vmem:[%s170 + $0x14c] sm:$0x1]
      %v387 = vld [vmem:[%s170 + $0x150] sm:$0xf]
      %v388 = vld [vmem:[%s170 + $0x154] sm:$0xf]
      %v389 = vld [vmem:[%s170 + $0x158] sm:$0x1]
      %v390 = vld [vmem:[%s170 + $0x15c] sm:$0xf]
      %v391 = vld [vmem:[%s170 + $0x160] sm:$0xf]
      %v392 = vld [vmem:[%s170 + $0x164] sm:$0x1]
      %v393 = vld [vmem:[%s170 + $0x168] sm:$0xf]
      %v394 = vld [vmem:[%s170 + $0x16c] sm:$0xf]
      %v395 = vld [vmem:[%s170 + $0x170] sm:$0x1]
      %v396 = vld [vmem:[%s170 + $0x174] sm:$0xf]
      %v397 = vld [vmem:[%s170 + $0x178] sm:$0xf]
      %v398 = vld [vmem:[%s170 + $0x17c] sm:$0x1]
      %v399 = vld [vmem:[%s170 + $0x180] sm:$0xf]
      %v400 = vld [vmem:[%s170 + $0x184] sm:$0xf]
      %v401 = vld [vmem:[%s170 + $0x188] sm:$0x1]
      %v402 = vld [vmem:[%s170 + $0x18c] sm:$0xf]
      %v403 = vld [vmem:[%s170 + $0x190] sm:$0xf]
      %v404 = vld [vmem:[%s170 + $0x194] sm:$0x1]
      %vm405 = vsmask.f32 3328
      %vm406 = vsmask.f32 7440
      %vm407 = vmor %vm405, %vm406
      %v409 = vshrl.u32 %v309, 16
      %v411 = vrot.slane %v409, 4
      %v412 = vshll.u32 %v309, 16
      %v414 = vrot.slane %v412, 5
      %v415 = vor.u32 %v411, %v414
      %v416 = vrot.slane %v415, 4
      %v418 = vshll.u32 %v310, 16
      %v420 = vrot.slane %v418, 5
      %v421 = vsel %vm407, %v416, %v420
      %v422 = vshrl.u32 %v310, 16
      %v424 = vrot.slane %v422, 4
      %v425 = vor.u32 %v424, %v420
      %v426 = vrot.slane %v425, 4
      %v428 = vshll.u32 %v311, 16
      %v430 = vrot.slane %v428, 5
      %v431 = vsel %vm407, %v426, %v430
      %v433 = vshrl.u32 %v312, 16
      %v435 = vrot.slane %v433, 4
      %v436 = vshll.u32 %v312, 16
      %v438 = vrot.slane %v436, 5
      %v439 = vor.u32 %v435, %v438
      %v440 = vrot.slane %v439, 4
      %v442 = vshll.u32 %v313, 16
      %v444 = vrot.slane %v442, 5
      %v445 = vsel %vm407, %v440, %v444
      %v446 = vshrl.u32 %v313, 16
      %v448 = vrot.slane %v446, 4
      %v449 = vor.u32 %v448, %v444
      %v450 = vrot.slane %v449, 4
      %v452 = vshll.u32 %v314, 16
      %v454 = vrot.slane %v452, 5
      %v455 = vsel %vm407, %v450, %v454
      %v457 = vshrl.u32 %v315, 16
      %v459 = vrot.slane %v457, 4
      %v460 = vshll.u32 %v315, 16
      %v462 = vrot.slane %v460, 5
      %v463 = vor.u32 %v459, %v462
      %v464 = vrot.slane %v463, 4
      %v466 = vshll.u32 %v316, 16
      %v468 = vrot.slane %v466, 5
      %v469 = vsel %vm407, %v464, %v468
      %v470 = vshrl.u32 %v316, 16
      %v472 = vrot.slane %v470, 4
      %v473 = vor.u32 %v472, %v468
      %v474 = vrot.slane %v473, 4
      %v476 = vshll.u32 %v317, 16
      %v478 = vrot.slane %v476, 5
      %v479 = vsel %vm407, %v474, %v478
      %v481 = vshrl.u32 %v318, 16
      %v483 = vrot.slane %v481, 4
      %v484 = vshll.u32 %v318, 16
      %v486 = vrot.slane %v484, 5
      %v487 = vor.u32 %v483, %v486
      %v488 = vrot.slane %v487, 4
      %v490 = vshll.u32 %v319, 16
      %v492 = vrot.slane %v490, 5
      %v493 = vsel %vm407, %v488, %v492
      %v494 = vshrl.u32 %v319, 16
      %v496 = vrot.slane %v494, 4
      %v497 = vor.u32 %v496, %v492
      %v498 = vrot.slane %v497, 4
      %v500 = vshll.u32 %v320, 16
      %v502 = vrot.slane %v500, 5
      %v503 = vsel %vm407, %v498, %v502
      %v505 = vshrl.u32 %v321, 16
      %v507 = vrot.slane %v505, 4
      %v508 = vshll.u32 %v321, 16
      %v510 = vrot.slane %v508, 5
      %v511 = vor.u32 %v507, %v510
      %v512 = vrot.slane %v511, 4
      %v514 = vshll.u32 %v322, 16
      %v516 = vrot.slane %v514, 5
      %v517 = vsel %vm407, %v512, %v516
      %v518 = vshrl.u32 %v322, 16
      %v520 = vrot.slane %v518, 4
      %v521 = vor.u32 %v520, %v516
      %v522 = vrot.slane %v521, 4
      %v524 = vshll.u32 %v323, 16
      %v526 = vrot.slane %v524, 5
      %v527 = vsel %vm407, %v522, %v526
      %v529 = vshrl.u32 %v324, 16
      %v531 = vrot.slane %v529, 4
      %v532 = vshll.u32 %v324, 16
      %v534 = vrot.slane %v532, 5
      %v535 = vor.u32 %v531, %v534
      %v536 = vrot.slane %v535, 4
      %v538 = vshll.u32 %v325, 16
      %v540 = vrot.slane %v538, 5
      %v541 = vsel %vm407, %v536, %v540
      %v542 = vshrl.u32 %v325, 16
      %v544 = vrot.slane %v542, 4
      %v545 = vor.u32 %v544, %v540
      %v546 = vrot.slane %v545, 4
      %v548 = vshll.u32 %v326, 16
      %v550 = vrot.slane %v548, 5
      %v551 = vsel %vm407, %v546, %v550
      %v553 = vshrl.u32 %v327, 16
      %v555 = vrot.slane %v553, 4
      %v556 = vshll.u32 %v327, 16
      %v558 = vrot.slane %v556, 5
      %v559 = vor.u32 %v555, %v558
      %v560 = vrot.slane %v559, 4
      %v562 = vshll.u32 %v328, 16
      %v564 = vrot.slane %v562, 5
      %v565 = vsel %vm407, %v560, %v564
      %v566 = vshrl.u32 %v328, 16
      %v568 = vrot.slane %v566, 4
      %v569 = vor.u32 %v568, %v564
      %v570 = vrot.slane %v569, 4
      %v572 = vshll.u32 %v329, 16
      %v574 = vrot.slane %v572, 5
      %v575 = vsel %vm407, %v570, %v574
      %v577 = vshrl.u32 %v330, 16
      %v579 = vrot.slane %v577, 4
      %v580 = vshll.u32 %v330, 16
      %v582 = vrot.slane %v580, 5
      %v583 = vor.u32 %v579, %v582
      %v584 = vrot.slane %v583, 4
      %v586 = vshll.u32 %v331, 16
      %v588 = vrot.slane %v586, 5
      %v589 = vsel %vm407, %v584, %v588
      %v590 = vshrl.u32 %v331, 16
      %v592 = vrot.slane %v590, 4
      %v593 = vor.u32 %v592, %v588
      %v594 = vrot.slane %v593, 4
      %v596 = vshll.u32 %v332, 16
      %v598 = vrot.slane %v596, 5
      %v599 = vsel %vm407, %v594, %v598
      %v601 = vshrl.u32 %v333, 16
      %v603 = vrot.slane %v601, 4
      %v604 = vshll.u32 %v333, 16
      %v606 = vrot.slane %v604, 5
      %v607 = vor.u32 %v603, %v606
      %v608 = vrot.slane %v607, 4
      %v610 = vshll.u32 %v334, 16
      %v612 = vrot.slane %v610, 5
      %v613 = vsel %vm407, %v608, %v612
      %v614 = vshrl.u32 %v334, 16
      %v616 = vrot.slane %v614, 4
      %v617 = vor.u32 %v616, %v612
      %v618 = vrot.slane %v617, 4
      %v620 = vshll.u32 %v335, 16
      %v622 = vrot.slane %v620, 5
      %v623 = vsel %vm407, %v618, %v622
      %v625 = vshrl.u32 %v336, 16
      %v627 = vrot.slane %v625, 4
      %v628 = vshll.u32 %v336, 16
      %v630 = vrot.slane %v628, 5
      %v631 = vor.u32 %v627, %v630
      %v632 = vrot.slane %v631, 4
      %v634 = vshll.u32 %v337, 16
      %v636 = vrot.slane %v634, 5
      %v637 = vsel %vm407, %v632, %v636
      %v638 = vshrl.u32 %v337, 16
      %v640 = vrot.slane %v638, 4
      %v641 = vor.u32 %v640, %v636
      %v642 = vrot.slane %v641, 4
      %v644 = vshll.u32 %v338, 16
      %v646 = vrot.slane %v644, 5
      %v647 = vsel %vm407, %v642, %v646
      %v649 = vshrl.u32 %v339, 16
      %v651 = vrot.slane %v649, 4
      %v652 = vshll.u32 %v339, 16
      %v654 = vrot.slane %v652, 5
      %v655 = vor.u32 %v651, %v654
      %v656 = vrot.slane %v655, 4
      %v658 = vshll.u32 %v340, 16
      %v660 = vrot.slane %v658, 5
      %v661 = vsel %vm407, %v656, %v660
      %v662 = vshrl.u32 %v340, 16
      %v664 = vrot.slane %v662, 4
      %v665 = vor.u32 %v664, %v660
      %v666 = vrot.slane %v665, 4
      %v668 = vshll.u32 %v341, 16
      %v670 = vrot.slane %v668, 5
      %v671 = vsel %vm407, %v666, %v670
      %v673 = vshrl.u32 %v342, 16
      %v675 = vrot.slane %v673, 4
      %v676 = vshll.u32 %v342, 16
      %v678 = vrot.slane %v676, 5
      %v679 = vor.u32 %v675, %v678
      %v680 = vrot.slane %v679, 4
      %v682 = vshll.u32 %v343, 16
      %v684 = vrot.slane %v682, 5
      %v685 = vsel %vm407, %v680, %v684
      %v686 = vshrl.u32 %v343, 16
      %v688 = vrot.slane %v686, 4
      %v689 = vor.u32 %v688, %v684
      %v690 = vrot.slane %v689, 4
      %v692 = vshll.u32 %v344, 16
      %v694 = vrot.slane %v692, 5
      %v695 = vsel %vm407, %v690, %v694
      %v697 = vshrl.u32 %v345, 16
      %v699 = vrot.slane %v697, 4
      %v700 = vshll.u32 %v345, 16
      %v702 = vrot.slane %v700, 5
      %v703 = vor.u32 %v699, %v702
      %v704 = vrot.slane %v703, 4
      %v706 = vshll.u32 %v346, 16
      %v708 = vrot.slane %v706, 5
      %v709 = vsel %vm407, %v704, %v708
      %v710 = vshrl.u32 %v346, 16
      %v712 = vrot.slane %v710, 4
      %v713 = vor.u32 %v712, %v708
      %v714 = vrot.slane %v713, 4
      %v716 = vshll.u32 %v347, 16
      %v718 = vrot.slane %v716, 5
      %v719 = vsel %vm407, %v714, %v718
      %v721 = vshrl.u32 %v348, 16
      %v723 = vrot.slane %v721, 4
      %v724 = vshll.u32 %v348, 16
      %v726 = vrot.slane %v724, 5
      %v727 = vor.u32 %v723, %v726
      %v728 = vrot.slane %v727, 4
      %v730 = vshll.u32 %v349, 16
      %v732 = vrot.slane %v730, 5
      %v733 = vsel %vm407, %v728, %v732
      %v734 = vshrl.u32 %v349, 16
      %v736 = vrot.slane %v734, 4
      %v737 = vor.u32 %v736, %v732
      %v738 = vrot.slane %v737, 4
      %v740 = vshll.u32 %v350, 16
      %v742 = vrot.slane %v740, 5
      %v743 = vsel %vm407, %v738, %v742
      %v745 = vshrl.u32 %v351, 16
      %v747 = vrot.slane %v745, 4
      %v748 = vshll.u32 %v351, 16
      %v750 = vrot.slane %v748, 5
      %v751 = vor.u32 %v747, %v750
      %v752 = vrot.slane %v751, 4
      %v754 = vshll.u32 %v352, 16
      %v756 = vrot.slane %v754, 5
      %v757 = vsel %vm407, %v752, %v756
      %v758 = vshrl.u32 %v352, 16
      %v760 = vrot.slane %v758, 4
      %v761 = vor.u32 %v760, %v756
      %v762 = vrot.slane %v761, 4
      %v764 = vshll.u32 %v353, 16
      %v766 = vrot.slane %v764, 5
      %v767 = vsel %vm407, %v762, %v766
      %v769 = vshrl.u32 %v354, 16
      %v771 = vrot.slane %v769, 4
      %v772 = vshll.u32 %v354, 16
      %v774 = vrot.slane %v772, 5
      %v775 = vor.u32 %v771, %v774
      %v776 = vrot.slane %v775, 4
      %v778 = vshll.u32 %v355, 16
      %v780 = vrot.slane %v778, 5
      %v781 = vsel %vm407, %v776, %v780
      %v782 = vshrl.u32 %v355, 16
      %v784 = vrot.slane %v782, 4
      %v785 = vor.u32 %v784, %v780
      %v786 = vrot.slane %v785, 4
      %v788 = vshll.u32 %v356, 16
      %v790 = vrot.slane %v788, 5
      %v791 = vsel %vm407, %v786, %v790
      %v793 = vshrl.u32 %v357, 16
      %v795 = vrot.slane %v793, 4
      %v796 = vshll.u32 %v357, 16
      %v798 = vrot.slane %v796, 5
      %v799 = vor.u32 %v795, %v798
      %v800 = vrot.slane %v799, 4
      %v802 = vshll.u32 %v358, 16
      %v804 = vrot.slane %v802, 5
      %v805 = vsel %vm407, %v800, %v804
      %v806 = vshrl.u32 %v358, 16
      %v808 = vrot.slane %v806, 4
      %v809 = vor.u32 %v808, %v804
      %v810 = vrot.slane %v809, 4
      %v812 = vshll.u32 %v359, 16
      %v814 = vrot.slane %v812, 5
      %v815 = vsel %vm407, %v810, %v814
      %v817 = vshrl.u32 %v360, 16
      %v819 = vrot.slane %v817, 4
      %v820 = vshll.u32 %v360, 16
      %v822 = vrot.slane %v820, 5
      %v823 = vor.u32 %v819, %v822
      %v824 = vrot.slane %v823, 4
      %v826 = vshll.u32 %v361, 16
      %v828 = vrot.slane %v826, 5
      %v829 = vsel %vm407, %v824, %v828
      %v830 = vshrl.u32 %v361, 16
      %v832 = vrot.slane %v830, 4
      %v833 = vor.u32 %v832, %v828
      %v834 = vrot.slane %v833, 4
      %v836 = vshll.u32 %v362, 16
      %v838 = vrot.slane %v836, 5
      %v839 = vsel %vm407, %v834, %v838
      %v841 = vshrl.u32 %v363, 16
      %v843 = vrot.slane %v841, 4
      %v844 = vshll.u32 %v363, 16
      %v846 = vrot.slane %v844, 5
      %v847 = vor.u32 %v843, %v846
      %v848 = vrot.slane %v847, 4
      %v850 = vshll.u32 %v364, 16
      %v852 = vrot.slane %v850, 5
      %v853 = vsel %vm407, %v848, %v852
      %v854 = vshrl.u32 %v364, 16
      %v856 = vrot.slane %v854, 4
      %v857 = vor.u32 %v856, %v852
      %v858 = vrot.slane %v857, 4
      %v860 = vshll.u32 %v365, 16
      %v862 = vrot.slane %v860, 5
      %v863 = vsel %vm407, %v858, %v862
      %v865 = vshrl.u32 %v366, 16
      %v867 = vrot.slane %v865, 4
      %v868 = vshll.u32 %v366, 16
      %v870 = vrot.slane %v868, 5
      %v871 = vor.u32 %v867, %v870
      %v872 = vrot.slane %v871, 4
      %v874 = vshll.u32 %v367, 16
      %v876 = vrot.slane %v874, 5
      %v877 = vsel %vm407, %v872, %v876
      %v878 = vshrl.u32 %v367, 16
      %v880 = vrot.slane %v878, 4
      %v881 = vor.u32 %v880, %v876
      %v882 = vrot.slane %v881, 4
      %v884 = vshll.u32 %v368, 16
      %v886 = vrot.slane %v884, 5
      %v887 = vsel %vm407, %v882, %v886
      %v889 = vshrl.u32 %v369, 16
      %v891 = vrot.slane %v889, 4
      %v892 = vshll.u32 %v369, 16
      %v894 = vrot.slane %v892, 5
      %v895 = vor.u32 %v891, %v894
      %v896 = vrot.slane %v895, 4
      %v898 = vshll.u32 %v370, 16
      %v900 = vrot.slane %v898, 5
      %v901 = vsel %vm407, %v896, %v900
      %v902 = vshrl.u32 %v370, 16
      %v904 = vrot.slane %v902, 4
      %v905 = vor.u32 %v904, %v900
      %v906 = vrot.slane %v905, 4
      %v908 = vshll.u32 %v371, 16
      %v910 = vrot.slane %v908, 5
      %v911 = vsel %vm407, %v906, %v910
      %v913 = vshrl.u32 %v372, 16
      %v915 = vrot.slane %v913, 4
      %v916 = vshll.u32 %v372, 16
      %v918 = vrot.slane %v916, 5
      %v919 = vor.u32 %v915, %v918
      %v920 = vrot.slane %v919, 4
      %v922 = vshll.u32 %v373, 16
      %v924 = vrot.slane %v922, 5
      %v925 = vsel %vm407, %v920, %v924
      %v926 = vshrl.u32 %v373, 16
      %v928 = vrot.slane %v926, 4
      %v929 = vor.u32 %v928, %v924
      %v930 = vrot.slane %v929, 4
      %v932 = vshll.u32 %v374, 16
      %v934 = vrot.slane %v932, 5
      %v935 = vsel %vm407, %v930, %v934
      %v937 = vshrl.u32 %v375, 16
      %v939 = vrot.slane %v937, 4
      %v940 = vshll.u32 %v375, 16
      %v942 = vrot.slane %v940, 5
      %v943 = vor.u32 %v939, %v942
      %v944 = vrot.slane %v943, 4
      %v946 = vshll.u32 %v376, 16
      %v948 = vrot.slane %v946, 5
      %v949 = vsel %vm407, %v944, %v948
      %v950 = vshrl.u32 %v376, 16
      %v952 = vrot.slane %v950, 4
      %v953 = vor.u32 %v952, %v948
      %v954 = vrot.slane %v953, 4
      %v956 = vshll.u32 %v377, 16
      %v958 = vrot.slane %v956, 5
      %v959 = vsel %vm407, %v954, %v958
      %v961 = vshrl.u32 %v378, 16
      %v963 = vrot.slane %v961, 4
      %v964 = vshll.u32 %v378, 16
      %v966 = vrot.slane %v964, 5
      %v967 = vor.u32 %v963, %v966
      %v968 = vrot.slane %v967, 4
      %v970 = vshll.u32 %v379, 16
      %v972 = vrot.slane %v970, 5
      %v973 = vsel %vm407, %v968, %v972
      %v974 = vshrl.u32 %v379, 16
      %v976 = vrot.slane %v974, 4
      %v977 = vor.u32 %v976, %v972
      %v978 = vrot.slane %v977, 4
      %v980 = vshll.u32 %v380, 16
      %v982 = vrot.slane %v980, 5
      %v983 = vsel %vm407, %v978, %v982
      %v985 = vshrl.u32 %v381, 16
      %v987 = vrot.slane %v985, 4
      %v988 = vshll.u32 %v381, 16
      %v990 = vrot.slane %v988, 5
      %v991 = vor.u32 %v987, %v990
      %v992 = vrot.slane %v991, 4
      %v994 = vshll.u32 %v382, 16
      %v996 = vrot.slane %v994, 5
      %v997 = vsel %vm407, %v992, %v996
      %v998 = vshrl.u32 %v382, 16
      %v1000 = vrot.slane %v998, 4
      %v1001 = vor.u32 %v1000, %v996
      %v1002 = vrot.slane %v1001, 4
      %v1004 = vshll.u32 %v383, 16
      %v1006 = vrot.slane %v1004, 5
      %v1007 = vsel %vm407, %v1002, %v1006
      %v1009 = vshrl.u32 %v384, 16
      %v1011 = vrot.slane %v1009, 4
      %v1012 = vshll.u32 %v384, 16
      %v1014 = vrot.slane %v1012, 5
      %v1015 = vor.u32 %v1011, %v1014
      %v1016 = vrot.slane %v1015, 4
      %v1018 = vshll.u32 %v385, 16
      %v1020 = vrot.slane %v1018, 5
      %v1021 = vsel %vm407, %v1016, %v1020
      %v1022 = vshrl.u32 %v385, 16
      %v1024 = vrot.slane %v1022, 4
      %v1025 = vor.u32 %v1024, %v1020
      %v1026 = vrot.slane %v1025, 4
      %v1028 = vshll.u32 %v386, 16
      %v1030 = vrot.slane %v1028, 5
      %v1031 = vsel %vm407, %v1026, %v1030
      %v1033 = vshrl.u32 %v387, 16
      %v1035 = vrot.slane %v1033, 4
      %v1036 = vshll.u32 %v387, 16
      %v1038 = vrot.slane %v1036, 5
      %v1039 = vor.u32 %v1035, %v1038
      %v1040 = vrot.slane %v1039, 4
      %v1042 = vshll.u32 %v388, 16
      %v1044 = vrot.slane %v1042, 5
      %v1045 = vsel %vm407, %v1040, %v1044
      %v1046 = vshrl.u32 %v388, 16
      %v1048 = vrot.slane %v1046, 4
      %v1049 = vor.u32 %v1048, %v1044
      %v1050 = vrot.slane %v1049, 4
      %v1052 = vshll.u32 %v389, 16
      %v1054 = vrot.slane %v1052, 5
      %v1055 = vsel %vm407, %v1050, %v1054
      %v1057 = vshrl.u32 %v390, 16
      %v1059 = vrot.slane %v1057, 4
      %v1060 = vshll.u32 %v390, 16
      %v1062 = vrot.slane %v1060, 5
      %v1063 = vor.u32 %v1059, %v1062
      %v1064 = vrot.slane %v1063, 4
      %v1066 = vshll.u32 %v391, 16
      %v1068 = vrot.slane %v1066, 5
      %v1069 = vsel %vm407, %v1064, %v1068
      %v1070 = vshrl.u32 %v391, 16
      %v1072 = vrot.slane %v1070, 4
      %v1073 = vor.u32 %v1072, %v1068
      %v1074 = vrot.slane %v1073, 4
      %v1076 = vshll.u32 %v392, 16
      %v1078 = vrot.slane %v1076, 5
      %v1079 = vsel %vm407, %v1074, %v1078
      %v1081 = vshrl.u32 %v393, 16
      %v1083 = vrot.slane %v1081, 4
      %v1084 = vshll.u32 %v393, 16
      %v1086 = vrot.slane %v1084, 5
      %v1087 = vor.u32 %v1083, %v1086
      %v1088 = vrot.slane %v1087, 4
      %v1090 = vshll.u32 %v394, 16
      %v1092 = vrot.slane %v1090, 5
      %v1093 = vsel %vm407, %v1088, %v1092
      %v1094 = vshrl.u32 %v394, 16
      %v1096 = vrot.slane %v1094, 4
      %v1097 = vor.u32 %v1096, %v1092
      %v1098 = vrot.slane %v1097, 4
      %v1100 = vshll.u32 %v395, 16
      %v1102 = vrot.slane %v1100, 5
      %v1103 = vsel %vm407, %v1098, %v1102
      %v1105 = vshrl.u32 %v396, 16
      %v1107 = vrot.slane %v1105, 4
      %v1108 = vshll.u32 %v396, 16
      %v1110 = vrot.slane %v1108, 5
      %v1111 = vor.u32 %v1107, %v1110
      %v1112 = vrot.slane %v1111, 4
      %v1114 = vshll.u32 %v397, 16
      %v1116 = vrot.slane %v1114, 5
      %v1117 = vsel %vm407, %v1112, %v1116
      %v1118 = vshrl.u32 %v397, 16
      %v1120 = vrot.slane %v1118, 4
      %v1121 = vor.u32 %v1120, %v1116
      %v1122 = vrot.slane %v1121, 4
      %v1124 = vshll.u32 %v398, 16
      %v1126 = vrot.slane %v1124, 5
      %v1127 = vsel %vm407, %v1122, %v1126
      %v1129 = vshrl.u32 %v399, 16
      %v1131 = vrot.slane %v1129, 4
      %v1132 = vshll.u32 %v399, 16
      %v1134 = vrot.slane %v1132, 5
      %v1135 = vor.u32 %v1131, %v1134
      %v1136 = vrot.slane %v1135, 4
      %v1138 = vshll.u32 %v400, 16
      %v1140 = vrot.slane %v1138, 5
      %v1141 = vsel %vm407, %v1136, %v1140
      %v1142 = vshrl.u32 %v400, 16
      %v1144 = vrot.slane %v1142, 4
      %v1145 = vor.u32 %v1144, %v1140
      %v1146 = vrot.slane %v1145, 4
      %v1148 = vshll.u32 %v401, 16
      %v1150 = vrot.slane %v1148, 5
      %v1151 = vsel %vm407, %v1146, %v1150
      %v1153 = vshrl.u32 %v402, 16
      %v1155 = vrot.slane %v1153, 4
      %v1156 = vshll.u32 %v402, 16
      %v1158 = vrot.slane %v1156, 5
      %v1159 = vor.u32 %v1155, %v1158
      %v1160 = vrot.slane %v1159, 4
      %v1162 = vshll.u32 %v403, 16
      %v1164 = vrot.slane %v1162, 5
      %v1165 = vsel %vm407, %v1160, %v1164
      %v1166 = vshrl.u32 %v403, 16
      %v1168 = vrot.slane %v1166, 4
      %v1169 = vor.u32 %v1168, %v1164
      %v1170 = vrot.slane %v1169, 4
      %v1172 = vshll.u32 %v404, 16
      %v1174 = vrot.slane %v1172, 5
      %v1175 = vsel %vm407, %v1170, %v1174
      %1176 = vrot.lane.b32.xlu0 %v421, 4
      %v1177 = vpop.permute.xlu0 %1176
      %1178 = vrot.lane.b32.xlu0 %v431, 4
      %v1179 = vpop.permute.xlu0 %1178
      %1180 = vrot.lane.b32.xlu0 %v445, 4
      %v1181 = vpop.permute.xlu0 %1180
      %1182 = vrot.lane.b32.xlu0 %v455, 4
      %v1183 = vpop.permute.xlu0 %1182
      %1184 = vrot.lane.b32.xlu0 %v469, 4
      %v1185 = vpop.permute.xlu0 %1184
      %1186 = vrot.lane.b32.xlu0 %v479, 4
      %v1187 = vpop.permute.xlu0 %1186
      %1188 = vrot.lane.b32.xlu0 %v493, 4
      %v1189 = vpop.permute.xlu0 %1188
      %1190 = vrot.lane.b32.xlu0 %v503, 4
      %v1191 = vpop.permute.xlu0 %1190
      %1192 = vrot.lane.b32.xlu0 %v517, 4
      %v1193 = vpop.permute.xlu0 %1192
      %1194 = vrot.lane.b32.xlu0 %v527, 4
      %v1195 = vpop.permute.xlu0 %1194
      %1196 = vrot.lane.b32.xlu0 %v541, 4
      %v1197 = vpop.permute.xlu0 %1196
      %1198 = vrot.lane.b32.xlu0 %v551, 4
      %v1199 = vpop.permute.xlu0 %1198
      %1200 = vrot.lane.b32.xlu0 %v565, 4
      %v1201 = vpop.permute.xlu0 %1200
      %1202 = vrot.lane.b32.xlu0 %v575, 4
      %v1203 = vpop.permute.xlu0 %1202
      %1204 = vrot.lane.b32.xlu0 %v589, 4
      %v1205 = vpop.permute.xlu0 %1204
      %1206 = vrot.lane.b32.xlu0 %v599, 4
      %v1207 = vpop.permute.xlu0 %1206
      %1208 = vrot.lane.b32.xlu0 %v613, 4
      %v1209 = vpop.permute.xlu0 %1208
      %1210 = vrot.lane.b32.xlu0 %v623, 4
      %v1211 = vpop.permute.xlu0 %1210
      %1212 = vrot.lane.b32.xlu0 %v637, 4
      %v1213 = vpop.permute.xlu0 %1212
      %1214 = vrot.lane.b32.xlu0 %v647, 4
      %v1215 = vpop.permute.xlu0 %1214
      %1216 = vrot.lane.b32.xlu0 %v661, 4
      %v1217 = vpop.permute.xlu0 %1216
      %1218 = vrot.lane.b32.xlu0 %v671, 4
      %v1219 = vpop.permute.xlu0 %1218
      %1220 = vrot.lane.b32.xlu0 %v685, 4
      %v1221 = vpop.permute.xlu0 %1220
      %1222 = vrot.lane.b32.xlu0 %v695, 4
      %v1223 = vpop.permute.xlu0 %1222
      %1224 = vrot.lane.b32.xlu0 %v709, 4
      %v1225 = vpop.permute.xlu0 %1224
      %1226 = vrot.lane.b32.xlu0 %v719, 4
      %v1227 = vpop.permute.xlu0 %1226
      %1228 = vrot.lane.b32.xlu0 %v733, 4
      %v1229 = vpop.permute.xlu0 %1228
      %1230 = vrot.lane.b32.xlu0 %v743, 4
      %v1231 = vpop.permute.xlu0 %1230
      %1232 = vrot.lane.b32.xlu0 %v757, 4
      %v1233 = vpop.permute.xlu0 %1232
      %1234 = vrot.lane.b32.xlu0 %v767, 4
      %v1235 = vpop.permute.xlu0 %1234
      %1236 = vrot.lane.b32.xlu0 %v781, 4
      %v1237 = vpop.permute.xlu0 %1236
      %1238 = vrot.lane.b32.xlu0 %v791, 4
      %v1239 = vpop.permute.xlu0 %1238
      %1240 = vrot.lane.b32.xlu0 %v805, 4
      %v1241 = vpop.permute.xlu0 %1240
      %1242 = vrot.lane.b32.xlu0 %v815, 4
      %v1243 = vpop.permute.xlu0 %1242
      %1244 = vrot.lane.b32.xlu0 %v829, 4
      %v1245 = vpop.permute.xlu0 %1244
      %1246 = vrot.lane.b32.xlu0 %v839, 4
      %v1247 = vpop.permute.xlu0 %1246
      %1248 = vrot.lane.b32.xlu0 %v853, 4
      %v1249 = vpop.permute.xlu0 %1248
      %1250 = vrot.lane.b32.xlu0 %v863, 4
      %v1251 = vpop.permute.xlu0 %1250
      %1252 = vrot.lane.b32.xlu0 %v877, 4
      %v1253 = vpop.permute.xlu0 %1252
      %1254 = vrot.lane.b32.xlu0 %v887, 4
      %v1255 = vpop.permute.xlu0 %1254
      %1256 = vrot.lane.b32.xlu0 %v901, 4
      %v1257 = vpop.permute.xlu0 %1256
      %1258 = vrot.lane.b32.xlu0 %v911, 4
      %v1259 = vpop.permute.xlu0 %1258
      %1260 = vrot.lane.b32.xlu0 %v925, 4
      %v1261 = vpop.permute.xlu0 %1260
      %1262 = vrot.lane.b32.xlu0 %v935, 4
      %v1263 = vpop.permute.xlu0 %1262
      %1264 = vrot.lane.b32.xlu0 %v949, 4
      %v1265 = vpop.permute.xlu0 %1264
      %1266 = vrot.lane.b32.xlu0 %v959, 4
      %v1267 = vpop.permute.xlu0 %1266
      %1268 = vrot.lane.b32.xlu0 %v973, 4
      %v1269 = vpop.permute.xlu0 %1268
      %1270 = vrot.lane.b32.xlu0 %v983, 4
      %v1271 = vpop.permute.xlu0 %1270
      %1272 = vrot.lane.b32.xlu0 %v997, 4
      %v1273 = vpop.permute.xlu0 %1272
      %1274 = vrot.lane.b32.xlu0 %v1007, 4
      %v1275 = vpop.permute.xlu0 %1274
      %1276 = vrot.lane.b32.xlu0 %v1021, 4
      %v1277 = vpop.permute.xlu0 %1276
      %1278 = vrot.lane.b32.xlu0 %v1031, 4
      %v1279 = vpop.permute.xlu0 %1278
      %1280 = vrot.lane.b32.xlu0 %v1045, 4
      %v1281 = vpop.permute.xlu0 %1280
      %1282 = vrot.lane.b32.xlu0 %v1055, 4
      %v1283 = vpop.permute.xlu0 %1282
      %1284 = vrot.lane.b32.xlu0 %v1069, 4
      %v1285 = vpop.permute.xlu0 %1284
      %1286 = vrot.lane.b32.xlu0 %v1079, 4
      %v1287 = vpop.permute.xlu0 %1286
      %1288 = vrot.lane.b32.xlu0 %v1093, 4
      %v1289 = vpop.permute.xlu0 %1288
      %1290 = vrot.lane.b32.xlu0 %v1103, 4
      %v1291 = vpop.permute.xlu0 %1290
      %1292 = vrot.lane.b32.xlu0 %v1117, 4
      %v1293 = vpop.permute.xlu0 %1292
      %1294 = vrot.lane.b32.xlu0 %v1127, 4
      %v1295 = vpop.permute.xlu0 %1294
      %1296 = vrot.lane.b32.xlu0 %v1141, 4
      %v1297 = vpop.permute.xlu0 %1296
      %1298 = vrot.lane.b32.xlu0 %v1151, 4
      %v1299 = vpop.permute.xlu0 %1298
      %1300 = vrot.lane.b32.xlu0 %v1165, 4
      %v1301 = vpop.permute.xlu0 %1300
      %1302 = vrot.lane.b32.xlu0 %v1175, 4
      %v1303 = vpop.permute.xlu0 %1302
      %vm1368 = vcmask 60448
      %1369 = vst.msk [vmem:[#allocation2] sm:$0xf] %vm1368, %v1177
      %1370 = vst.msk [vmem:[#allocation2 + $0x4] sm:$0xf] %vm1368, %v1179
      %1371 = vst.msk [vmem:[#allocation2 + $0x8] sm:$0xf] %vm1368, %v1181
      %1372 = vst.msk [vmem:[#allocation2 + $0xc] sm:$0xf] %vm1368, %v1183
      %1373 = vst.msk [vmem:[#allocation2 + $0x10] sm:$0xf] %vm1368, %v1185
      %1374 = vst.msk [vmem:[#allocation2 + $0x14] sm:$0xf] %vm1368, %v1187
      %1375 = vst.msk [vmem:[#allocation2 + $0x18] sm:$0xf] %vm1368, %v1189
      %1376 = vst.msk [vmem:[#allocation2 + $0x1c] sm:$0xf] %vm1368, %v1191
      %1377 = vst.msk [vmem:[#allocation2 + $0x20] sm:$0xf] %vm1368, %v1193
      %1378 = vst.msk [vmem:[#allocation2 + $0x24] sm:$0xf] %vm1368, %v1195
      %1379 = vst.msk [vmem:[#allocation2 + $0x28] sm:$0xf] %vm1368, %v1197
      %1380 = vst.msk [vmem:[#allocation2 + $0x2c] sm:$0xf] %vm1368, %v1199
      %1381 = vst.msk [vmem:[#allocation2 + $0x30] sm:$0xf] %vm1368, %v1201
      %1382 = vst.msk [vmem:[#allocation2 + $0x34] sm:$0xf] %vm1368, %v1203
      %1383 = vst.msk [vmem:[#allocation2 + $0x38] sm:$0xf] %vm1368, %v1205
      %1384 = vst.msk [vmem:[#allocation2 + $0x3c] sm:$0xf] %vm1368, %v1207
      %1385 = vst.msk [vmem:[#allocation2 + $0x40] sm:$0xf] %vm1368, %v1209
      %1386 = vst.msk [vmem:[#allocation2 + $0x44] sm:$0xf] %vm1368, %v1211
      %1387 = vst.msk [vmem:[#allocation2 + $0x48] sm:$0xf] %vm1368, %v1213
      %1388 = vst.msk [vmem:[#allocation2 + $0x4c] sm:$0xf] %vm1368, %v1215
      %1389 = vst.msk [vmem:[#allocation2 + $0x50] sm:$0xf] %vm1368, %v1217
      %1390 = vst.msk [vmem:[#allocation2 + $0x54] sm:$0xf] %vm1368, %v1219
      %1391 = vst.msk [vmem:[#allocation2 + $0x58] sm:$0xf] %vm1368, %v1221
      %1392 = vst.msk [vmem:[#allocation2 + $0x5c] sm:$0xf] %vm1368, %v1223
      %1393 = vst.msk [vmem:[#allocation2 + $0x60] sm:$0xf] %vm1368, %v1225
      %1394 = vst.msk [vmem:[#allocation2 + $0x64] sm:$0xf] %vm1368, %v1227
      %1395 = vst.msk [vmem:[#allocation2 + $0x68] sm:$0xf] %vm1368, %v1229
      %1396 = vst.msk [vmem:[#allocation2 + $0x6c] sm:$0xf] %vm1368, %v1231
      %1397 = vst.msk [vmem:[#allocation2 + $0x70] sm:$0xf] %vm1368, %v1233
      %1398 = vst.msk [vmem:[#allocation2 + $0x74] sm:$0xf] %vm1368, %v1235
      %1399 = vst.msk [vmem:[#allocation2 + $0x78] sm:$0xf] %vm1368, %v1237
      %1400 = vst.msk [vmem:[#allocation2 + $0x7c] sm:$0xf] %vm1368, %v1239
      %1401 = vst.msk [vmem:[#allocation2 + $0x80] sm:$0xf] %vm1368, %v1241
      %1402 = vst.msk [vmem:[#allocation2 + $0x84] sm:$0xf] %vm1368, %v1243
      %1403 = vst.msk [vmem:[#allocation2 + $0x88] sm:$0xf] %vm1368, %v1245
      %1404 = vst.msk [vmem:[#allocation2 + $0x8c] sm:$0xf] %vm1368, %v1247
      %1405 = vst.msk [vmem:[#allocation2 + $0x90] sm:$0xf] %vm1368, %v1249
      %1406 = vst.msk [vmem:[#allocation2 + $0x94] sm:$0xf] %vm1368, %v1251
      %1407 = vst.msk [vmem:[#allocation2 + $0x98] sm:$0xf] %vm1368, %v1253
      %1408 = vst.msk [vmem:[#allocation2 + $0x9c] sm:$0xf] %vm1368, %v1255
      %1409 = vst.msk [vmem:[#allocation2 + $0xa0] sm:$0xf] %vm1368, %v1257
      %1410 = vst.msk [vmem:[#allocation2 + $0xa4] sm:$0xf] %vm1368, %v1259
      %1411 = vst.msk [vmem:[#allocation2 + $0xa8] sm:$0xf] %vm1368, %v1261
      %1412 = vst.msk [vmem:[#allocation2 + $0xac] sm:$0xf] %vm1368, %v1263
      %1413 = vst.msk [vmem:[#allocation2 + $0xb0] sm:$0xf] %vm1368, %v1265
      %1414 = vst.msk [vmem:[#allocation2 + $0xb4] sm:$0xf] %vm1368, %v1267
      %1415 = vst.msk [vmem:[#allocation2 + $0xb8] sm:$0xf] %vm1368, %v1269
      %1416 = vst.msk [vmem:[#allocation2 + $0xbc] sm:$0xf] %vm1368, %v1271
      %1417 = vst.msk [vmem:[#allocation2 + $0xc0] sm:$0xf] %vm1368, %v1273
      %1418 = vst.msk [vmem:[#allocation2 + $0xc4] sm:$0xf] %vm1368, %v1275
      %1419 = vst.msk [vmem:[#allocation2 + $0xc8] sm:$0xf] %vm1368, %v1277
      %1420 = vst.msk [vmem:[#allocation2 + $0xcc] sm:$0xf] %vm1368, %v1279
      %1421 = vst.msk [vmem:[#allocation2 + $0xd0] sm:$0xf] %vm1368, %v1281
      %1422 = vst.msk [vmem:[#allocation2 + $0xd4] sm:$0xf] %vm1368, %v1283
      %1423 = vst.msk [vmem:[#allocation2 + $0xd8] sm:$0xf] %vm1368, %v1285
      %1424 = vst.msk [vmem:[#allocation2 + $0xdc] sm:$0xf] %vm1368, %v1287
      %1425 = vst.msk [vmem:[#allocation2 + $0xe0] sm:$0xf] %vm1368, %v1289
      %1426 = vst.msk [vmem:[#allocation2 + $0xe4] sm:$0xf] %vm1368, %v1291
      %1427 = vst.msk [vmem:[#allocation2 + $0xe8] sm:$0xf] %vm1368, %v1293
      %1428 = vst.msk [vmem:[#allocation2 + $0xec] sm:$0xf] %vm1368, %v1295
      %1429 = vst.msk [vmem:[#allocation2 + $0xf0] sm:$0xf] %vm1368, %v1297
      %1430 = vst.msk [vmem:[#allocation2 + $0xf4] sm:$0xf] %vm1368, %v1299
      %1431 = vst.msk [vmem:[#allocation2 + $0xf8] sm:$0xf] %vm1368, %v1301
      %1432 = vst.msk [vmem:[#allocation2 + $0xfc] sm:$0xf] %vm1368, %v1303
      %v1433 = vld [vmem:[%s170] sm:$0xe]
      %v1434 = vld [vmem:[%s170 + $0x4] sm:$0xf]
      %v1435 = vld [vmem:[%s170 + $0x8] sm:$0x1]
      %v1436 = vld [vmem:[%s170 + $0xc] sm:$0xe]
      %v1437 = vld [vmem:[%s170 + $0x10] sm:$0xf]
      %v1438 = vld [vmem:[%s170 + $0x14] sm:$0x1]
      %v1439 = vld [vmem:[%s170 + $0x18] sm:$0xe]
      %v1440 = vld [vmem:[%s170 + $0x1c] sm:$0xf]
      %v1441 = vld [vmem:[%s170 + $0x20] sm:$0x1]
      %v1442 = vld [vmem:[%s170 + $0x24] sm:$0xe]
      %v1443 = vld [vmem:[%s170 + $0x28] sm:$0xf]
      %v1444 = vld [vmem:[%s170 + $0x2c] sm:$0x1]
      %v1445 = vld [vmem:[%s170 + $0x30] sm:$0xe]
      %v1446 = vld [vmem:[%s170 + $0x34] sm:$0xf]
      %v1447 = vld [vmem:[%s170 + $0x38] sm:$0x1]
      %v1448 = vld [vmem:[%s170 + $0x3c] sm:$0xe]
      %v1449 = vld [vmem:[%s170 + $0x40] sm:$0xf]
      %v1450 = vld [vmem:[%s170 + $0x44] sm:$0x1]
      %v1451 = vld [vmem:[%s170 + $0x48] sm:$0xe]
      %v1452 = vld [vmem:[%s170 + $0x4c] sm:$0xf]
      %v1453 = vld [vmem:[%s170 + $0x50] sm:$0x1]
      %v1454 = vld [vmem:[%s170 + $0x54] sm:$0xe]
      %v1455 = vld [vmem:[%s170 + $0x58] sm:$0xf]
      %v1456 = vld [vmem:[%s170 + $0x5c] sm:$0x1]
      %v1457 = vld [vmem:[%s170 + $0x60] sm:$0xe]
      %v1458 = vld [vmem:[%s170 + $0x64] sm:$0xf]
      %v1459 = vld [vmem:[%s170 + $0x68] sm:$0x1]
      %v1460 = vld [vmem:[%s170 + $0x6c] sm:$0xe]
      %v1461 = vld [vmem:[%s170 + $0x70] sm:$0xf]
      %v1462 = vld [vmem:[%s170 + $0x74] sm:$0x1]
      %v1463 = vld [vmem:[%s170 + $0x78] sm:$0xe]
      %v1464 = vld [vmem:[%s170 + $0x7c] sm:$0xf]
      %v1465 = vld [vmem:[%s170 + $0x80] sm:$0x1]
      %v1466 = vld [vmem:[%s170 + $0x84] sm:$0xe]
      %v1467 = vld [vmem:[%s170 + $0x88] sm:$0xf]
      %v1468 = vld [vmem:[%s170 + $0x8c] sm:$0x1]
      %v1469 = vld [vmem:[%s170 + $0x90] sm:$0xe]
      %v1470 = vld [vmem:[%s170 + $0x94] sm:$0xf]
      %v1471 = vld [vmem:[%s170 + $0x98] sm:$0x1]
      %v1472 = vld [vmem:[%s170 + $0x9c] sm:$0xe]
      %v1473 = vld [vmem:[%s170 + $0xa0] sm:$0xf]
      %v1474 = vld [vmem:[%s170 + $0xa4] sm:$0x1]
      %v1475 = vld [vmem:[%s170 + $0xa8] sm:$0xe]
      %v1476 = vld [vmem:[%s170 + $0xac] sm:$0xf]
      %v1477 = vld [vmem:[%s170 + $0xb0] sm:$0x1]
      %v1478 = vld [vmem:[%s170 + $0xb4] sm:$0xe]
      %v1479 = vld [vmem:[%s170 + $0xb8] sm:$0xf]
      %v1480 = vld [vmem:[%s170 + $0xbc] sm:$0x1]
      %v1481 = vld [vmem:[%s170 + $0xd8] sm:$0xe]
      %v1482 = vld [vmem:[%s170 + $0xdc] sm:$0xf]
      %v1483 = vld [vmem:[%s170 + $0xe0] sm:$0x1]
      %v1484 = vld [vmem:[%s170 + $0xe4] sm:$0xe]
      %v1485 = vld [vmem:[%s170 + $0xe8] sm:$0xf]
      %v1486 = vld [vmem:[%s170 + $0xec] sm:$0x1]
      %v1487 = vld [vmem:[%s170 + $0xf0] sm:$0xe]
      %v1488 = vld [vmem:[%s170 + $0xf4] sm:$0xf]
      %v1489 = vld [vmem:[%s170 + $0xf8] sm:$0x1]
      %v1490 = vld [vmem:[%s170 + $0xfc] sm:$0xe]
      %v1491 = vld [vmem:[%s170 + $0x100] sm:$0xf]
      %v1492 = vld [vmem:[%s170 + $0x104] sm:$0x1]
      %v1493 = vld [vmem:[%s170 + $0x108] sm:$0xe]
      %v1494 = vld [vmem:[%s170 + $0x10c] sm:$0xf]
      %v1495 = vld [vmem:[%s170 + $0x110] sm:$0x1]
      %v1496 = vld [vmem:[%s170 + $0x114] sm:$0xe]
      %v1497 = vld [vmem:[%s170 + $0x118] sm:$0xf]
      %v1498 = vld [vmem:[%s170 + $0x11c] sm:$0x1]
      %v1499 = vld [vmem:[%s170 + $0x120] sm:$0xe]
      %v1500 = vld [vmem:[%s170 + $0x124] sm:$0xf]
      %v1501 = vld [vmem:[%s170 + $0x128] sm:$0x1]
      %v1502 = vld [vmem:[%s170 + $0x12c] sm:$0xe]
      %v1503 = vld [vmem:[%s170 + $0x130] sm:$0xf]
      %v1504 = vld [vmem:[%s170 + $0x134] sm:$0x1]
      %v1505 = vld [vmem:[%s170 + $0x138] sm:$0xe]
      %v1506 = vld [vmem:[%s170 + $0x13c] sm:$0xf]
      %v1507 = vld [vmem:[%s170 + $0x140] sm:$0x1]
      %v1508 = vld [vmem:[%s170 + $0x144] sm:$0xe]
      %v1509 = vld [vmem:[%s170 + $0x148] sm:$0xf]
      %v1510 = vld [vmem:[%s170 + $0x14c] sm:$0x1]
      %v1511 = vld [vmem:[%s170 + $0x150] sm:$0xe]
      %v1512 = vld [vmem:[%s170 + $0x154] sm:$0xf]
      %v1513 = vld [vmem:[%s170 + $0x158] sm:$0x1]
      %v1514 = vld [vmem:[%s170 + $0x15c] sm:$0xe]
      %v1515 = vld [vmem:[%s170 + $0x160] sm:$0xf]
      %v1516 = vld [vmem:[%s170 + $0x164] sm:$0x1]
      %v1517 = vld [vmem:[%s170 + $0x168] sm:$0xe]
      %v1518 = vld [vmem:[%s170 + $0x16c] sm:$0xf]
      %v1519 = vld [vmem:[%s170 + $0x170] sm:$0x1]
      %v1520 = vld [vmem:[%s170 + $0x174] sm:$0xe]
      %v1521 = vld [vmem:[%s170 + $0x178] sm:$0xf]
      %v1522 = vld [vmem:[%s170 + $0x17c] sm:$0x1]
      %v1523 = vld [vmem:[%s170 + $0x180] sm:$0xe]
      %v1524 = vld [vmem:[%s170 + $0x184] sm:$0xf]
      %v1525 = vld [vmem:[%s170 + $0x188] sm:$0x1]
      %v1526 = vld [vmem:[%s170 + $0x18c] sm:$0xe]
      %v1527 = vld [vmem:[%s170 + $0x190] sm:$0xf]
      %v1528 = vld [vmem:[%s170 + $0x194] sm:$0x1]
      %vm1625 = vcmask 1042432
      %vm1626 = vcmask 1046532
      %vm1627 = vmor %vm1625, %vm1626
      %v1628 = vrot.slane %v1433, 5
      %v1629 = vrot.slane %v1628, 4
      %v1630 = vrot.slane %v1434, 5
      %v1631 = vsel %vm1627, %v1629, %v1630
      %v1632 = vrot.slane %v1630, 4
      %v1633 = vrot.slane %v1435, 5
      %v1634 = vsel %vm1627, %v1632, %v1633
      %v1635 = vrot.slane %v1436, 5
      %v1636 = vrot.slane %v1635, 4
      %v1637 = vrot.slane %v1437, 5
      %v1638 = vsel %vm1627, %v1636, %v1637
      %v1639 = vrot.slane %v1637, 4
      %v1640 = vrot.slane %v1438, 5
      %v1641 = vsel %vm1627, %v1639, %v1640
      %v1642 = vrot.slane %v1439, 5
      %v1643 = vrot.slane %v1642, 4
      %v1644 = vrot.slane %v1440, 5
      %v1645 = vsel %vm1627, %v1643, %v1644
      %v1646 = vrot.slane %v1644, 4
      %v1647 = vrot.slane %v1441, 5
      %v1648 = vsel %vm1627, %v1646, %v1647
      %v1649 = vrot.slane %v1442, 5
      %v1650 = vrot.slane %v1649, 4
      %v1651 = vrot.slane %v1443, 5
      %v1652 = vsel %vm1627, %v1650, %v1651
      %v1653 = vrot.slane %v1651, 4
      %v1654 = vrot.slane %v1444, 5
      %v1655 = vsel %vm1627, %v1653, %v1654
      %v1656 = vrot.slane %v1445, 5
      %v1657 = vrot.slane %v1656, 4
      %v1658 = vrot.slane %v1446, 5
      %v1659 = vsel %vm1627, %v1657, %v1658
      %v1660 = vrot.slane %v1658, 4
      %v1661 = vrot.slane %v1447, 5
      %v1662 = vsel %vm1627, %v1660, %v1661
      %v1663 = vrot.slane %v1448, 5
      %v1664 = vrot.slane %v1663, 4
      %v1665 = vrot.slane %v1449, 5
      %v1666 = vsel %vm1627, %v1664, %v1665
      %v1667 = vrot.slane %v1665, 4
      %v1668 = vrot.slane %v1450, 5
      %v1669 = vsel %vm1627, %v1667, %v1668
      %v1670 = vrot.slane %v1451, 5
      %v1671 = vrot.slane %v1670, 4
      %v1672 = vrot.slane %v1452, 5
      %v1673 = vsel %vm1627, %v1671, %v1672
      %v1674 = vrot.slane %v1672, 4
      %v1675 = vrot.slane %v1453, 5
      %v1676 = vsel %vm1627, %v1674, %v1675
      %v1677 = vrot.slane %v1454, 5
      %v1678 = vrot.slane %v1677, 4
      %v1679 = vrot.slane %v1455, 5
      %v1680 = vsel %vm1627, %v1678, %v1679
      %v1681 = vrot.slane %v1679, 4
      %v1682 = vrot.slane %v1456, 5
      %v1683 = vsel %vm1627, %v1681, %v1682
      %v1684 = vrot.slane %v1457, 5
      %v1685 = vrot.slane %v1684, 4
      %v1686 = vrot.slane %v1458, 5
      %v1687 = vsel %vm1627, %v1685, %v1686
      %v1688 = vrot.slane %v1686, 4
      %v1689 = vrot.slane %v1459, 5
      %v1690 = vsel %vm1627, %v1688, %v1689
      %v1691 = vrot.slane %v1460, 5
      %v1692 = vrot.slane %v1691, 4
      %v1693 = vrot.slane %v1461, 5
      %v1694 = vsel %vm1627, %v1692, %v1693
      %v1695 = vrot.slane %v1693, 4
      %v1696 = vrot.slane %v1462, 5
      %v1697 = vsel %vm1627, %v1695, %v1696
      %v1698 = vrot.slane %v1463, 5
      %v1699 = vrot.slane %v1698, 4
      %v1700 = vrot.slane %v1464, 5
      %v1701 = vsel %vm1627, %v1699, %v1700
      %v1702 = vrot.slane %v1700, 4
      %v1703 = vrot.slane %v1465, 5
      %v1704 = vsel %vm1627, %v1702, %v1703
      %v1705 = vrot.slane %v1466, 5
      %v1706 = vrot.slane %v1705, 4
      %v1707 = vrot.slane %v1467, 5
      %v1708 = vsel %vm1627, %v1706, %v1707
      %v1709 = vrot.slane %v1707, 4
      %v1710 = vrot.slane %v1468, 5
      %v1711 = vsel %vm1627, %v1709, %v1710
      %v1712 = vrot.slane %v1469, 5
      %v1713 = vrot.slane %v1712, 4
      %v1714 = vrot.slane %v1470, 5
      %v1715 = vsel %vm1627, %v1713, %v1714
      %v1716 = vrot.slane %v1714, 4
      %v1717 = vrot.slane %v1471, 5
      %v1718 = vsel %vm1627, %v1716, %v1717
      %v1719 = vrot.slane %v1472, 5
      %v1720 = vrot.slane %v1719, 4
      %v1721 = vrot.slane %v1473, 5
      %v1722 = vsel %vm1627, %v1720, %v1721
      %v1723 = vrot.slane %v1721, 4
      %v1724 = vrot.slane %v1474, 5
      %v1725 = vsel %vm1627, %v1723, %v1724
      %v1726 = vrot.slane %v1475, 5
      %v1727 = vrot.slane %v1726, 4
      %v1728 = vrot.slane %v1476, 5
      %v1729 = vsel %vm1627, %v1727, %v1728
      %v1730 = vrot.slane %v1728, 4
      %v1731 = vrot.slane %v1477, 5
      %v1732 = vsel %vm1627, %v1730, %v1731
      %v1733 = vrot.slane %v1478, 5
      %v1734 = vrot.slane %v1733, 4
      %v1735 = vrot.slane %v1479, 5
      %v1736 = vsel %vm1627, %v1734, %v1735
      %v1737 = vrot.slane %v1735, 4
      %v1738 = vrot.slane %v1480, 5
      %v1739 = vsel %vm1627, %v1737, %v1738
      %v1740 = vrot.slane %v1481, 5
      %v1741 = vrot.slane %v1740, 4
      %v1742 = vrot.slane %v1482, 5
      %v1743 = vsel %vm1627, %v1741, %v1742
      %v1744 = vrot.slane %v1742, 4
      %v1745 = vrot.slane %v1483, 5
      %v1746 = vsel %vm1627, %v1744, %v1745
      %v1747 = vrot.slane %v1484, 5
      %v1748 = vrot.slane %v1747, 4
      %v1749 = vrot.slane %v1485, 5
      %v1750 = vsel %vm1627, %v1748, %v1749
      %v1751 = vrot.slane %v1749, 4
      %v1752 = vrot.slane %v1486, 5
      %v1753 = vsel %vm1627, %v1751, %v1752
      %v1754 = vrot.slane %v1487, 5
      %v1755 = vrot.slane %v1754, 4
      %v1756 = vrot.slane %v1488, 5
      %v1757 = vsel %vm1627, %v1755, %v1756
      %v1758 = vrot.slane %v1756, 4
      %v1759 = vrot.slane %v1489, 5
      %v1760 = vsel %vm1627, %v1758, %v1759
      %v1761 = vrot.slane %v1490, 5
      %v1762 = vrot.slane %v1761, 4
      %v1763 = vrot.slane %v1491, 5
      %v1764 = vsel %vm1627, %v1762, %v1763
      %v1765 = vrot.slane %v1763, 4
      %v1766 = vrot.slane %v1492, 5
      %v1767 = vsel %vm1627, %v1765, %v1766
      %v1768 = vrot.slane %v1493, 5
      %v1769 = vrot.slane %v1768, 4
      %v1770 = vrot.slane %v1494, 5
      %v1771 = vsel %vm1627, %v1769, %v1770
      %v1772 = vrot.slane %v1770, 4
      %v1773 = vrot.slane %v1495, 5
      %v1774 = vsel %vm1627, %v1772, %v1773
      %v1775 = vrot.slane %v1496, 5
      %v1776 = vrot.slane %v1775, 4
      %v1777 = vrot.slane %v1497, 5
      %v1778 = vsel %vm1627, %v1776, %v1777
      %v1779 = vrot.slane %v1777, 4
      %v1780 = vrot.slane %v1498, 5
      %v1781 = vsel %vm1627, %v1779, %v1780
      %v1782 = vrot.slane %v1499, 5
      %v1783 = vrot.slane %v1782, 4
      %v1784 = vrot.slane %v1500, 5
      %v1785 = vsel %vm1627, %v1783, %v1784
      %v1786 = vrot.slane %v1784, 4
      %v1787 = vrot.slane %v1501, 5
      %v1788 = vsel %vm1627, %v1786, %v1787
      %v1789 = vrot.slane %v1502, 5
      %v1790 = vrot.slane %v1789, 4
      %v1791 = vrot.slane %v1503, 5
      %v1792 = vsel %vm1627, %v1790, %v1791
      %v1793 = vrot.slane %v1791, 4
      %v1794 = vrot.slane %v1504, 5
      %v1795 = vsel %vm1627, %v1793, %v1794
      %v1796 = vrot.slane %v1505, 5
      %v1797 = vrot.slane %v1796, 4
      %v1798 = vrot.slane %v1506, 5
      %v1799 = vsel %vm1627, %v1797, %v1798
      %v1800 = vrot.slane %v1798, 4
      %v1801 = vrot.slane %v1507, 5
      %v1802 = vsel %vm1627, %v1800, %v1801
      %v1803 = vrot.slane %v1508, 5
      %v1804 = vrot.slane %v1803, 4
      %v1805 = vrot.slane %v1509, 5
      %v1806 = vsel %vm1627, %v1804, %v1805
      %v1807 = vrot.slane %v1805, 4
      %v1808 = vrot.slane %v1510, 5
      %v1809 = vsel %vm1627, %v1807, %v1808
      %v1810 = vrot.slane %v1511, 5
      %v1811 = vrot.slane %v1810, 4
      %v1812 = vrot.slane %v1512, 5
      %v1813 = vsel %vm1627, %v1811, %v1812
      %v1814 = vrot.slane %v1812, 4
      %v1815 = vrot.slane %v1513, 5
      %v1816 = vsel %vm1627, %v1814, %v1815
      %v1817 = vrot.slane %v1514, 5
      %v1818 = vrot.slane %v1817, 4
      %v1819 = vrot.slane %v1515, 5
      %v1820 = vsel %vm1627, %v1818, %v1819
      %v1821 = vrot.slane %v1819, 4
      %v1822 = vrot.slane %v1516, 5
      %v1823 = vsel %vm1627, %v1821, %v1822
      %v1824 = vrot.slane %v1517, 5
      %v1825 = vrot.slane %v1824, 4
      %v1826 = vrot.slane %v1518, 5
      %v1827 = vsel %vm1627, %v1825, %v1826
      %v1828 = vrot.slane %v1826, 4
      %v1829 = vrot.slane %v1519, 5
      %v1830 = vsel %vm1627, %v1828, %v1829
      %v1831 = vrot.slane %v1520, 5
      %v1832 = vrot.slane %v1831, 4
      %v1833 = vrot.slane %v1521, 5
      %v1834 = vsel %vm1627, %v1832, %v1833
      %v1835 = vrot.slane %v1833, 4
      %v1836 = vrot.slane %v1522, 5
      %v1837 = vsel %vm1627, %v1835, %v1836
      %v1838 = vrot.slane %v1523, 5
      %v1839 = vrot.slane %v1838, 4
      %v1840 = vrot.slane %v1524, 5
      %v1841 = vsel %vm1627, %v1839, %v1840
      %v1842 = vrot.slane %v1840, 4
      %v1843 = vrot.slane %v1525, 5
      %v1844 = vsel %vm1627, %v1842, %v1843
      %v1845 = vrot.slane %v1526, 5
      %v1846 = vrot.slane %v1845, 4
      %v1847 = vrot.slane %v1527, 5
      %v1848 = vsel %vm1627, %v1846, %v1847
      %v1849 = vrot.slane %v1847, 4
      %v1850 = vrot.slane %v1528, 5
      %v1851 = vsel %vm1627, %v1849, %v1850
      %1852 = vrot.lane.b32.xlu0 %v1631, 8
      %v1853 = vpop.permute.xlu0 %1852
      %1854 = vrot.lane.b32.xlu0 %v1634, 8
      %v1855 = vpop.permute.xlu0 %1854
      %1856 = vrot.lane.b32.xlu0 %v1638, 8
      %v1857 = vpop.permute.xlu0 %1856
      %1858 = vrot.lane.b32.xlu0 %v1641, 8
      %v1859 = vpop.permute.xlu0 %1858
      %1860 = vrot.lane.b32.xlu0 %v1645, 8
      %v1861 = vpop.permute.xlu0 %1860
      %1862 = vrot.lane.b32.xlu0 %v1648, 8
      %v1863 = vpop.permute.xlu0 %1862
      %1864 = vrot.lane.b32.xlu0 %v1652, 8
      %v1865 = vpop.permute.xlu0 %1864
      %1866 = vrot.lane.b32.xlu0 %v1655, 8
      %v1867 = vpop.permute.xlu0 %1866
      %1868 = vrot.lane.b32.xlu0 %v1659, 8
      %v1869 = vpop.permute.xlu0 %1868
      %1870 = vrot.lane.b32.xlu0 %v1662, 8
      %v1871 = vpop.permute.xlu0 %1870
      %1872 = vrot.lane.b32.xlu0 %v1666, 8
      %v1873 = vpop.permute.xlu0 %1872
      %1874 = vrot.lane.b32.xlu0 %v1669, 8
      %v1875 = vpop.permute.xlu0 %1874
      %1876 = vrot.lane.b32.xlu0 %v1673, 8
      %v1877 = vpop.permute.xlu0 %1876
      %1878 = vrot.lane.b32.xlu0 %v1676, 8
      %v1879 = vpop.permute.xlu0 %1878
      %1880 = vrot.lane.b32.xlu0 %v1680, 8
      %v1881 = vpop.permute.xlu0 %1880
      %1882 = vrot.lane.b32.xlu0 %v1683, 8
      %v1883 = vpop.permute.xlu0 %1882
      %1884 = vrot.lane.b32.xlu0 %v1687, 8
      %v1885 = vpop.permute.xlu0 %1884
      %1886 = vrot.lane.b32.xlu0 %v1690, 8
      %v1887 = vpop.permute.xlu0 %1886
      %1888 = vrot.lane.b32.xlu0 %v1694, 8
      %v1889 = vpop.permute.xlu0 %1888
      %1890 = vrot.lane.b32.xlu0 %v1697, 8
      %v1891 = vpop.permute.xlu0 %1890
      %1892 = vrot.lane.b32.xlu0 %v1701, 8
      %v1893 = vpop.permute.xlu0 %1892
      %1894 = vrot.lane.b32.xlu0 %v1704, 8
      %v1895 = vpop.permute.xlu0 %1894
      %1896 = vrot.lane.b32.xlu0 %v1708, 8
      %v1897 = vpop.permute.xlu0 %1896
      %1898 = vrot.lane.b32.xlu0 %v1711, 8
      %v1899 = vpop.permute.xlu0 %1898
      %1900 = vrot.lane.b32.xlu0 %v1715, 8
      %v1901 = vpop.permute.xlu0 %1900
      %1902 = vrot.lane.b32.xlu0 %v1718, 8
      %v1903 = vpop.permute.xlu0 %1902
      %1904 = vrot.lane.b32.xlu0 %v1722, 8
      %v1905 = vpop.permute.xlu0 %1904
      %1906 = vrot.lane.b32.xlu0 %v1725, 8
      %v1907 = vpop.permute.xlu0 %1906
      %1908 = vrot.lane.b32.xlu0 %v1729, 8
      %v1909 = vpop.permute.xlu0 %1908
      %1910 = vrot.lane.b32.xlu0 %v1732, 8
      %v1911 = vpop.permute.xlu0 %1910
      %1912 = vrot.lane.b32.xlu0 %v1736, 8
      %v1913 = vpop.permute.xlu0 %1912
      %1914 = vrot.lane.b32.xlu0 %v1739, 8
      %v1915 = vpop.permute.xlu0 %1914
      %1916 = vrot.lane.b32.xlu0 %v1743, 8
      %v1917 = vpop.permute.xlu0 %1916
      %1918 = vrot.lane.b32.xlu0 %v1746, 8
      %v1919 = vpop.permute.xlu0 %1918
      %1920 = vrot.lane.b32.xlu0 %v1750, 8
      %v1921 = vpop.permute.xlu0 %1920
      %1922 = vrot.lane.b32.xlu0 %v1753, 8
      %v1923 = vpop.permute.xlu0 %1922
      %1924 = vrot.lane.b32.xlu0 %v1757, 8
      %v1925 = vpop.permute.xlu0 %1924
      %1926 = vrot.lane.b32.xlu0 %v1760, 8
      %v1927 = vpop.permute.xlu0 %1926
      %1928 = vrot.lane.b32.xlu0 %v1764, 8
      %v1929 = vpop.permute.xlu0 %1928
      %1930 = vrot.lane.b32.xlu0 %v1767, 8
      %v1931 = vpop.permute.xlu0 %1930
      %1932 = vrot.lane.b32.xlu0 %v1771, 8
      %v1933 = vpop.permute.xlu0 %1932
      %1934 = vrot.lane.b32.xlu0 %v1774, 8
      %v1935 = vpop.permute.xlu0 %1934
      %1936 = vrot.lane.b32.xlu0 %v1778, 8
      %v1937 = vpop.permute.xlu0 %1936
      %1938 = vrot.lane.b32.xlu0 %v1781, 8
      %v1939 = vpop.permute.xlu0 %1938
      %1940 = vrot.lane.b32.xlu0 %v1785, 8
      %v1941 = vpop.permute.xlu0 %1940
      %1942 = vrot.lane.b32.xlu0 %v1788, 8
      %v1943 = vpop.permute.xlu0 %1942
      %1944 = vrot.lane.b32.xlu0 %v1792, 8
      %v1945 = vpop.permute.xlu0 %1944
      %1946 = vrot.lane.b32.xlu0 %v1795, 8
      %v1947 = vpop.permute.xlu0 %1946
      %1948 = vrot.lane.b32.xlu0 %v1799, 8
      %v1949 = vpop.permute.xlu0 %1948
      %1950 = vrot.lane.b32.xlu0 %v1802, 8
      %v1951 = vpop.permute.xlu0 %1950
      %1952 = vrot.lane.b32.xlu0 %v1806, 8
      %v1953 = vpop.permute.xlu0 %1952
      %1954 = vrot.lane.b32.xlu0 %v1809, 8
      %v1955 = vpop.permute.xlu0 %1954
      %1956 = vrot.lane.b32.xlu0 %v1813, 8
      %v1957 = vpop.permute.xlu0 %1956
      %1958 = vrot.lane.b32.xlu0 %v1816, 8
      %v1959 = vpop.permute.xlu0 %1958
      %1960 = vrot.lane.b32.xlu0 %v1820, 8
      %v1961 = vpop.permute.xlu0 %1960
      %1962 = vrot.lane.b32.xlu0 %v1823, 8
      %v1963 = vpop.permute.xlu0 %1962
      %1964 = vrot.lane.b32.xlu0 %v1827, 8
      %v1965 = vpop.permute.xlu0 %1964
      %1966 = vrot.lane.b32.xlu0 %v1830, 8
      %v1967 = vpop.permute.xlu0 %1966
      %1968 = vrot.lane.b32.xlu0 %v1834, 8
      %v1969 = vpop.permute.xlu0 %1968
      %1970 = vrot.lane.b32.xlu0 %v1837, 8
      %v1971 = vpop.permute.xlu0 %1970
      %1972 = vrot.lane.b32.xlu0 %v1841, 8
      %v1973 = vpop.permute.xlu0 %1972
      %1974 = vrot.lane.b32.xlu0 %v1844, 8
      %v1975 = vpop.permute.xlu0 %1974
      %1976 = vrot.lane.b32.xlu0 %v1848, 8
      %v1977 = vpop.permute.xlu0 %1976
      %1978 = vrot.lane.b32.xlu0 %v1851, 8
      %v1979 = vpop.permute.xlu0 %1978
      %vm2044 = vcmask 93248
      %2045 = vst.msk [vmem:[#allocation2] sm:$0xf] %vm2044, %v1853
      %2046 = vst.msk [vmem:[#allocation2 + $0x4] sm:$0xf] %vm2044, %v1855
      %2047 = vst.msk [vmem:[#allocation2 + $0x8] sm:$0xf] %vm2044, %v1857
      %2048 = vst.msk [vmem:[#allocation2 + $0xc] sm:$0xf] %vm2044, %v1859
      %2049 = vst.msk [vmem:[#allocation2 + $0x10] sm:$0xf] %vm2044, %v1861
      %2050 = vst.msk [vmem:[#allocation2 + $0x14] sm:$0xf] %vm2044, %v1863
      %2051 = vst.msk [vmem:[#allocation2 + $0x18] sm:$0xf] %vm2044, %v1865
      %2052 = vst.msk [vmem:[#allocation2 + $0x1c] sm:$0xf] %vm2044, %v1867
      %2053 = vst.msk [vmem:[#allocation2 + $0x20] sm:$0xf] %vm2044, %v1869
      %2054 = vst.msk [vmem:[#allocation2 + $0x24] sm:$0xf] %vm2044, %v1871
      %2055 = vst.msk [vmem:[#allocation2 + $0x28] sm:$0xf] %vm2044, %v1873
      %2056 = vst.msk [vmem:[#allocation2 + $0x2c] sm:$0xf] %vm2044, %v1875
      %2057 = vst.msk [vmem:[#allocation2 + $0x30] sm:$0xf] %vm2044, %v1877
      %2058 = vst.msk [vmem:[#allocation2 + $0x34] sm:$0xf] %vm2044, %v1879
      %2059 = vst.msk [vmem:[#allocation2 + $0x38] sm:$0xf] %vm2044, %v1881
      %2060 = vst.msk [vmem:[#allocation2 + $0x3c] sm:$0xf] %vm2044, %v1883
      %2061 = vst.msk [vmem:[#allocation2 + $0x40] sm:$0xf] %vm2044, %v1885
      %2062 = vst.msk [vmem:[#allocation2 + $0x44] sm:$0xf] %vm2044, %v1887
      %2063 = vst.msk [vmem:[#allocation2 + $0x48] sm:$0xf] %vm2044, %v1889
      %2064 = vst.msk [vmem:[#allocation2 + $0x4c] sm:$0xf] %vm2044, %v1891
      %2065 = vst.msk [vmem:[#allocation2 + $0x50] sm:$0xf] %vm2044, %v1893
      %2066 = vst.msk [vmem:[#allocation2 + $0x54] sm:$0xf] %vm2044, %v1895
      %2067 = vst.msk [vmem:[#allocation2 + $0x58] sm:$0xf] %vm2044, %v1897
      %2068 = vst.msk [vmem:[#allocation2 + $0x5c] sm:$0xf] %vm2044, %v1899
      %2069 = vst.msk [vmem:[#allocation2 + $0x60] sm:$0xf] %vm2044, %v1901
      %2070 = vst.msk [vmem:[#allocation2 + $0x64] sm:$0xf] %vm2044, %v1903
      %2071 = vst.msk [vmem:[#allocation2 + $0x68] sm:$0xf] %vm2044, %v1905
      %2072 = vst.msk [vmem:[#allocation2 + $0x6c] sm:$0xf] %vm2044, %v1907
      %2073 = vst.msk [vmem:[#allocation2 + $0x70] sm:$0xf] %vm2044, %v1909
      %2074 = vst.msk [vmem:[#allocation2 + $0x74] sm:$0xf] %vm2044, %v1911
      %2075 = vst.msk [vmem:[#allocation2 + $0x78] sm:$0xf] %vm2044, %v1913
      %2076 = vst.msk [vmem:[#allocation2 + $0x7c] sm:$0xf] %vm2044, %v1915
      %2077 = vst.msk [vmem:[#allocation2 + $0x80] sm:$0xf] %vm2044, %v1917
      %2078 = vst.msk [vmem:[#allocation2 + $0x84] sm:$0xf] %vm2044, %v1919
      %2079 = vst.msk [vmem:[#allocation2 + $0x88] sm:$0xf] %vm2044, %v1921
      %2080 = vst.msk [vmem:[#allocation2 + $0x8c] sm:$0xf] %vm2044, %v1923
      %2081 = vst.msk [vmem:[#allocation2 + $0x90] sm:$0xf] %vm2044, %v1925
      %2082 = vst.msk [vmem:[#allocation2 + $0x94] sm:$0xf] %vm2044, %v1927
      %2083 = vst.msk [vmem:[#allocation2 + $0x98] sm:$0xf] %vm2044, %v1929
      %2084 = vst.msk [vmem:[#allocation2 + $0x9c] sm:$0xf] %vm2044, %v1931
      %2085 = vst.msk [vmem:[#allocation2 + $0xa0] sm:$0xf] %vm2044, %v1933
      %2086 = vst.msk [vmem:[#allocation2 + $0xa4] sm:$0xf] %vm2044, %v1935
      %2087 = vst.msk [vmem:[#allocation2 + $0xa8] sm:$0xf] %vm2044, %v1937
      %2088 = vst.msk [vmem:[#allocation2 + $0xac] sm:$0xf] %vm2044, %v1939
      %2089 = vst.msk [vmem:[#allocation2 + $0xb0] sm:$0xf] %vm2044, %v1941
      %2090 = vst.msk [vmem:[#allocation2 + $0xb4] sm:$0xf] %vm2044, %v1943
      %2091 = vst.msk [vmem:[#allocation2 + $0xb8] sm:$0xf] %vm2044, %v1945
      %2092 = vst.msk [vmem:[#allocation2 + $0xbc] sm:$0xf] %vm2044, %v1947
      %2093 = vst.msk [vmem:[#allocation2 + $0xc0] sm:$0xf] %vm2044, %v1949
      %2094 = vst.msk [vmem:[#allocation2 + $0xc4] sm:$0xf] %vm2044, %v1951
      %2095 = vst.msk [vmem:[#allocation2 + $0xc8] sm:$0xf] %vm2044, %v1953
      %2096 = vst.msk [vmem:[#allocation2 + $0xcc] sm:$0xf] %vm2044, %v1955
      %2097 = vst.msk [vmem:[#allocation2 + $0xd0] sm:$0xf] %vm2044, %v1957
      %2098 = vst.msk [vmem:[#allocation2 + $0xd4] sm:$0xf] %vm2044, %v1959
      %2099 = vst.msk [vmem:[#allocation2 + $0xd8] sm:$0xf] %vm2044, %v1961
      %2100 = vst.msk [vmem:[#allocation2 + $0xdc] sm:$0xf] %vm2044, %v1963
      %2101 = vst.msk [vmem:[#allocation2 + $0xe0] sm:$0xf] %vm2044, %v1965
      %2102 = vst.msk [vmem:[#allocation2 + $0xe4] sm:$0xf] %vm2044, %v1967
      %2103 = vst.msk [vmem:[#allocation2 + $0xe8] sm:$0xf] %vm2044, %v1969
      %2104 = vst.msk [vmem:[#allocation2 + $0xec] sm:$0xf] %vm2044, %v1971
      %2105 = vst.msk [vmem:[#allocation2 + $0xf0] sm:$0xf] %vm2044, %v1973
      %2106 = vst.msk [vmem:[#allocation2 + $0xf4] sm:$0xf] %vm2044, %v1975
      %2107 = vst.msk [vmem:[#allocation2 + $0xf8] sm:$0xf] %vm2044, %v1977
      %2108 = vst.msk [vmem:[#allocation2 + $0xfc] sm:$0xf] %vm2044, %v1979
      %s2109 = scalar_lea.vmem %s170, 12
      %v2110 = vld [vmem:[%s2109] sm:$0xf]
      %v2111 = vld [vmem:[%s2109 + $0x4] sm:$0xf]
      %v2112 = vld [vmem:[%s2109 + $0xc] sm:$0xf]
      %v2113 = vld [vmem:[%s2109 + $0x10] sm:$0xf]
      %v2114 = vld [vmem:[%s2109 + $0x18] sm:$0xf]
      %v2115 = vld [vmem:[%s2109 + $0x1c] sm:$0xf]
      %v2116 = vld [vmem:[%s2109 + $0x24] sm:$0xf]
      %v2117 = vld [vmem:[%s2109 + $0x28] sm:$0xf]
      %v2118 = vld [vmem:[%s2109 + $0x30] sm:$0xf]
      %v2119 = vld [vmem:[%s2109 + $0x34] sm:$0xf]
      %v2120 = vld [vmem:[%s2109 + $0x3c] sm:$0xf]
      %v2121 = vld [vmem:[%s2109 + $0x40] sm:$0xf]
      %v2122 = vld [vmem:[%s2109 + $0x48] sm:$0xf]
      %v2123 = vld [vmem:[%s2109 + $0x4c] sm:$0xf]
      %v2124 = vld [vmem:[%s2109 + $0x54] sm:$0xf]
      %v2125 = vld [vmem:[%s2109 + $0x58] sm:$0xf]
      %v2126 = vld [vmem:[%s2109 + $0x60] sm:$0xf]
      %v2127 = vld [vmem:[%s2109 + $0x64] sm:$0xf]
      %v2128 = vld [vmem:[%s2109 + $0x6c] sm:$0xf]
      %v2129 = vld [vmem:[%s2109 + $0x70] sm:$0xf]
      %v2130 = vld [vmem:[%s2109 + $0x78] sm:$0xf]
      %v2131 = vld [vmem:[%s2109 + $0x7c] sm:$0xf]
      %v2132 = vld [vmem:[%s2109 + $0x84] sm:$0xf]
      %v2133 = vld [vmem:[%s2109 + $0x88] sm:$0xf]
      %v2134 = vld [vmem:[%s2109 + $0x90] sm:$0xf]
      %v2135 = vld [vmem:[%s2109 + $0x94] sm:$0xf]
      %v2136 = vld [vmem:[%s2109 + $0x9c] sm:$0xf]
      %v2137 = vld [vmem:[%s2109 + $0xa0] sm:$0xf]
      %v2138 = vld [vmem:[%s2109 + $0xa8] sm:$0xf]
      %v2139 = vld [vmem:[%s2109 + $0xac] sm:$0xf]
      %v2140 = vld [vmem:[%s2109 + $0xb4] sm:$0xf]
      %v2141 = vld [vmem:[%s2109 + $0xb8] sm:$0xf]
      %v2142 = vld [vmem:[%s2109 + $0xd8] sm:$0xf]
      %v2143 = vld [vmem:[%s2109 + $0xdc] sm:$0xf]
      %v2144 = vld [vmem:[%s2109 + $0xe4] sm:$0xf]
      %v2145 = vld [vmem:[%s2109 + $0xe8] sm:$0xf]
      %v2146 = vld [vmem:[%s2109 + $0xf0] sm:$0xf]
      %v2147 = vld [vmem:[%s2109 + $0xf4] sm:$0xf]
      %v2148 = vld [vmem:[%s2109 + $0xfc] sm:$0xf]
      %v2149 = vld [vmem:[%s2109 + $0x100] sm:$0xf]
      %v2150 = vld [vmem:[%s2109 + $0x108] sm:$0xf]
      %v2151 = vld [vmem:[%s2109 + $0x10c] sm:$0xf]
      %v2152 = vld [vmem:[%s2109 + $0x114] sm:$0xf]
      %v2153 = vld [vmem:[%s2109 + $0x118] sm:$0xf]
      %v2154 = vld [vmem:[%s2109 + $0x120] sm:$0xf]
      %v2155 = vld [vmem:[%s2109 + $0x124] sm:$0xf]
      %v2156 = vld [vmem:[%s2109 + $0x12c] sm:$0xf]
      %v2157 = vld [vmem:[%s2109 + $0x130] sm:$0xf]
      %v2158 = vld [vmem:[%s2109 + $0x138] sm:$0xf]
      %v2159 = vld [vmem:[%s2109 + $0x13c] sm:$0xf]
      %v2160 = vld [vmem:[%s2109 + $0x144] sm:$0xf]
      %v2161 = vld [vmem:[%s2109 + $0x148] sm:$0xf]
      %v2162 = vld [vmem:[%s2109 + $0x150] sm:$0xf]
      %v2163 = vld [vmem:[%s2109 + $0x154] sm:$0xf]
      %v2164 = vld [vmem:[%s2109 + $0x15c] sm:$0xf]
      %v2165 = vld [vmem:[%s2109 + $0x160] sm:$0xf]
      %v2166 = vld [vmem:[%s2109 + $0x168] sm:$0xf]
      %v2167 = vld [vmem:[%s2109 + $0x16c] sm:$0xf]
      %v2168 = vld [vmem:[%s2109 + $0x174] sm:$0xf]
      %v2169 = vld [vmem:[%s2109 + $0x178] sm:$0xf]
      %v2170 = vld [vmem:[%s2109 + $0x180] sm:$0xf]
      %v2171 = vld [vmem:[%s2109 + $0x184] sm:$0xf]
      %v2172 = vld [vmem:[%s2109 + $0x18c] sm:$0xf]
      %v2173 = vld [vmem:[%s2109 + $0x190] sm:$0xf]
      %2238 = vrot.lane.b32.xlu0 %v2110, 12
      %v2239 = vpop.permute.xlu0 %2238
      %2240 = vrot.lane.b32.xlu0 %v2111, 12
      %v2241 = vpop.permute.xlu0 %2240
      %2242 = vrot.lane.b32.xlu0 %v2112, 12
      %v2243 = vpop.permute.xlu0 %2242
      %2244 = vrot.lane.b32.xlu0 %v2113, 12
      %v2245 = vpop.permute.xlu0 %2244
      %2246 = vrot.lane.b32.xlu0 %v2114, 12
      %v2247 = vpop.permute.xlu0 %2246
      %2248 = vrot.lane.b32.xlu0 %v2115, 12
      %v2249 = vpop.permute.xlu0 %2248
      %2250 = vrot.lane.b32.xlu0 %v2116, 12
      %v2251 = vpop.permute.xlu0 %2250
      %2252 = vrot.lane.b32.xlu0 %v2117, 12
      %v2253 = vpop.permute.xlu0 %2252
      %2254 = vrot.lane.b32.xlu0 %v2118, 12
      %v2255 = vpop.permute.xlu0 %2254
      %2256 = vrot.lane.b32.xlu0 %v2119, 12
      %v2257 = vpop.permute.xlu0 %2256
      %2258 = vrot.lane.b32.xlu0 %v2120, 12
      %v2259 = vpop.permute.xlu0 %2258
      %2260 = vrot.lane.b32.xlu0 %v2121, 12
      %v2261 = vpop.permute.xlu0 %2260
      %2262 = vrot.lane.b32.xlu0 %v2122, 12
      %v2263 = vpop.permute.xlu0 %2262
      %2264 = vrot.lane.b32.xlu0 %v2123, 12
      %v2265 = vpop.permute.xlu0 %2264
      %2266 = vrot.lane.b32.xlu0 %v2124, 12
      %v2267 = vpop.permute.xlu0 %2266
      %2268 = vrot.lane.b32.xlu0 %v2125, 12
      %v2269 = vpop.permute.xlu0 %2268
      %2270 = vrot.lane.b32.xlu0 %v2126, 12
      %v2271 = vpop.permute.xlu0 %2270
      %2272 = vrot.lane.b32.xlu0 %v2127, 12
      %v2273 = vpop.permute.xlu0 %2272
      %2274 = vrot.lane.b32.xlu0 %v2128, 12
      %v2275 = vpop.permute.xlu0 %2274
      %2276 = vrot.lane.b32.xlu0 %v2129, 12
      %v2277 = vpop.permute.xlu0 %2276
      %2278 = vrot.lane.b32.xlu0 %v2130, 12
      %v2279 = vpop.permute.xlu0 %2278
      %2280 = vrot.lane.b32.xlu0 %v2131, 12
      %v2281 = vpop.permute.xlu0 %2280
      %2282 = vrot.lane.b32.xlu0 %v2132, 12
      %v2283 = vpop.permute.xlu0 %2282
      %2284 = vrot.lane.b32.xlu0 %v2133, 12
      %v2285 = vpop.permute.xlu0 %2284
      %2286 = vrot.lane.b32.xlu0 %v2134, 12
      %v2287 = vpop.permute.xlu0 %2286
      %2288 = vrot.lane.b32.xlu0 %v2135, 12
      %v2289 = vpop.permute.xlu0 %2288
      %2290 = vrot.lane.b32.xlu0 %v2136, 12
      %v2291 = vpop.permute.xlu0 %2290
      %2292 = vrot.lane.b32.xlu0 %v2137, 12
      %v2293 = vpop.permute.xlu0 %2292
      %2294 = vrot.lane.b32.xlu0 %v2138, 12
      %v2295 = vpop.permute.xlu0 %2294
      %2296 = vrot.lane.b32.xlu0 %v2139, 12
      %v2297 = vpop.permute.xlu0 %2296
      %2298 = vrot.lane.b32.xlu0 %v2140, 12
      %v2299 = vpop.permute.xlu0 %2298
      %2300 = vrot.lane.b32.xlu0 %v2141, 12
      %v2301 = vpop.permute.xlu0 %2300
      %2302 = vrot.lane.b32.xlu0 %v2142, 12
      %v2303 = vpop.permute.xlu0 %2302
      %2304 = vrot.lane.b32.xlu0 %v2143, 12
      %v2305 = vpop.permute.xlu0 %2304
      %2306 = vrot.lane.b32.xlu0 %v2144, 12
      %v2307 = vpop.permute.xlu0 %2306
      %2308 = vrot.lane.b32.xlu0 %v2145, 12
      %v2309 = vpop.permute.xlu0 %2308
      %2310 = vrot.lane.b32.xlu0 %v2146, 12
      %v2311 = vpop.permute.xlu0 %2310
      %2312 = vrot.lane.b32.xlu0 %v2147, 12
      %v2313 = vpop.permute.xlu0 %2312
      %2314 = vrot.lane.b32.xlu0 %v2148, 12
      %v2315 = vpop.permute.xlu0 %2314
      %2316 = vrot.lane.b32.xlu0 %v2149, 12
      %v2317 = vpop.permute.xlu0 %2316
      %2318 = vrot.lane.b32.xlu0 %v2150, 12
      %v2319 = vpop.permute.xlu0 %2318
      %2320 = vrot.lane.b32.xlu0 %v2151, 12
      %v2321 = vpop.permute.xlu0 %2320
      %2322 = vrot.lane.b32.xlu0 %v2152, 12
      %v2323 = vpop.permute.xlu0 %2322
      %2324 = vrot.lane.b32.xlu0 %v2153, 12
      %v2325 = vpop.permute.xlu0 %2324
      %2326 = vrot.lane.b32.xlu0 %v2154, 12
      %v2327 = vpop.permute.xlu0 %2326
      %2328 = vrot.lane.b32.xlu0 %v2155, 12
      %v2329 = vpop.permute.xlu0 %2328
      %2330 = vrot.lane.b32.xlu0 %v2156, 12
      %v2331 = vpop.permute.xlu0 %2330
      %2332 = vrot.lane.b32.xlu0 %v2157, 12
      %v2333 = vpop.permute.xlu0 %2332
      %2334 = vrot.lane.b32.xlu0 %v2158, 12
      %v2335 = vpop.permute.xlu0 %2334
      %2336 = vrot.lane.b32.xlu0 %v2159, 12
      %v2337 = vpop.permute.xlu0 %2336
      %2338 = vrot.lane.b32.xlu0 %v2160, 12
      %v2339 = vpop.permute.xlu0 %2338
      %2340 = vrot.lane.b32.xlu0 %v2161, 12
      %v2341 = vpop.permute.xlu0 %2340
      %2342 = vrot.lane.b32.xlu0 %v2162, 12
      %v2343 = vpop.permute.xlu0 %2342
      %2344 = vrot.lane.b32.xlu0 %v2163, 12
      %v2345 = vpop.permute.xlu0 %2344
      %2346 = vrot.lane.b32.xlu0 %v2164, 12
      %v2347 = vpop.permute.xlu0 %2346
      %2348 = vrot.lane.b32.xlu0 %v2165, 12
      %v2349 = vpop.permute.xlu0 %2348
      %2350 = vrot.lane.b32.xlu0 %v2166, 12
      %v2351 = vpop.permute.xlu0 %2350
      %2352 = vrot.lane.b32.xlu0 %v2167, 12
      %v2353 = vpop.permute.xlu0 %2352
      %2354 = vrot.lane.b32.xlu0 %v2168, 12
      %v2355 = vpop.permute.xlu0 %2354
      %2356 = vrot.lane.b32.xlu0 %v2169, 12
      %v2357 = vpop.permute.xlu0 %2356
      %2358 = vrot.lane.b32.xlu0 %v2170, 12
      %v2359 = vpop.permute.xlu0 %2358
      %2360 = vrot.lane.b32.xlu0 %v2171, 12
      %v2361 = vpop.permute.xlu0 %2360
      %2362 = vrot.lane.b32.xlu0 %v2172, 12
      %v2363 = vpop.permute.xlu0 %2362
      %2364 = vrot.lane.b32.xlu0 %v2173, 12
      %v2365 = vpop.permute.xlu0 %2364
      %vm2430 = vcmask 126048
      %2431 = vst.msk [vmem:[#allocation2] sm:$0xf] %vm2430, %v2239
      %2432 = vst.msk [vmem:[#allocation2 + $0x4] sm:$0xf] %vm2430, %v2241
      %2433 = vst.msk [vmem:[#allocation2 + $0x8] sm:$0xf] %vm2430, %v2243
      %2434 = vst.msk [vmem:[#allocation2 + $0xc] sm:$0xf] %vm2430, %v2245
      %2435 = vst.msk [vmem:[#allocation2 + $0x10] sm:$0xf] %vm2430, %v2247
      %2436 = vst.msk [vmem:[#allocation2 + $0x14] sm:$0xf] %vm2430, %v2249
      %2437 = vst.msk [vmem:[#allocation2 + $0x18] sm:$0xf] %vm2430, %v2251
      %2438 = vst.msk [vmem:[#allocation2 + $0x1c] sm:$0xf] %vm2430, %v2253
      %2439 = vst.msk [vmem:[#allocation2 + $0x20] sm:$0xf] %vm2430, %v2255
      %2440 = vst.msk [vmem:[#allocation2 + $0x24] sm:$0xf] %vm2430, %v2257
      %2441 = vst.msk [vmem:[#allocation2 + $0x28] sm:$0xf] %vm2430, %v2259
      %2442 = vst.msk [vmem:[#allocation2 + $0x2c] sm:$0xf] %vm2430, %v2261
      %2443 = vst.msk [vmem:[#allocation2 + $0x30] sm:$0xf] %vm2430, %v2263
      %2444 = vst.msk [vmem:[#allocation2 + $0x34] sm:$0xf] %vm2430, %v2265
      %2445 = vst.msk [vmem:[#allocation2 + $0x38] sm:$0xf] %vm2430, %v2267
      %2446 = vst.msk [vmem:[#allocation2 + $0x3c] sm:$0xf] %vm2430, %v2269
      %2447 = vst.msk [vmem:[#allocation2 + $0x40] sm:$0xf] %vm2430, %v2271
      %2448 = vst.msk [vmem:[#allocation2 + $0x44] sm:$0xf] %vm2430, %v2273
      %2449 = vst.msk [vmem:[#allocation2 + $0x48] sm:$0xf] %vm2430, %v2275
      %2450 = vst.msk [vmem:[#allocation2 + $0x4c] sm:$0xf] %vm2430, %v2277
      %2451 = vst.msk [vmem:[#allocation2 + $0x50] sm:$0xf] %vm2430, %v2279
      %2452 = vst.msk [vmem:[#allocation2 + $0x54] sm:$0xf] %vm2430, %v2281
      %2453 = vst.msk [vmem:[#allocation2 + $0x58] sm:$0xf] %vm2430, %v2283
      %2454 = vst.msk [vmem:[#allocation2 + $0x5c] sm:$0xf] %vm2430, %v2285
      %2455 = vst.msk [vmem:[#allocation2 + $0x60] sm:$0xf] %vm2430, %v2287
      %2456 = vst.msk [vmem:[#allocation2 + $0x64] sm:$0xf] %vm2430, %v2289
      %2457 = vst.msk [vmem:[#allocation2 + $0x68] sm:$0xf] %vm2430, %v2291
      %2458 = vst.msk [vmem:[#allocation2 + $0x6c] sm:$0xf] %vm2430, %v2293
      %2459 = vst.msk [vmem:[#allocation2 + $0x70] sm:$0xf] %vm2430, %v2295
      %2460 = vst.msk [vmem:[#allocation2 + $0x74] sm:$0xf] %vm2430, %v2297
      %2461 = vst.msk [vmem:[#allocation2 + $0x78] sm:$0xf] %vm2430, %v2299
      %2462 = vst.msk [vmem:[#allocation2 + $0x7c] sm:$0xf] %vm2430, %v2301
      %2463 = vst.msk [vmem:[#allocation2 + $0x80] sm:$0xf] %vm2430, %v2303
      %2464 = vst.msk [vmem:[#allocation2 + $0x84] sm:$0xf] %vm2430, %v2305
      %2465 = vst.msk [vmem:[#allocation2 + $0x88] sm:$0xf] %vm2430, %v2307
      %2466 = vst.msk [vmem:[#allocation2 + $0x8c] sm:$0xf] %vm2430, %v2309
      %2467 = vst.msk [vmem:[#allocation2 + $0x90] sm:$0xf] %vm2430, %v2311
      %2468 = vst.msk [vmem:[#allocation2 + $0x94] sm:$0xf] %vm2430, %v2313
      %2469 = vst.msk [vmem:[#allocation2 + $0x98] sm:$0xf] %vm2430, %v2315
      %2470 = vst.msk [vmem:[#allocation2 + $0x9c] sm:$0xf] %vm2430, %v2317
      %2471 = vst.msk [vmem:[#allocation2 + $0xa0] sm:$0xf] %vm2430, %v2319
      %2472 = vst.msk [vmem:[#allocation2 + $0xa4] sm:$0xf] %vm2430, %v2321
      %2473 = vst.msk [vmem:[#allocation2 + $0xa8] sm:$0xf] %vm2430, %v2323
      %2474 = vst.msk [vmem:[#allocation2 + $0xac] sm:$0xf] %vm2430, %v2325
      %2475 = vst.msk [vmem:[#allocation2 + $0xb0] sm:$0xf] %vm2430, %v2327
      %2476 = vst.msk [vmem:[#allocation2 + $0xb4] sm:$0xf] %vm2430, %v2329
      %2477 = vst.msk [vmem:[#allocation2 + $0xb8] sm:$0xf] %vm2430, %v2331
      %2478 = vst.msk [vmem:[#allocation2 + $0xbc] sm:$0xf] %vm2430, %v2333
      %2479 = vst.msk [vmem:[#allocation2 + $0xc0] sm:$0xf] %vm2430, %v2335
      %2480 = vst.msk [vmem:[#allocation2 + $0xc4] sm:$0xf] %vm2430, %v2337
      %2481 = vst.msk [vmem:[#allocation2 + $0xc8] sm:$0xf] %vm2430, %v2339
      %2482 = vst.msk [vmem:[#allocation2 + $0xcc] sm:$0xf] %vm2430, %v2341
      %2483 = vst.msk [vmem:[#allocation2 + $0xd0] sm:$0xf] %vm2430, %v2343
      %2484 = vst.msk [vmem:[#allocation2 + $0xd4] sm:$0xf] %vm2430, %v2345
      %2485 = vst.msk [vmem:[#allocation2 + $0xd8] sm:$0xf] %vm2430, %v2347
      %2486 = vst.msk [vmem:[#allocation2 + $0xdc] sm:$0xf] %vm2430, %v2349
      %2487 = vst.msk [vmem:[#allocation2 + $0xe0] sm:$0xf] %vm2430, %v2351
      %2488 = vst.msk [vmem:[#allocation2 + $0xe4] sm:$0xf] %vm2430, %v2353
      %2489 = vst.msk [vmem:[#allocation2 + $0xe8] sm:$0xf] %vm2430, %v2355
      %2490 = vst.msk [vmem:[#allocation2 + $0xec] sm:$0xf] %vm2430, %v2357
      %2491 = vst.msk [vmem:[#allocation2 + $0xf0] sm:$0xf] %vm2430, %v2359
      %2492 = vst.msk [vmem:[#allocation2 + $0xf4] sm:$0xf] %vm2430, %v2361
      %2493 = vst.msk [vmem:[#allocation2 + $0xf8] sm:$0xf] %vm2430, %v2363
      %2494 = vst.msk [vmem:[#allocation2 + $0xfc] sm:$0xf] %vm2430, %v2365
      %v2495 = vld [vmem:[%s2109] sm:$0xf]
      %v2496 = vld [vmem:[%s2109 + $0x4] sm:$0xf]
      %v2497 = vld [vmem:[%s2109 + $0x8] sm:$0x1]
      %v2498 = vld [vmem:[%s2109 + $0xc] sm:$0xf]
      %v2499 = vld [vmem:[%s2109 + $0x10] sm:$0xf]
      %v2500 = vld [vmem:[%s2109 + $0x14] sm:$0x1]
      %v2501 = vld [vmem:[%s2109 + $0x18] sm:$0xf]
      %v2502 = vld [vmem:[%s2109 + $0x1c] sm:$0xf]
      %v2503 = vld [vmem:[%s2109 + $0x20] sm:$0x1]
      %v2504 = vld [vmem:[%s2109 + $0x24] sm:$0xf]
      %v2505 = vld [vmem:[%s2109 + $0x28] sm:$0xf]
      %v2506 = vld [vmem:[%s2109 + $0x2c] sm:$0x1]
      %v2507 = vld [vmem:[%s2109 + $0x30] sm:$0xf]
      %v2508 = vld [vmem:[%s2109 + $0x34] sm:$0xf]
      %v2509 = vld [vmem:[%s2109 + $0x38] sm:$0x1]
      %v2510 = vld [vmem:[%s2109 + $0x3c] sm:$0xf]
      %v2511 = vld [vmem:[%s2109 + $0x40] sm:$0xf]
      %v2512 = vld [vmem:[%s2109 + $0x44] sm:$0x1]
      %v2513 = vld [vmem:[%s2109 + $0x48] sm:$0xf]
      %v2514 = vld [vmem:[%s2109 + $0x4c] sm:$0xf]
      %v2515 = vld [vmem:[%s2109 + $0x50] sm:$0x1]
      %v2516 = vld [vmem:[%s2109 + $0x54] sm:$0xf]
      %v2517 = vld [vmem:[%s2109 + $0x58] sm:$0xf]
      %v2518 = vld [vmem:[%s2109 + $0x5c] sm:$0x1]
      %v2519 = vld [vmem:[%s2109 + $0x60] sm:$0xf]
      %v2520 = vld [vmem:[%s2109 + $0x64] sm:$0xf]
      %v2521 = vld [vmem:[%s2109 + $0x68] sm:$0x1]
      %v2522 = vld [vmem:[%s2109 + $0x6c] sm:$0xf]
      %v2523 = vld [vmem:[%s2109 + $0x70] sm:$0xf]
      %v2524 = vld [vmem:[%s2109 + $0x74] sm:$0x1]
      %v2525 = vld [vmem:[%s2109 + $0x78] sm:$0xf]
      %v2526 = vld [vmem:[%s2109 + $0x7c] sm:$0xf]
      %v2527 = vld [vmem:[%s2109 + $0x80] sm:$0x1]
      %v2528 = vld [vmem:[%s2109 + $0x84] sm:$0xf]
      %v2529 = vld [vmem:[%s2109 + $0x88] sm:$0xf]
      %v2530 = vld [vmem:[%s2109 + $0x8c] sm:$0x1]
      %v2531 = vld [vmem:[%s2109 + $0x90] sm:$0xf]
      %v2532 = vld [vmem:[%s2109 + $0x94] sm:$0xf]
      %v2533 = vld [vmem:[%s2109 + $0x98] sm:$0x1]
      %v2534 = vld [vmem:[%s2109 + $0x9c] sm:$0xf]
      %v2535 = vld [vmem:[%s2109 + $0xa0] sm:$0xf]
      %v2536 = vld [vmem:[%s2109 + $0xa4] sm:$0x1]
      %v2537 = vld [vmem:[%s2109 + $0xa8] sm:$0xf]
      %v2538 = vld [vmem:[%s2109 + $0xac] sm:$0xf]
      %v2539 = vld [vmem:[%s2109 + $0xb0] sm:$0x1]
      %v2540 = vld [vmem:[%s2109 + $0xb4] sm:$0xf]
      %v2541 = vld [vmem:[%s2109 + $0xb8] sm:$0xf]
      %v2542 = vld [vmem:[%s2109 + $0xbc] sm:$0x1]
      %v2543 = vld [vmem:[%s2109 + $0xd8] sm:$0xf]
      %v2544 = vld [vmem:[%s2109 + $0xdc] sm:$0xf]
      %v2545 = vld [vmem:[%s2109 + $0xe0] sm:$0x1]
      %v2546 = vld [vmem:[%s2109 + $0xe4] sm:$0xf]
      %v2547 = vld [vmem:[%s2109 + $0xe8] sm:$0xf]
      %v2548 = vld [vmem:[%s2109 + $0xec] sm:$0x1]
      %v2549 = vld [vmem:[%s2109 + $0xf0] sm:$0xf]
      %v2550 = vld [vmem:[%s2109 + $0xf4] sm:$0xf]
      %v2551 = vld [vmem:[%s2109 + $0xf8] sm:$0x1]
      %v2552 = vld [vmem:[%s2109 + $0xfc] sm:$0xf]
      %v2553 = vld [vmem:[%s2109 + $0x100] sm:$0xf]
      %v2554 = vld [vmem:[%s2109 + $0x104] sm:$0x1]
      %v2555 = vld [vmem:[%s2109 + $0x108] sm:$0xf]
      %v2556 = vld [vmem:[%s2109 + $0x10c] sm:$0xf]
      %v2557 = vld [vmem:[%s2109 + $0x110] sm:$0x1]
      %v2558 = vld [vmem:[%s2109 + $0x114] sm:$0xf]
      %v2559 = vld [vmem:[%s2109 + $0x118] sm:$0xf]
      %v2560 = vld [vmem:[%s2109 + $0x11c] sm:$0x1]
      %v2561 = vld [vmem:[%s2109 + $0x120] sm:$0xf]
      %v2562 = vld [vmem:[%s2109 + $0x124] sm:$0xf]
      %v2563 = vld [vmem:[%s2109 + $0x128] sm:$0x1]
      %v2564 = vld [vmem:[%s2109 + $0x12c] sm:$0xf]
      %v2565 = vld [vmem:[%s2109 + $0x130] sm:$0xf]
      %v2566 = vld [vmem:[%s2109 + $0x134] sm:$0x1]
      %v2567 = vld [vmem:[%s2109 + $0x138] sm:$0xf]
      %v2568 = vld [vmem:[%s2109 + $0x13c] sm:$0xf]
      %v2569 = vld [vmem:[%s2109 + $0x140] sm:$0x1]
      %v2570 = vld [vmem:[%s2109 + $0x144] sm:$0xf]
      %v2571 = vld [vmem:[%s2109 + $0x148] sm:$0xf]
      %v2572 = vld [vmem:[%s2109 + $0x14c] sm:$0x1]
      %v2573 = vld [vmem:[%s2109 + $0x150] sm:$0xf]
      %v2574 = vld [vmem:[%s2109 + $0x154] sm:$0xf]
      %v2575 = vld [vmem:[%s2109 + $0x158] sm:$0x1]
      %v2576 = vld [vmem:[%s2109 + $0x15c] sm:$0xf]
      %v2577 = vld [vmem:[%s2109 + $0x160] sm:$0xf]
      %v2578 = vld [vmem:[%s2109 + $0x164] sm:$0x1]
      %v2579 = vld [vmem:[%s2109 + $0x168] sm:$0xf]
      %v2580 = vld [vmem:[%s2109 + $0x16c] sm:$0xf]
      %v2581 = vld [vmem:[%s2109 + $0x170] sm:$0x1]
      %v2582 = vld [vmem:[%s2109 + $0x174] sm:$0xf]
      %v2583 = vld [vmem:[%s2109 + $0x178] sm:$0xf]
      %v2584 = vld [vmem:[%s2109 + $0x17c] sm:$0x1]
      %v2585 = vld [vmem:[%s2109 + $0x180] sm:$0xf]
      %v2586 = vld [vmem:[%s2109 + $0x184] sm:$0xf]
      %v2587 = vld [vmem:[%s2109 + $0x188] sm:$0x1]
      %v2588 = vld [vmem:[%s2109 + $0x18c] sm:$0xf]
      %v2589 = vld [vmem:[%s2109 + $0x190] sm:$0xf]
      %v2590 = vld [vmem:[%s2109 + $0x194] sm:$0x1]
      %v2592 = vshrl.u32 %v2495, 16
      %v2594 = vrot.slane %v2592, 4
      %v2595 = vshll.u32 %v2495, 16
      %v2597 = vrot.slane %v2595, 5
      %v2598 = vor.u32 %v2594, %v2597
      %v2599 = vrot.slane %v2598, 4
      %v2601 = vshll.u32 %v2496, 16
      %v2603 = vrot.slane %v2601, 5
      %v2604 = vsel %vm407, %v2599, %v2603
      %v2605 = vshrl.u32 %v2496, 16
      %v2607 = vrot.slane %v2605, 4
      %v2608 = vor.u32 %v2607, %v2603
      %v2609 = vrot.slane %v2608, 4
      %v2611 = vshll.u32 %v2497, 16
      %v2613 = vrot.slane %v2611, 5
      %v2614 = vsel %vm407, %v2609, %v2613
      %v2616 = vshrl.u32 %v2498, 16
      %v2618 = vrot.slane %v2616, 4
      %v2619 = vshll.u32 %v2498, 16
      %v2621 = vrot.slane %v2619, 5
      %v2622 = vor.u32 %v2618, %v2621
      %v2623 = vrot.slane %v2622, 4
      %v2625 = vshll.u32 %v2499, 16
      %v2627 = vrot.slane %v2625, 5
      %v2628 = vsel %vm407, %v2623, %v2627
      %v2629 = vshrl.u32 %v2499, 16
      %v2631 = vrot.slane %v2629, 4
      %v2632 = vor.u32 %v2631, %v2627
      %v2633 = vrot.slane %v2632, 4
      %v2635 = vshll.u32 %v2500, 16
      %v2637 = vrot.slane %v2635, 5
      %v2638 = vsel %vm407, %v2633, %v2637
      %v2640 = vshrl.u32 %v2501, 16
      %v2642 = vrot.slane %v2640, 4
      %v2643 = vshll.u32 %v2501, 16
      %v2645 = vrot.slane %v2643, 5
      %v2646 = vor.u32 %v2642, %v2645
      %v2647 = vrot.slane %v2646, 4
      %v2649 = vshll.u32 %v2502, 16
      %v2651 = vrot.slane %v2649, 5
      %v2652 = vsel %vm407, %v2647, %v2651
      %v2653 = vshrl.u32 %v2502, 16
      %v2655 = vrot.slane %v2653, 4
      %v2656 = vor.u32 %v2655, %v2651
      %v2657 = vrot.slane %v2656, 4
      %v2659 = vshll.u32 %v2503, 16
      %v2661 = vrot.slane %v2659, 5
      %v2662 = vsel %vm407, %v2657, %v2661
      %v2664 = vshrl.u32 %v2504, 16
      %v2666 = vrot.slane %v2664, 4
      %v2667 = vshll.u32 %v2504, 16
      %v2669 = vrot.slane %v2667, 5
      %v2670 = vor.u32 %v2666, %v2669
      %v2671 = vrot.slane %v2670, 4
      %v2673 = vshll.u32 %v2505, 16
      %v2675 = vrot.slane %v2673, 5
      %v2676 = vsel %vm407, %v2671, %v2675
      %v2677 = vshrl.u32 %v2505, 16
      %v2679 = vrot.slane %v2677, 4
      %v2680 = vor.u32 %v2679, %v2675
      %v2681 = vrot.slane %v2680, 4
      %v2683 = vshll.u32 %v2506, 16
      %v2685 = vrot.slane %v2683, 5
      %v2686 = vsel %vm407, %v2681, %v2685
      %v2688 = vshrl.u32 %v2507, 16
      %v2690 = vrot.slane %v2688, 4
      %v2691 = vshll.u32 %v2507, 16
      %v2693 = vrot.slane %v2691, 5
      %v2694 = vor.u32 %v2690, %v2693
      %v2695 = vrot.slane %v2694, 4
      %v2697 = vshll.u32 %v2508, 16
      %v2699 = vrot.slane %v2697, 5
      %v2700 = vsel %vm407, %v2695, %v2699
      %v2701 = vshrl.u32 %v2508, 16
      %v2703 = vrot.slane %v2701, 4
      %v2704 = vor.u32 %v2703, %v2699
      %v2705 = vrot.slane %v2704, 4
      %v2707 = vshll.u32 %v2509, 16
      %v2709 = vrot.slane %v2707, 5
      %v2710 = vsel %vm407, %v2705, %v2709
      %v2712 = vshrl.u32 %v2510, 16
      %v2714 = vrot.slane %v2712, 4
      %v2715 = vshll.u32 %v2510, 16
      %v2717 = vrot.slane %v2715, 5
      %v2718 = vor.u32 %v2714, %v2717
      %v2719 = vrot.slane %v2718, 4
      %v2721 = vshll.u32 %v2511, 16
      %v2723 = vrot.slane %v2721, 5
      %v2724 = vsel %vm407, %v2719, %v2723
      %v2725 = vshrl.u32 %v2511, 16
      %v2727 = vrot.slane %v2725, 4
      %v2728 = vor.u32 %v2727, %v2723
      %v2729 = vrot.slane %v2728, 4
      %v2731 = vshll.u32 %v2512, 16
      %v2733 = vrot.slane %v2731, 5
      %v2734 = vsel %vm407, %v2729, %v2733
      %v2736 = vshrl.u32 %v2513, 16
      %v2738 = vrot.slane %v2736, 4
      %v2739 = vshll.u32 %v2513, 16
      %v2741 = vrot.slane %v2739, 5
      %v2742 = vor.u32 %v2738, %v2741
      %v2743 = vrot.slane %v2742, 4
      %v2745 = vshll.u32 %v2514, 16
      %v2747 = vrot.slane %v2745, 5
      %v2748 = vsel %vm407, %v2743, %v2747
      %v2749 = vshrl.u32 %v2514, 16
      %v2751 = vrot.slane %v2749, 4
      %v2752 = vor.u32 %v2751, %v2747
      %v2753 = vrot.slane %v2752, 4
      %v2755 = vshll.u32 %v2515, 16
      %v2757 = vrot.slane %v2755, 5
      %v2758 = vsel %vm407, %v2753, %v2757
      %v2760 = vshrl.u32 %v2516, 16
      %v2762 = vrot.slane %v2760, 4
      %v2763 = vshll.u32 %v2516, 16
      %v2765 = vrot.slane %v2763, 5
      %v2766 = vor.u32 %v2762, %v2765
      %v2767 = vrot.slane %v2766, 4
      %v2769 = vshll.u32 %v2517, 16
      %v2771 = vrot.slane %v2769, 5
      %v2772 = vsel %vm407, %v2767, %v2771
      %v2773 = vshrl.u32 %v2517, 16
      %v2775 = vrot.slane %v2773, 4
      %v2776 = vor.u32 %v2775, %v2771
      %v2777 = vrot.slane %v2776, 4
      %v2779 = vshll.u32 %v2518, 16
      %v2781 = vrot.slane %v2779, 5
      %v2782 = vsel %vm407, %v2777, %v2781
      %v2784 = vshrl.u32 %v2519, 16
      %v2786 = vrot.slane %v2784, 4
      %v2787 = vshll.u32 %v2519, 16
      %v2789 = vrot.slane %v2787, 5
      %v2790 = vor.u32 %v2786, %v2789
      %v2791 = vrot.slane %v2790, 4
      %v2793 = vshll.u32 %v2520, 16
      %v2795 = vrot.slane %v2793, 5
      %v2796 = vsel %vm407, %v2791, %v2795
      %v2797 = vshrl.u32 %v2520, 16
      %v2799 = vrot.slane %v2797, 4
      %v2800 = vor.u32 %v2799, %v2795
      %v2801 = vrot.slane %v2800, 4
      %v2803 = vshll.u32 %v2521, 16
      %v2805 = vrot.slane %v2803, 5
      %v2806 = vsel %vm407, %v2801, %v2805
      %v2808 = vshrl.u32 %v2522, 16
      %v2810 = vrot.slane %v2808, 4
      %v2811 = vshll.u32 %v2522, 16
      %v2813 = vrot.slane %v2811, 5
      %v2814 = vor.u32 %v2810, %v2813
      %v2815 = vrot.slane %v2814, 4
      %v2817 = vshll.u32 %v2523, 16
      %v2819 = vrot.slane %v2817, 5
      %v2820 = vsel %vm407, %v2815, %v2819
      %v2821 = vshrl.u32 %v2523, 16
      %v2823 = vrot.slane %v2821, 4
      %v2824 = vor.u32 %v2823, %v2819
      %v2825 = vrot.slane %v2824, 4
      %v2827 = vshll.u32 %v2524, 16
      %v2829 = vrot.slane %v2827, 5
      %v2830 = vsel %vm407, %v2825, %v2829
      %v2832 = vshrl.u32 %v2525, 16
      %v2834 = vrot.slane %v2832, 4
      %v2835 = vshll.u32 %v2525, 16
      %v2837 = vrot.slane %v2835, 5
      %v2838 = vor.u32 %v2834, %v2837
      %v2839 = vrot.slane %v2838, 4
      %v2841 = vshll.u32 %v2526, 16
      %v2843 = vrot.slane %v2841, 5
      %v2844 = vsel %vm407, %v2839, %v2843
      %v2845 = vshrl.u32 %v2526, 16
      %v2847 = vrot.slane %v2845, 4
      %v2848 = vor.u32 %v2847, %v2843
      %v2849 = vrot.slane %v2848, 4
      %v2851 = vshll.u32 %v2527, 16
      %v2853 = vrot.slane %v2851, 5
      %v2854 = vsel %vm407, %v2849, %v2853
      %v2856 = vshrl.u32 %v2528, 16
      %v2858 = vrot.slane %v2856, 4
      %v2859 = vshll.u32 %v2528, 16
      %v2861 = vrot.slane %v2859, 5
      %v2862 = vor.u32 %v2858, %v2861
      %v2863 = vrot.slane %v2862, 4
      %v2865 = vshll.u32 %v2529, 16
      %v2867 = vrot.slane %v2865, 5
      %v2868 = vsel %vm407, %v2863, %v2867
      %v2869 = vshrl.u32 %v2529, 16
      %v2871 = vrot.slane %v2869, 4
      %v2872 = vor.u32 %v2871, %v2867
      %v2873 = vrot.slane %v2872, 4
      %v2875 = vshll.u32 %v2530, 16
      %v2877 = vrot.slane %v2875, 5
      %v2878 = vsel %vm407, %v2873, %v2877
      %v2880 = vshrl.u32 %v2531, 16
      %v2882 = vrot.slane %v2880, 4
      %v2883 = vshll.u32 %v2531, 16
      %v2885 = vrot.slane %v2883, 5
      %v2886 = vor.u32 %v2882, %v2885
      %v2887 = vrot.slane %v2886, 4
      %v2889 = vshll.u32 %v2532, 16
      %v2891 = vrot.slane %v2889, 5
      %v2892 = vsel %vm407, %v2887, %v2891
      %v2893 = vshrl.u32 %v2532, 16
      %v2895 = vrot.slane %v2893, 4
      %v2896 = vor.u32 %v2895, %v2891
      %v2897 = vrot.slane %v2896, 4
      %v2899 = vshll.u32 %v2533, 16
      %v2901 = vrot.slane %v2899, 5
      %v2902 = vsel %vm407, %v2897, %v2901
      %v2904 = vshrl.u32 %v2534, 16
      %v2906 = vrot.slane %v2904, 4
      %v2907 = vshll.u32 %v2534, 16
      %v2909 = vrot.slane %v2907, 5
      %v2910 = vor.u32 %v2906, %v2909
      %v2911 = vrot.slane %v2910, 4
      %v2913 = vshll.u32 %v2535, 16
      %v2915 = vrot.slane %v2913, 5
      %v2916 = vsel %vm407, %v2911, %v2915
      %v2917 = vshrl.u32 %v2535, 16
      %v2919 = vrot.slane %v2917, 4
      %v2920 = vor.u32 %v2919, %v2915
      %v2921 = vrot.slane %v2920, 4
      %v2923 = vshll.u32 %v2536, 16
      %v2925 = vrot.slane %v2923, 5
      %v2926 = vsel %vm407, %v2921, %v2925
      %v2928 = vshrl.u32 %v2537, 16
      %v2930 = vrot.slane %v2928, 4
      %v2931 = vshll.u32 %v2537, 16
      %v2933 = vrot.slane %v2931, 5
      %v2934 = vor.u32 %v2930, %v2933
      %v2935 = vrot.slane %v2934, 4
      %v2937 = vshll.u32 %v2538, 16
      %v2939 = vrot.slane %v2937, 5
      %v2940 = vsel %vm407, %v2935, %v2939
      %v2941 = vshrl.u32 %v2538, 16
      %v2943 = vrot.slane %v2941, 4
      %v2944 = vor.u32 %v2943, %v2939
      %v2945 = vrot.slane %v2944, 4
      %v2947 = vshll.u32 %v2539, 16
      %v2949 = vrot.slane %v2947, 5
      %v2950 = vsel %vm407, %v2945, %v2949
      %v2952 = vshrl.u32 %v2540, 16
      %v2954 = vrot.slane %v2952, 4
      %v2955 = vshll.u32 %v2540, 16
      %v2957 = vrot.slane %v2955, 5
      %v2958 = vor.u32 %v2954, %v2957
      %v2959 = vrot.slane %v2958, 4
      %v2961 = vshll.u32 %v2541, 16
      %v2963 = vrot.slane %v2961, 5
      %v2964 = vsel %vm407, %v2959, %v2963
      %v2965 = vshrl.u32 %v2541, 16
      %v2967 = vrot.slane %v2965, 4
      %v2968 = vor.u32 %v2967, %v2963
      %v2969 = vrot.slane %v2968, 4
      %v2971 = vshll.u32 %v2542, 16
      %v2973 = vrot.slane %v2971, 5
      %v2974 = vsel %vm407, %v2969, %v2973
      %v2976 = vshrl.u32 %v2543, 16
      %v2978 = vrot.slane %v2976, 4
      %v2979 = vshll.u32 %v2543, 16
      %v2981 = vrot.slane %v2979, 5
      %v2982 = vor.u32 %v2978, %v2981
      %v2983 = vrot.slane %v2982, 4
      %v2985 = vshll.u32 %v2544, 16
      %v2987 = vrot.slane %v2985, 5
      %v2988 = vsel %vm407, %v2983, %v2987
      %v2989 = vshrl.u32 %v2544, 16
      %v2991 = vrot.slane %v2989, 4
      %v2992 = vor.u32 %v2991, %v2987
      %v2993 = vrot.slane %v2992, 4
      %v2995 = vshll.u32 %v2545, 16
      %v2997 = vrot.slane %v2995, 5
      %v2998 = vsel %vm407, %v2993, %v2997
      %v3000 = vshrl.u32 %v2546, 16
      %v3002 = vrot.slane %v3000, 4
      %v3003 = vshll.u32 %v2546, 16
      %v3005 = vrot.slane %v3003, 5
      %v3006 = vor.u32 %v3002, %v3005
      %v3007 = vrot.slane %v3006, 4
      %v3009 = vshll.u32 %v2547, 16
      %v3011 = vrot.slane %v3009, 5
      %v3012 = vsel %vm407, %v3007, %v3011
      %v3013 = vshrl.u32 %v2547, 16
      %v3015 = vrot.slane %v3013, 4
      %v3016 = vor.u32 %v3015, %v3011
      %v3017 = vrot.slane %v3016, 4
      %v3019 = vshll.u32 %v2548, 16
      %v3021 = vrot.slane %v3019, 5
      %v3022 = vsel %vm407, %v3017, %v3021
      %v3024 = vshrl.u32 %v2549, 16
      %v3026 = vrot.slane %v3024, 4
      %v3027 = vshll.u32 %v2549, 16
      %v3029 = vrot.slane %v3027, 5
      %v3030 = vor.u32 %v3026, %v3029
      %v3031 = vrot.slane %v3030, 4
      %v3033 = vshll.u32 %v2550, 16
      %v3035 = vrot.slane %v3033, 5
      %v3036 = vsel %vm407, %v3031, %v3035
      %v3037 = vshrl.u32 %v2550, 16
      %v3039 = vrot.slane %v3037, 4
      %v3040 = vor.u32 %v3039, %v3035
      %v3041 = vrot.slane %v3040, 4
      %v3043 = vshll.u32 %v2551, 16
      %v3045 = vrot.slane %v3043, 5
      %v3046 = vsel %vm407, %v3041, %v3045
      %v3048 = vshrl.u32 %v2552, 16
      %v3050 = vrot.slane %v3048, 4
      %v3051 = vshll.u32 %v2552, 16
      %v3053 = vrot.slane %v3051, 5
      %v3054 = vor.u32 %v3050, %v3053
      %v3055 = vrot.slane %v3054, 4
      %v3057 = vshll.u32 %v2553, 16
      %v3059 = vrot.slane %v3057, 5
      %v3060 = vsel %vm407, %v3055, %v3059
      %v3061 = vshrl.u32 %v2553, 16
      %v3063 = vrot.slane %v3061, 4
      %v3064 = vor.u32 %v3063, %v3059
      %v3065 = vrot.slane %v3064, 4
      %v3067 = vshll.u32 %v2554, 16
      %v3069 = vrot.slane %v3067, 5
      %v3070 = vsel %vm407, %v3065, %v3069
      %v3072 = vshrl.u32 %v2555, 16
      %v3074 = vrot.slane %v3072, 4
      %v3075 = vshll.u32 %v2555, 16
      %v3077 = vrot.slane %v3075, 5
      %v3078 = vor.u32 %v3074, %v3077
      %v3079 = vrot.slane %v3078, 4
      %v3081 = vshll.u32 %v2556, 16
      %v3083 = vrot.slane %v3081, 5
      %v3084 = vsel %vm407, %v3079, %v3083
      %v3085 = vshrl.u32 %v2556, 16
      %v3087 = vrot.slane %v3085, 4
      %v3088 = vor.u32 %v3087, %v3083
      %v3089 = vrot.slane %v3088, 4
      %v3091 = vshll.u32 %v2557, 16
      %v3093 = vrot.slane %v3091, 5
      %v3094 = vsel %vm407, %v3089, %v3093
      %v3096 = vshrl.u32 %v2558, 16
      %v3098 = vrot.slane %v3096, 4
      %v3099 = vshll.u32 %v2558, 16
      %v3101 = vrot.slane %v3099, 5
      %v3102 = vor.u32 %v3098, %v3101
      %v3103 = vrot.slane %v3102, 4
      %v3105 = vshll.u32 %v2559, 16
      %v3107 = vrot.slane %v3105, 5
      %v3108 = vsel %vm407, %v3103, %v3107
      %v3109 = vshrl.u32 %v2559, 16
      %v3111 = vrot.slane %v3109, 4
      %v3112 = vor.u32 %v3111, %v3107
      %v3113 = vrot.slane %v3112, 4
      %v3115 = vshll.u32 %v2560, 16
      %v3117 = vrot.slane %v3115, 5
      %v3118 = vsel %vm407, %v3113, %v3117
      %v3120 = vshrl.u32 %v2561, 16
      %v3122 = vrot.slane %v3120, 4
      %v3123 = vshll.u32 %v2561, 16
      %v3125 = vrot.slane %v3123, 5
      %v3126 = vor.u32 %v3122, %v3125
      %v3127 = vrot.slane %v3126, 4
      %v3129 = vshll.u32 %v2562, 16
      %v3131 = vrot.slane %v3129, 5
      %v3132 = vsel %vm407, %v3127, %v3131
      %v3133 = vshrl.u32 %v2562, 16
      %v3135 = vrot.slane %v3133, 4
      %v3136 = vor.u32 %v3135, %v3131
      %v3137 = vrot.slane %v3136, 4
      %v3139 = vshll.u32 %v2563, 16
      %v3141 = vrot.slane %v3139, 5
      %v3142 = vsel %vm407, %v3137, %v3141
      %v3144 = vshrl.u32 %v2564, 16
      %v3146 = vrot.slane %v3144, 4
      %v3147 = vshll.u32 %v2564, 16
      %v3149 = vrot.slane %v3147, 5
      %v3150 = vor.u32 %v3146, %v3149
      %v3151 = vrot.slane %v3150, 4
      %v3153 = vshll.u32 %v2565, 16
      %v3155 = vrot.slane %v3153, 5
      %v3156 = vsel %vm407, %v3151, %v3155
      %v3157 = vshrl.u32 %v2565, 16
      %v3159 = vrot.slane %v3157, 4
      %v3160 = vor.u32 %v3159, %v3155
      %v3161 = vrot.slane %v3160, 4
      %v3163 = vshll.u32 %v2566, 16
      %v3165 = vrot.slane %v3163, 5
      %v3166 = vsel %vm407, %v3161, %v3165
      %v3168 = vshrl.u32 %v2567, 16
      %v3170 = vrot.slane %v3168, 4
      %v3171 = vshll.u32 %v2567, 16
      %v3173 = vrot.slane %v3171, 5
      %v3174 = vor.u32 %v3170, %v3173
      %v3175 = vrot.slane %v3174, 4
      %v3177 = vshll.u32 %v2568, 16
      %v3179 = vrot.slane %v3177, 5
      %v3180 = vsel %vm407, %v3175, %v3179
      %v3181 = vshrl.u32 %v2568, 16
      %v3183 = vrot.slane %v3181, 4
      %v3184 = vor.u32 %v3183, %v3179
      %v3185 = vrot.slane %v3184, 4
      %v3187 = vshll.u32 %v2569, 16
      %v3189 = vrot.slane %v3187, 5
      %v3190 = vsel %vm407, %v3185, %v3189
      %v3192 = vshrl.u32 %v2570, 16
      %v3194 = vrot.slane %v3192, 4
      %v3195 = vshll.u32 %v2570, 16
      %v3197 = vrot.slane %v3195, 5
      %v3198 = vor.u32 %v3194, %v3197
      %v3199 = vrot.slane %v3198, 4
      %v3201 = vshll.u32 %v2571, 16
      %v3203 = vrot.slane %v3201, 5
      %v3204 = vsel %vm407, %v3199, %v3203
      %v3205 = vshrl.u32 %v2571, 16
      %v3207 = vrot.slane %v3205, 4
      %v3208 = vor.u32 %v3207, %v3203
      %v3209 = vrot.slane %v3208, 4
      %v3211 = vshll.u32 %v2572, 16
      %v3213 = vrot.slane %v3211, 5
      %v3214 = vsel %vm407, %v3209, %v3213
      %v3216 = vshrl.u32 %v2573, 16
      %v3218 = vrot.slane %v3216, 4
      %v3219 = vshll.u32 %v2573, 16
      %v3221 = vrot.slane %v3219, 5
      %v3222 = vor.u32 %v3218, %v3221
      %v3223 = vrot.slane %v3222, 4
      %v3225 = vshll.u32 %v2574, 16
      %v3227 = vrot.slane %v3225, 5
      %v3228 = vsel %vm407, %v3223, %v3227
      %v3229 = vshrl.u32 %v2574, 16
      %v3231 = vrot.slane %v3229, 4
      %v3232 = vor.u32 %v3231, %v3227
      %v3233 = vrot.slane %v3232, 4
      %v3235 = vshll.u32 %v2575, 16
      %v3237 = vrot.slane %v3235, 5
      %v3238 = vsel %vm407, %v3233, %v3237
      %v3240 = vshrl.u32 %v2576, 16
      %v3242 = vrot.slane %v3240, 4
      %v3243 = vshll.u32 %v2576, 16
      %v3245 = vrot.slane %v3243, 5
      %v3246 = vor.u32 %v3242, %v3245
      %v3247 = vrot.slane %v3246, 4
      %v3249 = vshll.u32 %v2577, 16
      %v3251 = vrot.slane %v3249, 5
      %v3252 = vsel %vm407, %v3247, %v3251
      %v3253 = vshrl.u32 %v2577, 16
      %v3255 = vrot.slane %v3253, 4
      %v3256 = vor.u32 %v3255, %v3251
      %v3257 = vrot.slane %v3256, 4
      %v3259 = vshll.u32 %v2578, 16
      %v3261 = vrot.slane %v3259, 5
      %v3262 = vsel %vm407, %v3257, %v3261
      %v3264 = vshrl.u32 %v2579, 16
      %v3266 = vrot.slane %v3264, 4
      %v3267 = vshll.u32 %v2579, 16
      %v3269 = vrot.slane %v3267, 5
      %v3270 = vor.u32 %v3266, %v3269
      %v3271 = vrot.slane %v3270, 4
      %v3273 = vshll.u32 %v2580, 16
      %v3275 = vrot.slane %v3273, 5
      %v3276 = vsel %vm407, %v3271, %v3275
      %v3277 = vshrl.u32 %v2580, 16
      %v3279 = vrot.slane %v3277, 4
      %v3280 = vor.u32 %v3279, %v3275
      %v3281 = vrot.slane %v3280, 4
      %v3283 = vshll.u32 %v2581, 16
      %v3285 = vrot.slane %v3283, 5
      %v3286 = vsel %vm407, %v3281, %v3285
      %v3288 = vshrl.u32 %v2582, 16
      %v3290 = vrot.slane %v3288, 4
      %v3291 = vshll.u32 %v2582, 16
      %v3293 = vrot.slane %v3291, 5
      %v3294 = vor.u32 %v3290, %v3293
      %v3295 = vrot.slane %v3294, 4
      %v3297 = vshll.u32 %v2583, 16
      %v3299 = vrot.slane %v3297, 5
      %v3300 = vsel %vm407, %v3295, %v3299
      %v3301 = vshrl.u32 %v2583, 16
      %v3303 = vrot.slane %v3301, 4
      %v3304 = vor.u32 %v3303, %v3299
      %v3305 = vrot.slane %v3304, 4
      %v3307 = vshll.u32 %v2584, 16
      %v3309 = vrot.slane %v3307, 5
      %v3310 = vsel %vm407, %v3305, %v3309
      %v3312 = vshrl.u32 %v2585, 16
      %v3314 = vrot.slane %v3312, 4
      %v3315 = vshll.u32 %v2585, 16
      %v3317 = vrot.slane %v3315, 5
      %v3318 = vor.u32 %v3314, %v3317
      %v3319 = vrot.slane %v3318, 4
      %v3321 = vshll.u32 %v2586, 16
      %v3323 = vrot.slane %v3321, 5
      %v3324 = vsel %vm407, %v3319, %v3323
      %v3325 = vshrl.u32 %v2586, 16
      %v3327 = vrot.slane %v3325, 4
      %v3328 = vor.u32 %v3327, %v3323
      %v3329 = vrot.slane %v3328, 4
      %v3331 = vshll.u32 %v2587, 16
      %v3333 = vrot.slane %v3331, 5
      %v3334 = vsel %vm407, %v3329, %v3333
      %v3336 = vshrl.u32 %v2588, 16
      %v3338 = vrot.slane %v3336, 4
      %v3339 = vshll.u32 %v2588, 16
      %v3341 = vrot.slane %v3339, 5
      %v3342 = vor.u32 %v3338, %v3341
      %v3343 = vrot.slane %v3342, 4
      %v3345 = vshll.u32 %v2589, 16
      %v3347 = vrot.slane %v3345, 5
      %v3348 = vsel %vm407, %v3343, %v3347
      %v3349 = vshrl.u32 %v2589, 16
      %v3351 = vrot.slane %v3349, 4
      %v3352 = vor.u32 %v3351, %v3347
      %v3353 = vrot.slane %v3352, 4
      %v3355 = vshll.u32 %v2590, 16
      %v3357 = vrot.slane %v3355, 5
      %v3358 = vsel %vm407, %v3353, %v3357
      %3359 = vrot.lane.b32.xlu0 %v2604, 16
      %v3360 = vpop.permute.xlu0 %3359
      %3361 = vrot.lane.b32.xlu0 %v2614, 16
      %v3362 = vpop.permute.xlu0 %3361
      %3363 = vrot.lane.b32.xlu0 %v2628, 16
      %v3364 = vpop.permute.xlu0 %3363
      %3365 = vrot.lane.b32.xlu0 %v2638, 16
      %v3366 = vpop.permute.xlu0 %3365
      %3367 = vrot.lane.b32.xlu0 %v2652, 16
      %v3368 = vpop.permute.xlu0 %3367
      %3369 = vrot.lane.b32.xlu0 %v2662, 16
      %v3370 = vpop.permute.xlu0 %3369
      %3371 = vrot.lane.b32.xlu0 %v2676, 16
      %v3372 = vpop.permute.xlu0 %3371
      %3373 = vrot.lane.b32.xlu0 %v2686, 16
      %v3374 = vpop.permute.xlu0 %3373
      %3375 = vrot.lane.b32.xlu0 %v2700, 16
      %v3376 = vpop.permute.xlu0 %3375
      %3377 = vrot.lane.b32.xlu0 %v2710, 16
      %v3378 = vpop.permute.xlu0 %3377
      %3379 = vrot.lane.b32.xlu0 %v2724, 16
      %v3380 = vpop.permute.xlu0 %3379
      %3381 = vrot.lane.b32.xlu0 %v2734, 16
      %v3382 = vpop.permute.xlu0 %3381
      %3383 = vrot.lane.b32.xlu0 %v2748, 16
      %v3384 = vpop.permute.xlu0 %3383
      %3385 = vrot.lane.b32.xlu0 %v2758, 16
      %v3386 = vpop.permute.xlu0 %3385
      %3387 = vrot.lane.b32.xlu0 %v2772, 16
      %v3388 = vpop.permute.xlu0 %3387
      %3389 = vrot.lane.b32.xlu0 %v2782, 16
      %v3390 = vpop.permute.xlu0 %3389
      %3391 = vrot.lane.b32.xlu0 %v2796, 16
      %v3392 = vpop.permute.xlu0 %3391
      %3393 = vrot.lane.b32.xlu0 %v2806, 16
      %v3394 = vpop.permute.xlu0 %3393
      %3395 = vrot.lane.b32.xlu0 %v2820, 16
      %v3396 = vpop.permute.xlu0 %3395
      %3397 = vrot.lane.b32.xlu0 %v2830, 16
      %v3398 = vpop.permute.xlu0 %3397
      %3399 = vrot.lane.b32.xlu0 %v2844, 16
      %v3400 = vpop.permute.xlu0 %3399
      %3401 = vrot.lane.b32.xlu0 %v2854, 16
      %v3402 = vpop.permute.xlu0 %3401
      %3403 = vrot.lane.b32.xlu0 %v2868, 16
      %v3404 = vpop.permute.xlu0 %3403
      %3405 = vrot.lane.b32.xlu0 %v2878, 16
      %v3406 = vpop.permute.xlu0 %3405
      %3407 = vrot.lane.b32.xlu0 %v2892, 16
      %v3408 = vpop.permute.xlu0 %3407
      %3409 = vrot.lane.b32.xlu0 %v2902, 16
      %v3410 = vpop.permute.xlu0 %3409
      %3411 = vrot.lane.b32.xlu0 %v2916, 16
      %v3412 = vpop.permute.xlu0 %3411
      %3413 = vrot.lane.b32.xlu0 %v2926, 16
      %v3414 = vpop.permute.xlu0 %3413
      %3415 = vrot.lane.b32.xlu0 %v2940, 16
      %v3416 = vpop.permute.xlu0 %3415
      %3417 = vrot.lane.b32.xlu0 %v2950, 16
      %v3418 = vpop.permute.xlu0 %3417
      %3419 = vrot.lane.b32.xlu0 %v2964, 16
      %v3420 = vpop.permute.xlu0 %3419
      %3421 = vrot.lane.b32.xlu0 %v2974, 16
      %v3422 = vpop.permute.xlu0 %3421
      %3423 = vrot.lane.b32.xlu0 %v2988, 16
      %v3424 = vpop.permute.xlu0 %3423
      %3425 = vrot.lane.b32.xlu0 %v2998, 16
      %v3426 = vpop.permute.xlu0 %3425
      %3427 = vrot.lane.b32.xlu0 %v3012, 16
      %v3428 = vpop.permute.xlu0 %3427
      %3429 = vrot.lane.b32.xlu0 %v3022, 16
      %v3430 = vpop.permute.xlu0 %3429
      %3431 = vrot.lane.b32.xlu0 %v3036, 16
      %v3432 = vpop.permute.xlu0 %3431
      %3433 = vrot.lane.b32.xlu0 %v3046, 16
      %v3434 = vpop.permute.xlu0 %3433
      %3435 = vrot.lane.b32.xlu0 %v3060, 16
      %v3436 = vpop.permute.xlu0 %3435
      %3437 = vrot.lane.b32.xlu0 %v3070, 16
      %v3438 = vpop.permute.xlu0 %3437
      %3439 = vrot.lane.b32.xlu0 %v3084, 16
      %v3440 = vpop.permute.xlu0 %3439
      %3441 = vrot.lane.b32.xlu0 %v3094, 16
      %v3442 = vpop.permute.xlu0 %3441
      %3443 = vrot.lane.b32.xlu0 %v3108, 16
      %v3444 = vpop.permute.xlu0 %3443
      %3445 = vrot.lane.b32.xlu0 %v3118, 16
      %v3446 = vpop.permute.xlu0 %3445
      %3447 = vrot.lane.b32.xlu0 %v3132, 16
      %v3448 = vpop.permute.xlu0 %3447
      %3449 = vrot.lane.b32.xlu0 %v3142, 16
      %v3450 = vpop.permute.xlu0 %3449
      %3451 = vrot.lane.b32.xlu0 %v3156, 16
      %v3452 = vpop.permute.xlu0 %3451
      %3453 = vrot.lane.b32.xlu0 %v3166, 16
      %v3454 = vpop.permute.xlu0 %3453
      %3455 = vrot.lane.b32.xlu0 %v3180, 16
      %v3456 = vpop.permute.xlu0 %3455
      %3457 = vrot.lane.b32.xlu0 %v3190, 16
      %v3458 = vpop.permute.xlu0 %3457
      %3459 = vrot.lane.b32.xlu0 %v3204, 16
      %v3460 = vpop.permute.xlu0 %3459
      %3461 = vrot.lane.b32.xlu0 %v3214, 16
      %v3462 = vpop.permute.xlu0 %3461
      %3463 = vrot.lane.b32.xlu0 %v3228, 16
      %v3464 = vpop.permute.xlu0 %3463
      %3465 = vrot.lane.b32.xlu0 %v3238, 16
      %v3466 = vpop.permute.xlu0 %3465
      %3467 = vrot.lane.b32.xlu0 %v3252, 16
      %v3468 = vpop.permute.xlu0 %3467
      %3469 = vrot.lane.b32.xlu0 %v3262, 16
      %v3470 = vpop.permute.xlu0 %3469
      %3471 = vrot.lane.b32.xlu0 %v3276, 16
      %v3472 = vpop.permute.xlu0 %3471
      %3473 = vrot.lane.b32.xlu0 %v3286, 16
      %v3474 = vpop.permute.xlu0 %3473
      %3475 = vrot.lane.b32.xlu0 %v3300, 16
      %v3476 = vpop.permute.xlu0 %3475
      %3477 = vrot.lane.b32.xlu0 %v3310, 16
      %v3478 = vpop.permute.xlu0 %3477
      %3479 = vrot.lane.b32.xlu0 %v3324, 16
      %v3480 = vpop.permute.xlu0 %3479
      %3481 = vrot.lane.b32.xlu0 %v3334, 16
      %v3482 = vpop.permute.xlu0 %3481
      %3483 = vrot.lane.b32.xlu0 %v3348, 16
      %v3484 = vpop.permute.xlu0 %3483
      %3485 = vrot.lane.b32.xlu0 %v3358, 16
      %v3486 = vpop.permute.xlu0 %3485
      %vm3551 = vcmask 158848
      %3552 = vst.msk [vmem:[#allocation2] sm:$0xf] %vm3551, %v3360
      %3553 = vst.msk [vmem:[#allocation2 + $0x4] sm:$0xf] %vm3551, %v3362
      %3554 = vst.msk [vmem:[#allocation2 + $0x8] sm:$0xf] %vm3551, %v3364
      %3555 = vst.msk [vmem:[#allocation2 + $0xc] sm:$0xf] %vm3551, %v3366
      %3556 = vst.msk [vmem:[#allocation2 + $0x10] sm:$0xf] %vm3551, %v3368
      %3557 = vst.msk [vmem:[#allocation2 + $0x14] sm:$0xf] %vm3551, %v3370
      %3558 = vst.msk [vmem:[#allocation2 + $0x18] sm:$0xf] %vm3551, %v3372
      %3559 = vst.msk [vmem:[#allocation2 + $0x1c] sm:$0xf] %vm3551, %v3374
      %3560 = vst.msk [vmem:[#allocation2 + $0x20] sm:$0xf] %vm3551, %v3376
      %3561 = vst.msk [vmem:[#allocation2 + $0x24] sm:$0xf] %vm3551, %v3378
      %3562 = vst.msk [vmem:[#allocation2 + $0x28] sm:$0xf] %vm3551, %v3380
      %3563 = vst.msk [vmem:[#allocation2 + $0x2c] sm:$0xf] %vm3551, %v3382
      %3564 = vst.msk [vmem:[#allocation2 + $0x30] sm:$0xf] %vm3551, %v3384
      %3565 = vst.msk [vmem:[#allocation2 + $0x34] sm:$0xf] %vm3551, %v3386
      %3566 = vst.msk [vmem:[#allocation2 + $0x38] sm:$0xf] %vm3551, %v3388
      %3567 = vst.msk [vmem:[#allocation2 + $0x3c] sm:$0xf] %vm3551, %v3390
      %3568 = vst.msk [vmem:[#allocation2 + $0x40] sm:$0xf] %vm3551, %v3392
      %3569 = vst.msk [vmem:[#allocation2 + $0x44] sm:$0xf] %vm3551, %v3394
      %3570 = vst.msk [vmem:[#allocation2 + $0x48] sm:$0xf] %vm3551, %v3396
      %3571 = vst.msk [vmem:[#allocation2 + $0x4c] sm:$0xf] %vm3551, %v3398
      %3572 = vst.msk [vmem:[#allocation2 + $0x50] sm:$0xf] %vm3551, %v3400
      %3573 = vst.msk [vmem:[#allocation2 + $0x54] sm:$0xf] %vm3551, %v3402
      %3574 = vst.msk [vmem:[#allocation2 + $0x58] sm:$0xf] %vm3551, %v3404
      %3575 = vst.msk [vmem:[#allocation2 + $0x5c] sm:$0xf] %vm3551, %v3406
      %3576 = vst.msk [vmem:[#allocation2 + $0x60] sm:$0xf] %vm3551, %v3408
      %3577 = vst.msk [vmem:[#allocation2 + $0x64] sm:$0xf] %vm3551, %v3410
      %3578 = vst.msk [vmem:[#allocation2 + $0x68] sm:$0xf] %vm3551, %v3412
      %3579 = vst.msk [vmem:[#allocation2 + $0x6c] sm:$0xf] %vm3551, %v3414
      %3580 = vst.msk [vmem:[#allocation2 + $0x70] sm:$0xf] %vm3551, %v3416
      %3581 = vst.msk [vmem:[#allocation2 + $0x74] sm:$0xf] %vm3551, %v3418
      %3582 = vst.msk [vmem:[#allocation2 + $0x78] sm:$0xf] %vm3551, %v3420
      %3583 = vst.msk [vmem:[#allocation2 + $0x7c] sm:$0xf] %vm3551, %v3422
      %3584 = vst.msk [vmem:[#allocation2 + $0x80] sm:$0xf] %vm3551, %v3424
      %3585 = vst.msk [vmem:[#allocation2 + $0x84] sm:$0xf] %vm3551, %v3426
      %3586 = vst.msk [vmem:[#allocation2 + $0x88] sm:$0xf] %vm3551, %v3428
      %3587 = vst.msk [vmem:[#allocation2 + $0x8c] sm:$0xf] %vm3551, %v3430
      %3588 = vst.msk [vmem:[#allocation2 + $0x90] sm:$0xf] %vm3551, %v3432
      %3589 = vst.msk [vmem:[#allocation2 + $0x94] sm:$0xf] %vm3551, %v3434
      %3590 = vst.msk [vmem:[#allocation2 + $0x98] sm:$0xf] %vm3551, %v3436
      %3591 = vst.msk [vmem:[#allocation2 + $0x9c] sm:$0xf] %vm3551, %v3438
      %3592 = vst.msk [vmem:[#allocation2 + $0xa0] sm:$0xf] %vm3551, %v3440
      %3593 = vst.msk [vmem:[#allocation2 + $0xa4] sm:$0xf] %vm3551, %v3442
      %3594 = vst.msk [vmem:[#allocation2 + $0xa8] sm:$0xf] %vm3551, %v3444
      %3595 = vst.msk [vmem:[#allocation2 + $0xac] sm:$0xf] %vm3551, %v3446
      %3596 = vst.msk [vmem:[#allocation2 + $0xb0] sm:$0xf] %vm3551, %v3448
      %3597 = vst.msk [vmem:[#allocation2 + $0xb4] sm:$0xf] %vm3551, %v3450
      %3598 = vst.msk [vmem:[#allocation2 + $0xb8] sm:$0xf] %vm3551, %v3452
      %3599 = vst.msk [vmem:[#allocation2 + $0xbc] sm:$0xf] %vm3551, %v3454
      %3600 = vst.msk [vmem:[#allocation2 + $0xc0] sm:$0xf] %vm3551, %v3456
      %3601 = vst.msk [vmem:[#allocation2 + $0xc4] sm:$0xf] %vm3551, %v3458
      %3602 = vst.msk [vmem:[#allocation2 + $0xc8] sm:$0xf] %vm3551, %v3460
      %3603 = vst.msk [vmem:[#allocation2 + $0xcc] sm:$0xf] %vm3551, %v3462
      %3604 = vst.msk [vmem:[#allocation2 + $0xd0] sm:$0xf] %vm3551, %v3464
      %3605 = vst.msk [vmem:[#allocation2 + $0xd4] sm:$0xf] %vm3551, %v3466
      %3606 = vst.msk [vmem:[#allocation2 + $0xd8] sm:$0xf] %vm3551, %v3468
      %3607 = vst.msk [vmem:[#allocation2 + $0xdc] sm:$0xf] %vm3551, %v3470
      %3608 = vst.msk [vmem:[#allocation2 + $0xe0] sm:$0xf] %vm3551, %v3472
      %3609 = vst.msk [vmem:[#allocation2 + $0xe4] sm:$0xf] %vm3551, %v3474
      %3610 = vst.msk [vmem:[#allocation2 + $0xe8] sm:$0xf] %vm3551, %v3476
      %3611 = vst.msk [vmem:[#allocation2 + $0xec] sm:$0xf] %vm3551, %v3478
      %3612 = vst.msk [vmem:[#allocation2 + $0xf0] sm:$0xf] %vm3551, %v3480
      %3613 = vst.msk [vmem:[#allocation2 + $0xf4] sm:$0xf] %vm3551, %v3482
      %3614 = vst.msk [vmem:[#allocation2 + $0xf8] sm:$0xf] %vm3551, %v3484
      %3615 = vst.msk [vmem:[#allocation2 + $0xfc] sm:$0xf] %vm3551, %v3486
      %v3616 = vld [vmem:[%s2109] sm:$0xe]
      %v3617 = vld [vmem:[%s2109 + $0x4] sm:$0xf]
      %v3618 = vld [vmem:[%s2109 + $0x8] sm:$0x1]
      %v3619 = vld [vmem:[%s2109 + $0xc] sm:$0xe]
      %v3620 = vld [vmem:[%s2109 + $0x10] sm:$0xf]
      %v3621 = vld [vmem:[%s2109 + $0x14] sm:$0x1]
      %v3622 = vld [vmem:[%s2109 + $0x18] sm:$0xe]
      %v3623 = vld [vmem:[%s2109 + $0x1c] sm:$0xf]
      %v3624 = vld [vmem:[%s2109 + $0x20] sm:$0x1]
      %v3625 = vld [vmem:[%s2109 + $0x24] sm:$0xe]
      %v3626 = vld [vmem:[%s2109 + $0x28] sm:$0xf]
      %v3627 = vld [vmem:[%s2109 + $0x2c] sm:$0x1]
      %v3628 = vld [vmem:[%s2109 + $0x30] sm:$0xe]
      %v3629 = vld [vmem:[%s2109 + $0x34] sm:$0xf]
      %v3630 = vld [vmem:[%s2109 + $0x38] sm:$0x1]
      %v3631 = vld [vmem:[%s2109 + $0x3c] sm:$0xe]
      %v3632 = vld [vmem:[%s2109 + $0x40] sm:$0xf]
      %v3633 = vld [vmem:[%s2109 + $0x44] sm:$0x1]
      %v3634 = vld [vmem:[%s2109 + $0x48] sm:$0xe]
      %v3635 = vld [vmem:[%s2109 + $0x4c] sm:$0xf]
      %v3636 = vld [vmem:[%s2109 + $0x50] sm:$0x1]
      %v3637 = vld [vmem:[%s2109 + $0x54] sm:$0xe]
      %v3638 = vld [vmem:[%s2109 + $0x58] sm:$0xf]
      %v3639 = vld [vmem:[%s2109 + $0x5c] sm:$0x1]
      %v3640 = vld [vmem:[%s2109 + $0x60] sm:$0xe]
      %v3641 = vld [vmem:[%s2109 + $0x64] sm:$0xf]
      %v3642 = vld [vmem:[%s2109 + $0x68] sm:$0x1]
      %v3643 = vld [vmem:[%s2109 + $0x6c] sm:$0xe]
      %v3644 = vld [vmem:[%s2109 + $0x70] sm:$0xf]
      %v3645 = vld [vmem:[%s2109 + $0x74] sm:$0x1]
      %v3646 = vld [vmem:[%s2109 + $0x78] sm:$0xe]
      %v3647 = vld [vmem:[%s2109 + $0x7c] sm:$0xf]
      %v3648 = vld [vmem:[%s2109 + $0x80] sm:$0x1]
      %v3649 = vld [vmem:[%s2109 + $0x84] sm:$0xe]
      %v3650 = vld [vmem:[%s2109 + $0x88] sm:$0xf]
      %v3651 = vld [vmem:[%s2109 + $0x8c] sm:$0x1]
      %v3652 = vld [vmem:[%s2109 + $0x90] sm:$0xe]
      %v3653 = vld [vmem:[%s2109 + $0x94] sm:$0xf]
      %v3654 = vld [vmem:[%s2109 + $0x98] sm:$0x1]
      %v3655 = vld [vmem:[%s2109 + $0x9c] sm:$0xe]
      %v3656 = vld [vmem:[%s2109 + $0xa0] sm:$0xf]
      %v3657 = vld [vmem:[%s2109 + $0xa4] sm:$0x1]
      %v3658 = vld [vmem:[%s2109 + $0xa8] sm:$0xe]
      %v3659 = vld [vmem:[%s2109 + $0xac] sm:$0xf]
      %v3660 = vld [vmem:[%s2109 + $0xb0] sm:$0x1]
      %v3661 = vld [vmem:[%s2109 + $0xb4] sm:$0xe]
      %v3662 = vld [vmem:[%s2109 + $0xb8] sm:$0xf]
      %v3663 = vld [vmem:[%s2109 + $0xbc] sm:$0x1]
      %v3664 = vld [vmem:[%s2109 + $0xd8] sm:$0xe]
      %v3665 = vld [vmem:[%s2109 + $0xdc] sm:$0xf]
      %v3666 = vld [vmem:[%s2109 + $0xe0] sm:$0x1]
      %v3667 = vld [vmem:[%s2109 + $0xe4] sm:$0xe]
      %v3668 = vld [vmem:[%s2109 + $0xe8] sm:$0xf]
      %v3669 = vld [vmem:[%s2109 + $0xec] sm:$0x1]
      %v3670 = vld [vmem:[%s2109 + $0xf0] sm:$0xe]
      %v3671 = vld [vmem:[%s2109 + $0xf4] sm:$0xf]
      %v3672 = vld [vmem:[%s2109 + $0xf8] sm:$0x1]
      %v3673 = vld [vmem:[%s2109 + $0xfc] sm:$0xe]
      %v3674 = vld [vmem:[%s2109 + $0x100] sm:$0xf]
      %v3675 = vld [vmem:[%s2109 + $0x104] sm:$0x1]
      %v3676 = vld [vmem:[%s2109 + $0x108] sm:$0xe]
      %v3677 = vld [vmem:[%s2109 + $0x10c] sm:$0xf]
      %v3678 = vld [vmem:[%s2109 + $0x110] sm:$0x1]
      %v3679 = vld [vmem:[%s2109 + $0x114] sm:$0xe]
      %v3680 = vld [vmem:[%s2109 + $0x118] sm:$0xf]
      %v3681 = vld [vmem:[%s2109 + $0x11c] sm:$0x1]
      %v3682 = vld [vmem:[%s2109 + $0x120] sm:$0xe]
      %v3683 = vld [vmem:[%s2109 + $0x124] sm:$0xf]
      %v3684 = vld [vmem:[%s2109 + $0x128] sm:$0x1]
      %v3685 = vld [vmem:[%s2109 + $0x12c] sm:$0xe]
      %v3686 = vld [vmem:[%s2109 + $0x130] sm:$0xf]
      %v3687 = vld [vmem:[%s2109 + $0x134] sm:$0x1]
      %v3688 = vld [vmem:[%s2109 + $0x138] sm:$0xe]
      %v3689 = vld [vmem:[%s2109 + $0x13c] sm:$0xf]
      %v3690 = vld [vmem:[%s2109 + $0x140] sm:$0x1]
      %v3691 = vld [vmem:[%s2109 + $0x144] sm:$0xe]
      %v3692 = vld [vmem:[%s2109 + $0x148] sm:$0xf]
      %v3693 = vld [vmem:[%s2109 + $0x14c] sm:$0x1]
      %v3694 = vld [vmem:[%s2109 + $0x150] sm:$0xe]
      %v3695 = vld [vmem:[%s2109 + $0x154] sm:$0xf]
      %v3696 = vld [vmem:[%s2109 + $0x158] sm:$0x1]
      %v3697 = vld [vmem:[%s2109 + $0x15c] sm:$0xe]
      %v3698 = vld [vmem:[%s2109 + $0x160] sm:$0xf]
      %v3699 = vld [vmem:[%s2109 + $0x164] sm:$0x1]
      %v3700 = vld [vmem:[%s2109 + $0x168] sm:$0xe]
      %v3701 = vld [vmem:[%s2109 + $0x16c] sm:$0xf]
      %v3702 = vld [vmem:[%s2109 + $0x170] sm:$0x1]
      %v3703 = vld [vmem:[%s2109 + $0x174] sm:$0xe]
      %v3704 = vld [vmem:[%s2109 + $0x178] sm:$0xf]
      %v3705 = vld [vmem:[%s2109 + $0x17c] sm:$0x1]
      %v3706 = vld [vmem:[%s2109 + $0x180] sm:$0xe]
      %v3707 = vld [vmem:[%s2109 + $0x184] sm:$0xf]
      %v3708 = vld [vmem:[%s2109 + $0x188] sm:$0x1]
      %v3709 = vld [vmem:[%s2109 + $0x18c] sm:$0xe]
      %v3710 = vld [vmem:[%s2109 + $0x190] sm:$0xf]
      %v3711 = vld [vmem:[%s2109 + $0x194] sm:$0x1]
      %v3808 = vrot.slane %v3616, 5
      %v3809 = vrot.slane %v3808, 4
      %v3810 = vrot.slane %v3617, 5
      %v3811 = vsel %vm1627, %v3809, %v3810
      %v3812 = vrot.slane %v3810, 4
      %v3813 = vrot.slane %v3618, 5
      %v3814 = vsel %vm1627, %v3812, %v3813
      %v3815 = vrot.slane %v3619, 5
      %v3816 = vrot.slane %v3815, 4
      %v3817 = vrot.slane %v3620, 5
      %v3818 = vsel %vm1627, %v3816, %v3817
      %v3819 = vrot.slane %v3817, 4
      %v3820 = vrot.slane %v3621, 5
      %v3821 = vsel %vm1627, %v3819, %v3820
      %v3822 = vrot.slane %v3622, 5
      %v3823 = vrot.slane %v3822, 4
      %v3824 = vrot.slane %v3623, 5
      %v3825 = vsel %vm1627, %v3823, %v3824
      %v3826 = vrot.slane %v3824, 4
      %v3827 = vrot.slane %v3624, 5
      %v3828 = vsel %vm1627, %v3826, %v3827
      %v3829 = vrot.slane %v3625, 5
      %v3830 = vrot.slane %v3829, 4
      %v3831 = vrot.slane %v3626, 5
      %v3832 = vsel %vm1627, %v3830, %v3831
      %v3833 = vrot.slane %v3831, 4
      %v3834 = vrot.slane %v3627, 5
      %v3835 = vsel %vm1627, %v3833, %v3834
      %v3836 = vrot.slane %v3628, 5
      %v3837 = vrot.slane %v3836, 4
      %v3838 = vrot.slane %v3629, 5
      %v3839 = vsel %vm1627, %v3837, %v3838
      %v3840 = vrot.slane %v3838, 4
      %v3841 = vrot.slane %v3630, 5
      %v3842 = vsel %vm1627, %v3840, %v3841
      %v3843 = vrot.slane %v3631, 5
      %v3844 = vrot.slane %v3843, 4
      %v3845 = vrot.slane %v3632, 5
      %v3846 = vsel %vm1627, %v3844, %v3845
      %v3847 = vrot.slane %v3845, 4
      %v3848 = vrot.slane %v3633, 5
      %v3849 = vsel %vm1627, %v3847, %v3848
      %v3850 = vrot.slane %v3634, 5
      %v3851 = vrot.slane %v3850, 4
      %v3852 = vrot.slane %v3635, 5
      %v3853 = vsel %vm1627, %v3851, %v3852
      %v3854 = vrot.slane %v3852, 4
      %v3855 = vrot.slane %v3636, 5
      %v3856 = vsel %vm1627, %v3854, %v3855
      %v3857 = vrot.slane %v3637, 5
      %v3858 = vrot.slane %v3857, 4
      %v3859 = vrot.slane %v3638, 5
      %v3860 = vsel %vm1627, %v3858, %v3859
      %v3861 = vrot.slane %v3859, 4
      %v3862 = vrot.slane %v3639, 5
      %v3863 = vsel %vm1627, %v3861, %v3862
      %v3864 = vrot.slane %v3640, 5
      %v3865 = vrot.slane %v3864, 4
      %v3866 = vrot.slane %v3641, 5
      %v3867 = vsel %vm1627, %v3865, %v3866
      %v3868 = vrot.slane %v3866, 4
      %v3869 = vrot.slane %v3642, 5
      %v3870 = vsel %vm1627, %v3868, %v3869
      %v3871 = vrot.slane %v3643, 5
      %v3872 = vrot.slane %v3871, 4
      %v3873 = vrot.slane %v3644, 5
      %v3874 = vsel %vm1627, %v3872, %v3873
      %v3875 = vrot.slane %v3873, 4
      %v3876 = vrot.slane %v3645, 5
      %v3877 = vsel %vm1627, %v3875, %v3876
      %v3878 = vrot.slane %v3646, 5
      %v3879 = vrot.slane %v3878, 4
      %v3880 = vrot.slane %v3647, 5
      %v3881 = vsel %vm1627, %v3879, %v3880
      %v3882 = vrot.slane %v3880, 4
      %v3883 = vrot.slane %v3648, 5
      %v3884 = vsel %vm1627, %v3882, %v3883
      %v3885 = vrot.slane %v3649, 5
      %v3886 = vrot.slane %v3885, 4
      %v3887 = vrot.slane %v3650, 5
      %v3888 = vsel %vm1627, %v3886, %v3887
      %v3889 = vrot.slane %v3887, 4
      %v3890 = vrot.slane %v3651, 5
      %v3891 = vsel %vm1627, %v3889, %v3890
      %v3892 = vrot.slane %v3652, 5
      %v3893 = vrot.slane %v3892, 4
      %v3894 = vrot.slane %v3653, 5
      %v3895 = vsel %vm1627, %v3893, %v3894
      %v3896 = vrot.slane %v3894, 4
      %v3897 = vrot.slane %v3654, 5
      %v3898 = vsel %vm1627, %v3896, %v3897
      %v3899 = vrot.slane %v3655, 5
      %v3900 = vrot.slane %v3899, 4
      %v3901 = vrot.slane %v3656, 5
      %v3902 = vsel %vm1627, %v3900, %v3901
      %v3903 = vrot.slane %v3901, 4
      %v3904 = vrot.slane %v3657, 5
      %v3905 = vsel %vm1627, %v3903, %v3904
      %v3906 = vrot.slane %v3658, 5
      %v3907 = vrot.slane %v3906, 4
      %v3908 = vrot.slane %v3659, 5
      %v3909 = vsel %vm1627, %v3907, %v3908
      %v3910 = vrot.slane %v3908, 4
      %v3911 = vrot.slane %v3660, 5
      %v3912 = vsel %vm1627, %v3910, %v3911
      %v3913 = vrot.slane %v3661, 5
      %v3914 = vrot.slane %v3913, 4
      %v3915 = vrot.slane %v3662, 5
      %v3916 = vsel %vm1627, %v3914, %v3915
      %v3917 = vrot.slane %v3915, 4
      %v3918 = vrot.slane %v3663, 5
      %v3919 = vsel %vm1627, %v3917, %v3918
      %v3920 = vrot.slane %v3664, 5
      %v3921 = vrot.slane %v3920, 4
      %v3922 = vrot.slane %v3665, 5
      %v3923 = vsel %vm1627, %v3921, %v3922
      %v3924 = vrot.slane %v3922, 4
      %v3925 = vrot.slane %v3666, 5
      %v3926 = vsel %vm1627, %v3924, %v3925
      %v3927 = vrot.slane %v3667, 5
      %v3928 = vrot.slane %v3927, 4
      %v3929 = vrot.slane %v3668, 5
      %v3930 = vsel %vm1627, %v3928, %v3929
      %v3931 = vrot.slane %v3929, 4
      %v3932 = vrot.slane %v3669, 5
      %v3933 = vsel %vm1627, %v3931, %v3932
      %v3934 = vrot.slane %v3670, 5
      %v3935 = vrot.slane %v3934, 4
      %v3936 = vrot.slane %v3671, 5
      %v3937 = vsel %vm1627, %v3935, %v3936
      %v3938 = vrot.slane %v3936, 4
      %v3939 = vrot.slane %v3672, 5
      %v3940 = vsel %vm1627, %v3938, %v3939
      %v3941 = vrot.slane %v3673, 5
      %v3942 = vrot.slane %v3941, 4
      %v3943 = vrot.slane %v3674, 5
      %v3944 = vsel %vm1627, %v3942, %v3943
      %v3945 = vrot.slane %v3943, 4
      %v3946 = vrot.slane %v3675, 5
      %v3947 = vsel %vm1627, %v3945, %v3946
      %v3948 = vrot.slane %v3676, 5
      %v3949 = vrot.slane %v3948, 4
      %v3950 = vrot.slane %v3677, 5
      %v3951 = vsel %vm1627, %v3949, %v3950
      %v3952 = vrot.slane %v3950, 4
      %v3953 = vrot.slane %v3678, 5
      %v3954 = vsel %vm1627, %v3952, %v3953
      %v3955 = vrot.slane %v3679, 5
      %v3956 = vrot.slane %v3955, 4
      %v3957 = vrot.slane %v3680, 5
      %v3958 = vsel %vm1627, %v3956, %v3957
      %v3959 = vrot.slane %v3957, 4
      %v3960 = vrot.slane %v3681, 5
      %v3961 = vsel %vm1627, %v3959, %v3960
      %v3962 = vrot.slane %v3682, 5
      %v3963 = vrot.slane %v3962, 4
      %v3964 = vrot.slane %v3683, 5
      %v3965 = vsel %vm1627, %v3963, %v3964
      %v3966 = vrot.slane %v3964, 4
      %v3967 = vrot.slane %v3684, 5
      %v3968 = vsel %vm1627, %v3966, %v3967
      %v3969 = vrot.slane %v3685, 5
      %v3970 = vrot.slane %v3969, 4
      %v3971 = vrot.slane %v3686, 5
      %v3972 = vsel %vm1627, %v3970, %v3971
      %v3973 = vrot.slane %v3971, 4
      %v3974 = vrot.slane %v3687, 5
      %v3975 = vsel %vm1627, %v3973, %v3974
      %v3976 = vrot.slane %v3688, 5
      %v3977 = vrot.slane %v3976, 4
      %v3978 = vrot.slane %v3689, 5
      %v3979 = vsel %vm1627, %v3977, %v3978
      %v3980 = vrot.slane %v3978, 4
      %v3981 = vrot.slane %v3690, 5
      %v3982 = vsel %vm1627, %v3980, %v3981
      %v3983 = vrot.slane %v3691, 5
      %v3984 = vrot.slane %v3983, 4
      %v3985 = vrot.slane %v3692, 5
      %v3986 = vsel %vm1627, %v3984, %v3985
      %v3987 = vrot.slane %v3985, 4
      %v3988 = vrot.slane %v3693, 5
      %v3989 = vsel %vm1627, %v3987, %v3988
      %v3990 = vrot.slane %v3694, 5
      %v3991 = vrot.slane %v3990, 4
      %v3992 = vrot.slane %v3695, 5
      %v3993 = vsel %vm1627, %v3991, %v3992
      %v3994 = vrot.slane %v3992, 4
      %v3995 = vrot.slane %v3696, 5
      %v3996 = vsel %vm1627, %v3994, %v3995
      %v3997 = vrot.slane %v3697, 5
      %v3998 = vrot.slane %v3997, 4
      %v3999 = vrot.slane %v3698, 5
      %v4000 = vsel %vm1627, %v3998, %v3999
      %v4001 = vrot.slane %v3999, 4
      %v4002 = vrot.slane %v3699, 5
      %v4003 = vsel %vm1627, %v4001, %v4002
      %v4004 = vrot.slane %v3700, 5
      %v4005 = vrot.slane %v4004, 4
      %v4006 = vrot.slane %v3701, 5
      %v4007 = vsel %vm1627, %v4005, %v4006
      %v4008 = vrot.slane %v4006, 4
      %v4009 = vrot.slane %v3702, 5
      %v4010 = vsel %vm1627, %v4008, %v4009
      %v4011 = vrot.slane %v3703, 5
      %v4012 = vrot.slane %v4011, 4
      %v4013 = vrot.slane %v3704, 5
      %v4014 = vsel %vm1627, %v4012, %v4013
      %v4015 = vrot.slane %v4013, 4
      %v4016 = vrot.slane %v3705, 5
      %v4017 = vsel %vm1627, %v4015, %v4016
      %v4018 = vrot.slane %v3706, 5
      %v4019 = vrot.slane %v4018, 4
      %v4020 = vrot.slane %v3707, 5
      %v4021 = vsel %vm1627, %v4019, %v4020
      %v4022 = vrot.slane %v4020, 4
      %v4023 = vrot.slane %v3708, 5
      %v4024 = vsel %vm1627, %v4022, %v4023
      %v4025 = vrot.slane %v3709, 5
      %v4026 = vrot.slane %v4025, 4
      %v4027 = vrot.slane %v3710, 5
      %v4028 = vsel %vm1627, %v4026, %v4027
      %v4029 = vrot.slane %v4027, 4
      %v4030 = vrot.slane %v3711, 5
      %v4031 = vsel %vm1627, %v4029, %v4030
      %4032 = vrot.lane.b32.xlu0 %v3811, 20
      %v4033 = vpop.permute.xlu0 %4032
      %4034 = vrot.lane.b32.xlu0 %v3814, 20
      %v4035 = vpop.permute.xlu0 %4034
      %4036 = vrot.lane.b32.xlu0 %v3818, 20
      %v4037 = vpop.permute.xlu0 %4036
      %4038 = vrot.lane.b32.xlu0 %v3821, 20
      %v4039 = vpop.permute.xlu0 %4038
      %4040 = vrot.lane.b32.xlu0 %v3825, 20
      %v4041 = vpop.permute.xlu0 %4040
      %4042 = vrot.lane.b32.xlu0 %v3828, 20
      %v4043 = vpop.permute.xlu0 %4042
      %4044 = vrot.lane.b32.xlu0 %v3832, 20
      %v4045 = vpop.permute.xlu0 %4044
      %4046 = vrot.lane.b32.xlu0 %v3835, 20
      %v4047 = vpop.permute.xlu0 %4046
      %4048 = vrot.lane.b32.xlu0 %v3839, 20
      %v4049 = vpop.permute.xlu0 %4048
      %4050 = vrot.lane.b32.xlu0 %v3842, 20
      %v4051 = vpop.permute.xlu0 %4050
      %4052 = vrot.lane.b32.xlu0 %v3846, 20
      %v4053 = vpop.permute.xlu0 %4052
      %4054 = vrot.lane.b32.xlu0 %v3849, 20
      %v4055 = vpop.permute.xlu0 %4054
      %4056 = vrot.lane.b32.xlu0 %v3853, 20
      %v4057 = vpop.permute.xlu0 %4056
      %4058 = vrot.lane.b32.xlu0 %v3856, 20
      %v4059 = vpop.permute.xlu0 %4058
      %4060 = vrot.lane.b32.xlu0 %v3860, 20
      %v4061 = vpop.permute.xlu0 %4060
      %4062 = vrot.lane.b32.xlu0 %v3863, 20
      %v4063 = vpop.permute.xlu0 %4062
      %4064 = vrot.lane.b32.xlu0 %v3867, 20
      %v4065 = vpop.permute.xlu0 %4064
      %4066 = vrot.lane.b32.xlu0 %v3870, 20
      %v4067 = vpop.permute.xlu0 %4066
      %4068 = vrot.lane.b32.xlu0 %v3874, 20
      %v4069 = vpop.permute.xlu0 %4068
      %4070 = vrot.lane.b32.xlu0 %v3877, 20
      %v4071 = vpop.permute.xlu0 %4070
      %4072 = vrot.lane.b32.xlu0 %v3881, 20
      %v4073 = vpop.permute.xlu0 %4072
      %4074 = vrot.lane.b32.xlu0 %v3884, 20
      %v4075 = vpop.permute.xlu0 %4074
      %4076 = vrot.lane.b32.xlu0 %v3888, 20
      %v4077 = vpop.permute.xlu0 %4076
      %4078 = vrot.lane.b32.xlu0 %v3891, 20
      %v4079 = vpop.permute.xlu0 %4078
      %4080 = vrot.lane.b32.xlu0 %v3895, 20
      %v4081 = vpop.permute.xlu0 %4080
      %4082 = vrot.lane.b32.xlu0 %v3898, 20
      %v4083 = vpop.permute.xlu0 %4082
      %4084 = vrot.lane.b32.xlu0 %v3902, 20
      %v4085 = vpop.permute.xlu0 %4084
      %4086 = vrot.lane.b32.xlu0 %v3905, 20
      %v4087 = vpop.permute.xlu0 %4086
      %4088 = vrot.lane.b32.xlu0 %v3909, 20
      %v4089 = vpop.permute.xlu0 %4088
      %4090 = vrot.lane.b32.xlu0 %v3912, 20
      %v4091 = vpop.permute.xlu0 %4090
      %4092 = vrot.lane.b32.xlu0 %v3916, 20
      %v4093 = vpop.permute.xlu0 %4092
      %4094 = vrot.lane.b32.xlu0 %v3919, 20
      %v4095 = vpop.permute.xlu0 %4094
      %4096 = vrot.lane.b32.xlu0 %v3923, 20
      %v4097 = vpop.permute.xlu0 %4096
      %4098 = vrot.lane.b32.xlu0 %v3926, 20
      %v4099 = vpop.permute.xlu0 %4098
      %4100 = vrot.lane.b32.xlu0 %v3930, 20
      %v4101 = vpop.permute.xlu0 %4100
      %4102 = vrot.lane.b32.xlu0 %v3933, 20
      %v4103 = vpop.permute.xlu0 %4102
      %4104 = vrot.lane.b32.xlu0 %v3937, 20
      %v4105 = vpop.permute.xlu0 %4104
      %4106 = vrot.lane.b32.xlu0 %v3940, 20
      %v4107 = vpop.permute.xlu0 %4106
      %4108 = vrot.lane.b32.xlu0 %v3944, 20
      %v4109 = vpop.permute.xlu0 %4108
      %4110 = vrot.lane.b32.xlu0 %v3947, 20
      %v4111 = vpop.permute.xlu0 %4110
      %4112 = vrot.lane.b32.xlu0 %v3951, 20
      %v4113 = vpop.permute.xlu0 %4112
      %4114 = vrot.lane.b32.xlu0 %v3954, 20
      %v4115 = vpop.permute.xlu0 %4114
      %4116 = vrot.lane.b32.xlu0 %v3958, 20
      %v4117 = vpop.permute.xlu0 %4116
      %4118 = vrot.lane.b32.xlu0 %v3961, 20
      %v4119 = vpop.permute.xlu0 %4118
      %4120 = vrot.lane.b32.xlu0 %v3965, 20
      %v4121 = vpop.permute.xlu0 %4120
      %4122 = vrot.lane.b32.xlu0 %v3968, 20
      %v4123 = vpop.permute.xlu0 %4122
      %4124 = vrot.lane.b32.xlu0 %v3972, 20
      %v4125 = vpop.permute.xlu0 %4124
      %4126 = vrot.lane.b32.xlu0 %v3975, 20
      %v4127 = vpop.permute.xlu0 %4126
      %4128 = vrot.lane.b32.xlu0 %v3979, 20
      %v4129 = vpop.permute.xlu0 %4128
      %4130 = vrot.lane.b32.xlu0 %v3982, 20
      %v4131 = vpop.permute.xlu0 %4130
      %4132 = vrot.lane.b32.xlu0 %v3986, 20
      %v4133 = vpop.permute.xlu0 %4132
      %4134 = vrot.lane.b32.xlu0 %v3989, 20
      %v4135 = vpop.permute.xlu0 %4134
      %4136 = vrot.lane.b32.xlu0 %v3993, 20
      %v4137 = vpop.permute.xlu0 %4136
      %4138 = vrot.lane.b32.xlu0 %v3996, 20
      %v4139 = vpop.permute.xlu0 %4138
      %4140 = vrot.lane.b32.xlu0 %v4000, 20
      %v4141 = vpop.permute.xlu0 %4140
      %4142 = vrot.lane.b32.xlu0 %v4003, 20
      %v4143 = vpop.permute.xlu0 %4142
      %4144 = vrot.lane.b32.xlu0 %v4007, 20
      %v4145 = vpop.permute.xlu0 %4144
      %4146 = vrot.lane.b32.xlu0 %v4010, 20
      %v4147 = vpop.permute.xlu0 %4146
      %4148 = vrot.lane.b32.xlu0 %v4014, 20
      %v4149 = vpop.permute.xlu0 %4148
      %4150 = vrot.lane.b32.xlu0 %v4017, 20
      %v4151 = vpop.permute.xlu0 %4150
      %4152 = vrot.lane.b32.xlu0 %v4021, 20
      %v4153 = vpop.permute.xlu0 %4152
      %4154 = vrot.lane.b32.xlu0 %v4024, 20
      %v4155 = vpop.permute.xlu0 %4154
      %4156 = vrot.lane.b32.xlu0 %v4028, 20
      %v4157 = vpop.permute.xlu0 %4156
      %4158 = vrot.lane.b32.xlu0 %v4031, 20
      %v4159 = vpop.permute.xlu0 %4158
      %vm4224 = vcmask 191648
      %4225 = vst.msk [vmem:[#allocation2] sm:$0xf] %vm4224, %v4033
      %4226 = vst.msk [vmem:[#allocation2 + $0x4] sm:$0xf] %vm4224, %v4035
      %4227 = vst.msk [vmem:[#allocation2 + $0x8] sm:$0xf] %vm4224, %v4037
      %4228 = vst.msk [vmem:[#allocation2 + $0xc] sm:$0xf] %vm4224, %v4039
      %4229 = vst.msk [vmem:[#allocation2 + $0x10] sm:$0xf] %vm4224, %v4041
      %4230 = vst.msk [vmem:[#allocation2 + $0x14] sm:$0xf] %vm4224, %v4043
      %4231 = vst.msk [vmem:[#allocation2 + $0x18] sm:$0xf] %vm4224, %v4045
      %4232 = vst.msk [vmem:[#allocation2 + $0x1c] sm:$0xf] %vm4224, %v4047
      %4233 = vst.msk [vmem:[#allocation2 + $0x20] sm:$0xf] %vm4224, %v4049
      %4234 = vst.msk [vmem:[#allocation2 + $0x24] sm:$0xf] %vm4224, %v4051
      %4235 = vst.msk [vmem:[#allocation2 + $0x28] sm:$0xf] %vm4224, %v4053
      %4236 = vst.msk [vmem:[#allocation2 + $0x2c] sm:$0xf] %vm4224, %v4055
      %4237 = vst.msk [vmem:[#allocation2 + $0x30] sm:$0xf] %vm4224, %v4057
      %4238 = vst.msk [vmem:[#allocation2 + $0x34] sm:$0xf] %vm4224, %v4059
      %4239 = vst.msk [vmem:[#allocation2 + $0x38] sm:$0xf] %vm4224, %v4061
      %4240 = vst.msk [vmem:[#allocation2 + $0x3c] sm:$0xf] %vm4224, %v4063
      %4241 = vst.msk [vmem:[#allocation2 + $0x40] sm:$0xf] %vm4224, %v4065
      %4242 = vst.msk [vmem:[#allocation2 + $0x44] sm:$0xf] %vm4224, %v4067
      %4243 = vst.msk [vmem:[#allocation2 + $0x48] sm:$0xf] %vm4224, %v4069
      %4244 = vst.msk [vmem:[#allocation2 + $0x4c] sm:$0xf] %vm4224, %v4071
      %4245 = vst.msk [vmem:[#allocation2 + $0x50] sm:$0xf] %vm4224, %v4073
      %4246 = vst.msk [vmem:[#allocation2 + $0x54] sm:$0xf] %vm4224, %v4075
      %4247 = vst.msk [vmem:[#allocation2 + $0x58] sm:$0xf] %vm4224, %v4077
      %4248 = vst.msk [vmem:[#allocation2 + $0x5c] sm:$0xf] %vm4224, %v4079
      %4249 = vst.msk [vmem:[#allocation2 + $0x60] sm:$0xf] %vm4224, %v4081
      %4250 = vst.msk [vmem:[#allocation2 + $0x64] sm:$0xf] %vm4224, %v4083
      %4251 = vst.msk [vmem:[#allocation2 + $0x68] sm:$0xf] %vm4224, %v4085
      %4252 = vst.msk [vmem:[#allocation2 + $0x6c] sm:$0xf] %vm4224, %v4087
      %4253 = vst.msk [vmem:[#allocation2 + $0x70] sm:$0xf] %vm4224, %v4089
      %4254 = vst.msk [vmem:[#allocation2 + $0x74] sm:$0xf] %vm4224, %v4091
      %4255 = vst.msk [vmem:[#allocation2 + $0x78] sm:$0xf] %vm4224, %v4093
      %4256 = vst.msk [vmem:[#allocation2 + $0x7c] sm:$0xf] %vm4224, %v4095
      %4257 = vst.msk [vmem:[#allocation2 + $0x80] sm:$0xf] %vm4224, %v4097
      %4258 = vst.msk [vmem:[#allocation2 + $0x84] sm:$0xf] %vm4224, %v4099
      %4259 = vst.msk [vmem:[#allocation2 + $0x88] sm:$0xf] %vm4224, %v4101
      %4260 = vst.msk [vmem:[#allocation2 + $0x8c] sm:$0xf] %vm4224, %v4103
      %4261 = vst.msk [vmem:[#allocation2 + $0x90] sm:$0xf] %vm4224, %v4105
      %4262 = vst.msk [vmem:[#allocation2 + $0x94] sm:$0xf] %vm4224, %v4107
      %4263 = vst.msk [vmem:[#allocation2 + $0x98] sm:$0xf] %vm4224, %v4109
      %4264 = vst.msk [vmem:[#allocation2 + $0x9c] sm:$0xf] %vm4224, %v4111
      %4265 = vst.msk [vmem:[#allocation2 + $0xa0] sm:$0xf] %vm4224, %v4113
      %4266 = vst.msk [vmem:[#allocation2 + $0xa4] sm:$0xf] %vm4224, %v4115
      %4267 = vst.msk [vmem:[#allocation2 + $0xa8] sm:$0xf] %vm4224, %v4117
      %4268 = vst.msk [vmem:[#allocation2 + $0xac] sm:$0xf] %vm4224, %v4119
      %4269 = vst.msk [vmem:[#allocation2 + $0xb0] sm:$0xf] %vm4224, %v4121
      %4270 = vst.msk [vmem:[#allocation2 + $0xb4] sm:$0xf] %vm4224, %v4123
      %4271 = vst.msk [vmem:[#allocation2 + $0xb8] sm:$0xf] %vm4224, %v4125
      %4272 = vst.msk [vmem:[#allocation2 + $0xbc] sm:$0xf] %vm4224, %v4127
      %4273 = vst.msk [vmem:[#allocation2 + $0xc0] sm:$0xf] %vm4224, %v4129
      %4274 = vst.msk [vmem:[#allocation2 + $0xc4] sm:$0xf] %vm4224, %v4131
      %4275 = vst.msk [vmem:[#allocation2 + $0xc8] sm:$0xf] %vm4224, %v4133
      %4276 = vst.msk [vmem:[#allocation2 + $0xcc] sm:$0xf] %vm4224, %v4135
      %4277 = vst.msk [vmem:[#allocation2 + $0xd0] sm:$0xf] %vm4224, %v4137
      %4278 = vst.msk [vmem:[#allocation2 + $0xd4] sm:$0xf] %vm4224, %v4139
      %4279 = vst.msk [vmem:[#allocation2 + $0xd8] sm:$0xf] %vm4224, %v4141
      %4280 = vst.msk [vmem:[#allocation2 + $0xdc] sm:$0xf] %vm4224, %v4143
      %4281 = vst.msk [vmem:[#allocation2 + $0xe0] sm:$0xf] %vm4224, %v4145
      %4282 = vst.msk [vmem:[#allocation2 + $0xe4] sm:$0xf] %vm4224, %v4147
      %4283 = vst.msk [vmem:[#allocation2 + $0xe8] sm:$0xf] %vm4224, %v4149
      %4284 = vst.msk [vmem:[#allocation2 + $0xec] sm:$0xf] %vm4224, %v4151
      %4285 = vst.msk [vmem:[#allocation2 + $0xf0] sm:$0xf] %vm4224, %v4153
      %4286 = vst.msk [vmem:[#allocation2 + $0xf4] sm:$0xf] %vm4224, %v4155
      %4287 = vst.msk [vmem:[#allocation2 + $0xf8] sm:$0xf] %vm4224, %v4157
      %4288 = vst.msk [vmem:[#allocation2 + $0xfc] sm:$0xf] %vm4224, %v4159
      %s4289 = scalar_lea.vmem %s170, 24
      %v4290 = vld [vmem:[%s4289] sm:$0xf]
      %v4291 = vld [vmem:[%s4289 + $0x4] sm:$0xf]
      %v4292 = vld [vmem:[%s4289 + $0xc] sm:$0xf]
      %v4293 = vld [vmem:[%s4289 + $0x10] sm:$0xf]
      %v4294 = vld [vmem:[%s4289 + $0x18] sm:$0xf]
      %v4295 = vld [vmem:[%s4289 + $0x1c] sm:$0xf]
      %v4296 = vld [vmem:[%s4289 + $0x24] sm:$0xf]
      %v4297 = vld [vmem:[%s4289 + $0x28] sm:$0xf]
      %v4298 = vld [vmem:[%s4289 + $0x30] sm:$0xf]
      %v4299 = vld [vmem:[%s4289 + $0x34] sm:$0xf]
      %v4300 = vld [vmem:[%s4289 + $0x3c] sm:$0xf]
      %v4301 = vld [vmem:[%s4289 + $0x40] sm:$0xf]
      %v4302 = vld [vmem:[%s4289 + $0x48] sm:$0xf]
      %v4303 = vld [vmem:[%s4289 + $0x4c] sm:$0xf]
      %v4304 = vld [vmem:[%s4289 + $0x54] sm:$0xf]
      %v4305 = vld [vmem:[%s4289 + $0x58] sm:$0xf]
      %v4306 = vld [vmem:[%s4289 + $0x60] sm:$0xf]
      %v4307 = vld [vmem:[%s4289 + $0x64] sm:$0xf]
      %v4308 = vld [vmem:[%s4289 + $0x6c] sm:$0xf]
      %v4309 = vld [vmem:[%s4289 + $0x70] sm:$0xf]
      %v4310 = vld [vmem:[%s4289 + $0x78] sm:$0xf]
      %v4311 = vld [vmem:[%s4289 + $0x7c] sm:$0xf]
      %v4312 = vld [vmem:[%s4289 + $0x84] sm:$0xf]
      %v4313 = vld [vmem:[%s4289 + $0x88] sm:$0xf]
      %v4314 = vld [vmem:[%s4289 + $0x90] sm:$0xf]
      %v4315 = vld [vmem:[%s4289 + $0x94] sm:$0xf]
      %v4316 = vld [vmem:[%s4289 + $0x9c] sm:$0xf]
      %v4317 = vld [vmem:[%s4289 + $0xa0] sm:$0xf]
      %v4318 = vld [vmem:[%s4289 + $0xa8] sm:$0xf]
      %v4319 = vld [vmem:[%s4289 + $0xac] sm:$0xf]
      %v4320 = vld [vmem:[%s4289 + $0xb4] sm:$0xf]
      %v4321 = vld [vmem:[%s4289 + $0xb8] sm:$0xf]
      %v4322 = vld [vmem:[%s4289 + $0xd8] sm:$0xf]
      %v4323 = vld [vmem:[%s4289 + $0xdc] sm:$0xf]
      %v4324 = vld [vmem:[%s4289 + $0xe4] sm:$0xf]
      %v4325 = vld [vmem:[%s4289 + $0xe8] sm:$0xf]
      %v4326 = vld [vmem:[%s4289 + $0xf0] sm:$0xf]
      %v4327 = vld [vmem:[%s4289 + $0xf4] sm:$0xf]
      %v4328 = vld [vmem:[%s4289 + $0xfc] sm:$0xf]
      %v4329 = vld [vmem:[%s4289 + $0x100] sm:$0xf]
      %v4330 = vld [vmem:[%s4289 + $0x108] sm:$0xf]
      %v4331 = vld [vmem:[%s4289 + $0x10c] sm:$0xf]
      %v4332 = vld [vmem:[%s4289 + $0x114] sm:$0xf]
      %v4333 = vld [vmem:[%s4289 + $0x118] sm:$0xf]
      %v4334 = vld [vmem:[%s4289 + $0x120] sm:$0xf]
      %v4335 = vld [vmem:[%s4289 + $0x124] sm:$0xf]
      %v4336 = vld [vmem:[%s4289 + $0x12c] sm:$0xf]
      %v4337 = vld [vmem:[%s4289 + $0x130] sm:$0xf]
      %v4338 = vld [vmem:[%s4289 + $0x138] sm:$0xf]
      %v4339 = vld [vmem:[%s4289 + $0x13c] sm:$0xf]
      %v4340 = vld [vmem:[%s4289 + $0x144] sm:$0xf]
      %v4341 = vld [vmem:[%s4289 + $0x148] sm:$0xf]
      %v4342 = vld [vmem:[%s4289 + $0x150] sm:$0xf]
      %v4343 = vld [vmem:[%s4289 + $0x154] sm:$0xf]
      %v4344 = vld [vmem:[%s4289 + $0x15c] sm:$0xf]
      %v4345 = vld [vmem:[%s4289 + $0x160] sm:$0xf]
      %v4346 = vld [vmem:[%s4289 + $0x168] sm:$0xf]
      %v4347 = vld [vmem:[%s4289 + $0x16c] sm:$0xf]
      %v4348 = vld [vmem:[%s4289 + $0x174] sm:$0xf]
      %v4349 = vld [vmem:[%s4289 + $0x178] sm:$0xf]
      %v4350 = vld [vmem:[%s4289 + $0x180] sm:$0xf]
      %v4351 = vld [vmem:[%s4289 + $0x184] sm:$0xf]
      %v4352 = vld [vmem:[%s4289 + $0x18c] sm:$0xf]
      %v4353 = vld [vmem:[%s4289 + $0x190] sm:$0xf]
      %4418 = vrot.lane.b32.xlu0 %v4290, 24
      %v4419 = vpop.permute.xlu0 %4418
      %4420 = vrot.lane.b32.xlu0 %v4291, 24
      %v4421 = vpop.permute.xlu0 %4420
      %4422 = vrot.lane.b32.xlu0 %v4292, 24
      %v4423 = vpop.permute.xlu0 %4422
      %4424 = vrot.lane.b32.xlu0 %v4293, 24
      %v4425 = vpop.permute.xlu0 %4424
      %4426 = vrot.lane.b32.xlu0 %v4294, 24
      %v4427 = vpop.permute.xlu0 %4426
      %4428 = vrot.lane.b32.xlu0 %v4295, 24
      %v4429 = vpop.permute.xlu0 %4428
      %4430 = vrot.lane.b32.xlu0 %v4296, 24
      %v4431 = vpop.permute.xlu0 %4430
      %4432 = vrot.lane.b32.xlu0 %v4297, 24
      %v4433 = vpop.permute.xlu0 %4432
      %4434 = vrot.lane.b32.xlu0 %v4298, 24
      %v4435 = vpop.permute.xlu0 %4434
      %4436 = vrot.lane.b32.xlu0 %v4299, 24
      %v4437 = vpop.permute.xlu0 %4436
      %4438 = vrot.lane.b32.xlu0 %v4300, 24
      %v4439 = vpop.permute.xlu0 %4438
      %4440 = vrot.lane.b32.xlu0 %v4301, 24
      %v4441 = vpop.permute.xlu0 %4440
      %4442 = vrot.lane.b32.xlu0 %v4302, 24
      %v4443 = vpop.permute.xlu0 %4442
      %4444 = vrot.lane.b32.xlu0 %v4303, 24
      %v4445 = vpop.permute.xlu0 %4444
      %4446 = vrot.lane.b32.xlu0 %v4304, 24
      %v4447 = vpop.permute.xlu0 %4446
      %4448 = vrot.lane.b32.xlu0 %v4305, 24
      %v4449 = vpop.permute.xlu0 %4448
      %4450 = vrot.lane.b32.xlu0 %v4306, 24
      %v4451 = vpop.permute.xlu0 %4450
      %4452 = vrot.lane.b32.xlu0 %v4307, 24
      %v4453 = vpop.permute.xlu0 %4452
      %4454 = vrot.lane.b32.xlu0 %v4308, 24
      %v4455 = vpop.permute.xlu0 %4454
      %4456 = vrot.lane.b32.xlu0 %v4309, 24
      %v4457 = vpop.permute.xlu0 %4456
      %4458 = vrot.lane.b32.xlu0 %v4310, 24
      %v4459 = vpop.permute.xlu0 %4458
      %4460 = vrot.lane.b32.xlu0 %v4311, 24
      %v4461 = vpop.permute.xlu0 %4460
      %4462 = vrot.lane.b32.xlu0 %v4312, 24
      %v4463 = vpop.permute.xlu0 %4462
      %4464 = vrot.lane.b32.xlu0 %v4313, 24
      %v4465 = vpop.permute.xlu0 %4464
      %4466 = vrot.lane.b32.xlu0 %v4314, 24
      %v4467 = vpop.permute.xlu0 %4466
      %4468 = vrot.lane.b32.xlu0 %v4315, 24
      %v4469 = vpop.permute.xlu0 %4468
      %4470 = vrot.lane.b32.xlu0 %v4316, 24
      %v4471 = vpop.permute.xlu0 %4470
      %4472 = vrot.lane.b32.xlu0 %v4317, 24
      %v4473 = vpop.permute.xlu0 %4472
      %4474 = vrot.lane.b32.xlu0 %v4318, 24
      %v4475 = vpop.permute.xlu0 %4474
      %4476 = vrot.lane.b32.xlu0 %v4319, 24
      %v4477 = vpop.permute.xlu0 %4476
      %4478 = vrot.lane.b32.xlu0 %v4320, 24
      %v4479 = vpop.permute.xlu0 %4478
      %4480 = vrot.lane.b32.xlu0 %v4321, 24
      %v4481 = vpop.permute.xlu0 %4480
      %4482 = vrot.lane.b32.xlu0 %v4322, 24
      %v4483 = vpop.permute.xlu0 %4482
      %4484 = vrot.lane.b32.xlu0 %v4323, 24
      %v4485 = vpop.permute.xlu0 %4484
      %4486 = vrot.lane.b32.xlu0 %v4324, 24
      %v4487 = vpop.permute.xlu0 %4486
      %4488 = vrot.lane.b32.xlu0 %v4325, 24
      %v4489 = vpop.permute.xlu0 %4488
      %4490 = vrot.lane.b32.xlu0 %v4326, 24
      %v4491 = vpop.permute.xlu0 %4490
      %4492 = vrot.lane.b32.xlu0 %v4327, 24
      %v4493 = vpop.permute.xlu0 %4492
      %4494 = vrot.lane.b32.xlu0 %v4328, 24
      %v4495 = vpop.permute.xlu0 %4494
      %4496 = vrot.lane.b32.xlu0 %v4329, 24
      %v4497 = vpop.permute.xlu0 %4496
      %4498 = vrot.lane.b32.xlu0 %v4330, 24
      %v4499 = vpop.permute.xlu0 %4498
      %4500 = vrot.lane.b32.xlu0 %v4331, 24
      %v4501 = vpop.permute.xlu0 %4500
      %4502 = vrot.lane.b32.xlu0 %v4332, 24
      %v4503 = vpop.permute.xlu0 %4502
      %4504 = vrot.lane.b32.xlu0 %v4333, 24
      %v4505 = vpop.permute.xlu0 %4504
      %4506 = vrot.lane.b32.xlu0 %v4334, 24
      %v4507 = vpop.permute.xlu0 %4506
      %4508 = vrot.lane.b32.xlu0 %v4335, 24
      %v4509 = vpop.permute.xlu0 %4508
      %4510 = vrot.lane.b32.xlu0 %v4336, 24
      %v4511 = vpop.permute.xlu0 %4510
      %4512 = vrot.lane.b32.xlu0 %v4337, 24
      %v4513 = vpop.permute.xlu0 %4512
      %4514 = vrot.lane.b32.xlu0 %v4338, 24
      %v4515 = vpop.permute.xlu0 %4514
      %4516 = vrot.lane.b32.xlu0 %v4339, 24
      %v4517 = vpop.permute.xlu0 %4516
      %4518 = vrot.lane.b32.xlu0 %v4340, 24
      %v4519 = vpop.permute.xlu0 %4518
      %4520 = vrot.lane.b32.xlu0 %v4341, 24
      %v4521 = vpop.permute.xlu0 %4520
      %4522 = vrot.lane.b32.xlu0 %v4342, 24
      %v4523 = vpop.permute.xlu0 %4522
      %4524 = vrot.lane.b32.xlu0 %v4343, 24
      %v4525 = vpop.permute.xlu0 %4524
      %4526 = vrot.lane.b32.xlu0 %v4344, 24
      %v4527 = vpop.permute.xlu0 %4526
      %4528 = vrot.lane.b32.xlu0 %v4345, 24
      %v4529 = vpop.permute.xlu0 %4528
      %4530 = vrot.lane.b32.xlu0 %v4346, 24
      %v4531 = vpop.permute.xlu0 %4530
      %4532 = vrot.lane.b32.xlu0 %v4347, 24
      %v4533 = vpop.permute.xlu0 %4532
      %4534 = vrot.lane.b32.xlu0 %v4348, 24
      %v4535 = vpop.permute.xlu0 %4534
      %4536 = vrot.lane.b32.xlu0 %v4349, 24
      %v4537 = vpop.permute.xlu0 %4536
      %4538 = vrot.lane.b32.xlu0 %v4350, 24
      %v4539 = vpop.permute.xlu0 %4538
      %4540 = vrot.lane.b32.xlu0 %v4351, 24
      %v4541 = vpop.permute.xlu0 %4540
      %4542 = vrot.lane.b32.xlu0 %v4352, 24
      %v4543 = vpop.permute.xlu0 %4542
      %4544 = vrot.lane.b32.xlu0 %v4353, 24
      %v4545 = vpop.permute.xlu0 %4544
      %vm4610 = vcmask 224448
      %4611 = vst.msk [vmem:[#allocation2] sm:$0xf] %vm4610, %v4419
      %4612 = vst.msk [vmem:[#allocation2 + $0x4] sm:$0xf] %vm4610, %v4421
      %4613 = vst.msk [vmem:[#allocation2 + $0x8] sm:$0xf] %vm4610, %v4423
      %4614 = vst.msk [vmem:[#allocation2 + $0xc] sm:$0xf] %vm4610, %v4425
      %4615 = vst.msk [vmem:[#allocation2 + $0x10] sm:$0xf] %vm4610, %v4427
      %4616 = vst.msk [vmem:[#allocation2 + $0x14] sm:$0xf] %vm4610, %v4429
      %4617 = vst.msk [vmem:[#allocation2 + $0x18] sm:$0xf] %vm4610, %v4431
      %4618 = vst.msk [vmem:[#allocation2 + $0x1c] sm:$0xf] %vm4610, %v4433
      %4619 = vst.msk [vmem:[#allocation2 + $0x20] sm:$0xf] %vm4610, %v4435
      %4620 = vst.msk [vmem:[#allocation2 + $0x24] sm:$0xf] %vm4610, %v4437
      %4621 = vst.msk [vmem:[#allocation2 + $0x28] sm:$0xf] %vm4610, %v4439
      %4622 = vst.msk [vmem:[#allocation2 + $0x2c] sm:$0xf] %vm4610, %v4441
      %4623 = vst.msk [vmem:[#allocation2 + $0x30] sm:$0xf] %vm4610, %v4443
      %4624 = vst.msk [vmem:[#allocation2 + $0x34] sm:$0xf] %vm4610, %v4445
      %4625 = vst.msk [vmem:[#allocation2 + $0x38] sm:$0xf] %vm4610, %v4447
      %4626 = vst.msk [vmem:[#allocation2 + $0x3c] sm:$0xf] %vm4610, %v4449
      %4627 = vst.msk [vmem:[#allocation2 + $0x40] sm:$0xf] %vm4610, %v4451
      %4628 = vst.msk [vmem:[#allocation2 + $0x44] sm:$0xf] %vm4610, %v4453
      %4629 = vst.msk [vmem:[#allocation2 + $0x48] sm:$0xf] %vm4610, %v4455
      %4630 = vst.msk [vmem:[#allocation2 + $0x4c] sm:$0xf] %vm4610, %v4457
      %4631 = vst.msk [vmem:[#allocation2 + $0x50] sm:$0xf] %vm4610, %v4459
      %4632 = vst.msk [vmem:[#allocation2 + $0x54] sm:$0xf] %vm4610, %v4461
      %4633 = vst.msk [vmem:[#allocation2 + $0x58] sm:$0xf] %vm4610, %v4463
      %4634 = vst.msk [vmem:[#allocation2 + $0x5c] sm:$0xf] %vm4610, %v4465
      %4635 = vst.msk [vmem:[#allocation2 + $0x60] sm:$0xf] %vm4610, %v4467
      %4636 = vst.msk [vmem:[#allocation2 + $0x64] sm:$0xf] %vm4610, %v4469
      %4637 = vst.msk [vmem:[#allocation2 + $0x68] sm:$0xf] %vm4610, %v4471
      %4638 = vst.msk [vmem:[#allocation2 + $0x6c] sm:$0xf] %vm4610, %v4473
      %4639 = vst.msk [vmem:[#allocation2 + $0x70] sm:$0xf] %vm4610, %v4475
      %4640 = vst.msk [vmem:[#allocation2 + $0x74] sm:$0xf] %vm4610, %v4477
      %4641 = vst.msk [vmem:[#allocation2 + $0x78] sm:$0xf] %vm4610, %v4479
      %4642 = vst.msk [vmem:[#allocation2 + $0x7c] sm:$0xf] %vm4610, %v4481
      %4643 = vst.msk [vmem:[#allocation2 + $0x80] sm:$0xf] %vm4610, %v4483
      %4644 = vst.msk [vmem:[#allocation2 + $0x84] sm:$0xf] %vm4610, %v4485
      %4645 = vst.msk [vmem:[#allocation2 + $0x88] sm:$0xf] %vm4610, %v4487
      %4646 = vst.msk [vmem:[#allocation2 + $0x8c] sm:$0xf] %vm4610, %v4489
      %4647 = vst.msk [vmem:[#allocation2 + $0x90] sm:$0xf] %vm4610, %v4491
      %4648 = vst.msk [vmem:[#allocation2 + $0x94] sm:$0xf] %vm4610, %v4493
      %4649 = vst.msk [vmem:[#allocation2 + $0x98] sm:$0xf] %vm4610, %v4495
      %4650 = vst.msk [vmem:[#allocation2 + $0x9c] sm:$0xf] %vm4610, %v4497
      %4651 = vst.msk [vmem:[#allocation2 + $0xa0] sm:$0xf] %vm4610, %v4499
      %4652 = vst.msk [vmem:[#allocation2 + $0xa4] sm:$0xf] %vm4610, %v4501
      %4653 = vst.msk [vmem:[#allocation2 + $0xa8] sm:$0xf] %vm4610, %v4503
      %4654 = vst.msk [vmem:[#allocation2 + $0xac] sm:$0xf] %vm4610, %v4505
      %4655 = vst.msk [vmem:[#allocation2 + $0xb0] sm:$0xf] %vm4610, %v4507
      %4656 = vst.msk [vmem:[#allocation2 + $0xb4] sm:$0xf] %vm4610, %v4509
      %4657 = vst.msk [vmem:[#allocation2 + $0xb8] sm:$0xf] %vm4610, %v4511
      %4658 = vst.msk [vmem:[#allocation2 + $0xbc] sm:$0xf] %vm4610, %v4513
      %4659 = vst.msk [vmem:[#allocation2 + $0xc0] sm:$0xf] %vm4610, %v4515
      %4660 = vst.msk [vmem:[#allocation2 + $0xc4] sm:$0xf] %vm4610, %v4517
      %4661 = vst.msk [vmem:[#allocation2 + $0xc8] sm:$0xf] %vm4610, %v4519
      %4662 = vst.msk [vmem:[#allocation2 + $0xcc] sm:$0xf] %vm4610, %v4521
      %4663 = vst.msk [vmem:[#allocation2 + $0xd0] sm:$0xf] %vm4610, %v4523
      %4664 = vst.msk [vmem:[#allocation2 + $0xd4] sm:$0xf] %vm4610, %v4525
      %4665 = vst.msk [vmem:[#allocation2 + $0xd8] sm:$0xf] %vm4610, %v4527
      %4666 = vst.msk [vmem:[#allocation2 + $0xdc] sm:$0xf] %vm4610, %v4529
      %4667 = vst.msk [vmem:[#allocation2 + $0xe0] sm:$0xf] %vm4610, %v4531
      %4668 = vst.msk [vmem:[#allocation2 + $0xe4] sm:$0xf] %vm4610, %v4533
      %4669 = vst.msk [vmem:[#allocation2 + $0xe8] sm:$0xf] %vm4610, %v4535
      %4670 = vst.msk [vmem:[#allocation2 + $0xec] sm:$0xf] %vm4610, %v4537
      %4671 = vst.msk [vmem:[#allocation2 + $0xf0] sm:$0xf] %vm4610, %v4539
      %4672 = vst.msk [vmem:[#allocation2 + $0xf4] sm:$0xf] %vm4610, %v4541
      %4673 = vst.msk [vmem:[#allocation2 + $0xf8] sm:$0xf] %vm4610, %v4543
      %4674 = vst.msk [vmem:[#allocation2 + $0xfc] sm:$0xf] %vm4610, %v4545
      %v4675 = vld [vmem:[%s4289] sm:$0xf]
      %v4676 = vld [vmem:[%s4289 + $0x4] sm:$0xf]
      %v4677 = vld [vmem:[%s4289 + $0x8] sm:$0x1]
      %v4678 = vld [vmem:[%s4289 + $0xc] sm:$0xf]
      %v4679 = vld [vmem:[%s4289 + $0x10] sm:$0xf]
      %v4680 = vld [vmem:[%s4289 + $0x14] sm:$0x1]
      %v4681 = vld [vmem:[%s4289 + $0x18] sm:$0xf]
      %v4682 = vld [vmem:[%s4289 + $0x1c] sm:$0xf]
      %v4683 = vld [vmem:[%s4289 + $0x20] sm:$0x1]
      %v4684 = vld [vmem:[%s4289 + $0x24] sm:$0xf]
      %v4685 = vld [vmem:[%s4289 + $0x28] sm:$0xf]
      %v4686 = vld [vmem:[%s4289 + $0x2c] sm:$0x1]
      %v4687 = vld [vmem:[%s4289 + $0x30] sm:$0xf]
      %v4688 = vld [vmem:[%s4289 + $0x34] sm:$0xf]
      %v4689 = vld [vmem:[%s4289 + $0x38] sm:$0x1]
      %v4690 = vld [vmem:[%s4289 + $0x3c] sm:$0xf]
      %v4691 = vld [vmem:[%s4289 + $0x40] sm:$0xf]
      %v4692 = vld [vmem:[%s4289 + $0x44] sm:$0x1]
      %v4693 = vld [vmem:[%s4289 + $0x48] sm:$0xf]
      %v4694 = vld [vmem:[%s4289 + $0x4c] sm:$0xf]
      %v4695 = vld [vmem:[%s4289 + $0x50] sm:$0x1]
      %v4696 = vld [vmem:[%s4289 + $0x54] sm:$0xf]
      %v4697 = vld [vmem:[%s4289 + $0x58] sm:$0xf]
      %v4698 = vld [vmem:[%s4289 + $0x5c] sm:$0x1]
      %v4699 = vld [vmem:[%s4289 + $0x60] sm:$0xf]
      %v4700 = vld [vmem:[%s4289 + $0x64] sm:$0xf]
      %v4701 = vld [vmem:[%s4289 + $0x68] sm:$0x1]
      %v4702 = vld [vmem:[%s4289 + $0x6c] sm:$0xf]
      %v4703 = vld [vmem:[%s4289 + $0x70] sm:$0xf]
      %v4704 = vld [vmem:[%s4289 + $0x74] sm:$0x1]
      %v4705 = vld [vmem:[%s4289 + $0x78] sm:$0xf]
      %v4706 = vld [vmem:[%s4289 + $0x7c] sm:$0xf]
      %v4707 = vld [vmem:[%s4289 + $0x80] sm:$0x1]
      %v4708 = vld [vmem:[%s4289 + $0x84] sm:$0xf]
      %v4709 = vld [vmem:[%s4289 + $0x88] sm:$0xf]
      %v4710 = vld [vmem:[%s4289 + $0x8c] sm:$0x1]
      %v4711 = vld [vmem:[%s4289 + $0x90] sm:$0xf]
      %v4712 = vld [vmem:[%s4289 + $0x94] sm:$0xf]
      %v4713 = vld [vmem:[%s4289 + $0x98] sm:$0x1]
      %v4714 = vld [vmem:[%s4289 + $0x9c] sm:$0xf]
      %v4715 = vld [vmem:[%s4289 + $0xa0] sm:$0xf]
      %v4716 = vld [vmem:[%s4289 + $0xa4] sm:$0x1]
      %v4717 = vld [vmem:[%s4289 + $0xa8] sm:$0xf]
      %v4718 = vld [vmem:[%s4289 + $0xac] sm:$0xf]
      %v4719 = vld [vmem:[%s4289 + $0xb0] sm:$0x1]
      %v4720 = vld [vmem:[%s4289 + $0xb4] sm:$0xf]
      %v4721 = vld [vmem:[%s4289 + $0xb8] sm:$0xf]
      %v4722 = vld [vmem:[%s4289 + $0xbc] sm:$0x1]
      %v4723 = vld [vmem:[%s4289 + $0xd8] sm:$0xf]
      %v4724 = vld [vmem:[%s4289 + $0xdc] sm:$0xf]
      %v4725 = vld [vmem:[%s4289 + $0xe0] sm:$0x1]
      %v4726 = vld [vmem:[%s4289 + $0xe4] sm:$0xf]
      %v4727 = vld [vmem:[%s4289 + $0xe8] sm:$0xf]
      %v4728 = vld [vmem:[%s4289 + $0xec] sm:$0x1]
      %v4729 = vld [vmem:[%s4289 + $0xf0] sm:$0xf]
      %v4730 = vld [vmem:[%s4289 + $0xf4] sm:$0xf]
      %v4731 = vld [vmem:[%s4289 + $0xf8] sm:$0x1]
      %v4732 = vld [vmem:[%s4289 + $0xfc] sm:$0xf]
      %v4733 = vld [vmem:[%s4289 + $0x100] sm:$0xf]
      %v4734 = vld [vmem:[%s4289 + $0x104] sm:$0x1]
      %v4735 = vld [vmem:[%s4289 + $0x108] sm:$0xf]
      %v4736 = vld [vmem:[%s4289 + $0x10c] sm:$0xf]
      %v4737 = vld [vmem:[%s4289 + $0x110] sm:$0x1]
      %v4738 = vld [vmem:[%s4289 + $0x114] sm:$0xf]
      %v4739 = vld [vmem:[%s4289 + $0x118] sm:$0xf]
      %v4740 = vld [vmem:[%s4289 + $0x11c] sm:$0x1]
      %v4741 = vld [vmem:[%s4289 + $0x120] sm:$0xf]
      %v4742 = vld [vmem:[%s4289 + $0x124] sm:$0xf]
      %v4743 = vld [vmem:[%s4289 + $0x128] sm:$0x1]
      %v4744 = vld [vmem:[%s4289 + $0x12c] sm:$0xf]
      %v4745 = vld [vmem:[%s4289 + $0x130] sm:$0xf]
      %v4746 = vld [vmem:[%s4289 + $0x134] sm:$0x1]
      %v4747 = vld [vmem:[%s4289 + $0x138] sm:$0xf]
      %v4748 = vld [vmem:[%s4289 + $0x13c] sm:$0xf]
      %v4749 = vld [vmem:[%s4289 + $0x140] sm:$0x1]
      %v4750 = vld [vmem:[%s4289 + $0x144] sm:$0xf]
      %v4751 = vld [vmem:[%s4289 + $0x148] sm:$0xf]
      %v4752 = vld [vmem:[%s4289 + $0x14c] sm:$0x1]
      %v4753 = vld [vmem:[%s4289 + $0x150] sm:$0xf]
      %v4754 = vld [vmem:[%s4289 + $0x154] sm:$0xf]
      %v4755 = vld [vmem:[%s4289 + $0x158] sm:$0x1]
      %v4756 = vld [vmem:[%s4289 + $0x15c] sm:$0xf]
      %v4757 = vld [vmem:[%s4289 + $0x160] sm:$0xf]
      %v4758 = vld [vmem:[%s4289 + $0x164] sm:$0x1]
      %v4759 = vld [vmem:[%s4289 + $0x168] sm:$0xf]
      %v4760 = vld [vmem:[%s4289 + $0x16c] sm:$0xf]
      %v4761 = vld [vmem:[%s4289 + $0x170] sm:$0x1]
      %v4762 = vld [vmem:[%s4289 + $0x174] sm:$0xf]
      %v4763 = vld [vmem:[%s4289 + $0x178] sm:$0xf]
      %v4764 = vld [vmem:[%s4289 + $0x17c] sm:$0x1]
      %v4765 = vld [vmem:[%s4289 + $0x180] sm:$0xf]
      %v4766 = vld [vmem:[%s4289 + $0x184] sm:$0xf]
      %v4767 = vld [vmem:[%s4289 + $0x188] sm:$0x1]
      %v4768 = vld [vmem:[%s4289 + $0x18c] sm:$0xf]
      %v4769 = vld [vmem:[%s4289 + $0x190] sm:$0xf]
      %v4770 = vld [vmem:[%s4289 + $0x194] sm:$0x1]
      %v4772 = vshrl.u32 %v4675, 16
      %v4774 = vrot.slane %v4772, 4
      %v4775 = vshll.u32 %v4675, 16
      %v4777 = vrot.slane %v4775, 5
      %v4778 = vor.u32 %v4774, %v4777
      %v4779 = vrot.slane %v4778, 4
      %v4781 = vshll.u32 %v4676, 16
      %v4783 = vrot.slane %v4781, 5
      %v4784 = vsel %vm407, %v4779, %v4783
      %v4785 = vshrl.u32 %v4676, 16
      %v4787 = vrot.slane %v4785, 4
      %v4788 = vor.u32 %v4787, %v4783
      %v4789 = vrot.slane %v4788, 4
      %v4791 = vshll.u32 %v4677, 16
      %v4793 = vrot.slane %v4791, 5
      %v4794 = vsel %vm407, %v4789, %v4793
      %v4796 = vshrl.u32 %v4678, 16
      %v4798 = vrot.slane %v4796, 4
      %v4799 = vshll.u32 %v4678, 16
      %v4801 = vrot.slane %v4799, 5
      %v4802 = vor.u32 %v4798, %v4801
      %v4803 = vrot.slane %v4802, 4
      %v4805 = vshll.u32 %v4679, 16
      %v4807 = vrot.slane %v4805, 5
      %v4808 = vsel %vm407, %v4803, %v4807
      %v4809 = vshrl.u32 %v4679, 16
      %v4811 = vrot.slane %v4809, 4
      %v4812 = vor.u32 %v4811, %v4807
      %v4813 = vrot.slane %v4812, 4
      %v4815 = vshll.u32 %v4680, 16
      %v4817 = vrot.slane %v4815, 5
      %v4818 = vsel %vm407, %v4813, %v4817
      %v4820 = vshrl.u32 %v4681, 16
      %v4822 = vrot.slane %v4820, 4
      %v4823 = vshll.u32 %v4681, 16
      %v4825 = vrot.slane %v4823, 5
      %v4826 = vor.u32 %v4822, %v4825
      %v4827 = vrot.slane %v4826, 4
      %v4829 = vshll.u32 %v4682, 16
      %v4831 = vrot.slane %v4829, 5
      %v4832 = vsel %vm407, %v4827, %v4831
      %v4833 = vshrl.u32 %v4682, 16
      %v4835 = vrot.slane %v4833, 4
      %v4836 = vor.u32 %v4835, %v4831
      %v4837 = vrot.slane %v4836, 4
      %v4839 = vshll.u32 %v4683, 16
      %v4841 = vrot.slane %v4839, 5
      %v4842 = vsel %vm407, %v4837, %v4841
      %v4844 = vshrl.u32 %v4684, 16
      %v4846 = vrot.slane %v4844, 4
      %v4847 = vshll.u32 %v4684, 16
      %v4849 = vrot.slane %v4847, 5
      %v4850 = vor.u32 %v4846, %v4849
      %v4851 = vrot.slane %v4850, 4
      %v4853 = vshll.u32 %v4685, 16
      %v4855 = vrot.slane %v4853, 5
      %v4856 = vsel %vm407, %v4851, %v4855
      %v4857 = vshrl.u32 %v4685, 16
      %v4859 = vrot.slane %v4857, 4
      %v4860 = vor.u32 %v4859, %v4855
      %v4861 = vrot.slane %v4860, 4
      %v4863 = vshll.u32 %v4686, 16
      %v4865 = vrot.slane %v4863, 5
      %v4866 = vsel %vm407, %v4861, %v4865
      %v4868 = vshrl.u32 %v4687, 16
      %v4870 = vrot.slane %v4868, 4
      %v4871 = vshll.u32 %v4687, 16
      %v4873 = vrot.slane %v4871, 5
      %v4874 = vor.u32 %v4870, %v4873
      %v4875 = vrot.slane %v4874, 4
      %v4877 = vshll.u32 %v4688, 16
      %v4879 = vrot.slane %v4877, 5
      %v4880 = vsel %vm407, %v4875, %v4879
      %v4881 = vshrl.u32 %v4688, 16
      %v4883 = vrot.slane %v4881, 4
      %v4884 = vor.u32 %v4883, %v4879
      %v4885 = vrot.slane %v4884, 4
      %v4887 = vshll.u32 %v4689, 16
      %v4889 = vrot.slane %v4887, 5
      %v4890 = vsel %vm407, %v4885, %v4889
      %v4892 = vshrl.u32 %v4690, 16
      %v4894 = vrot.slane %v4892, 4
      %v4895 = vshll.u32 %v4690, 16
      %v4897 = vrot.slane %v4895, 5
      %v4898 = vor.u32 %v4894, %v4897
      %v4899 = vrot.slane %v4898, 4
      %v4901 = vshll.u32 %v4691, 16
      %v4903 = vrot.slane %v4901, 5
      %v4904 = vsel %vm407, %v4899, %v4903
      %v4905 = vshrl.u32 %v4691, 16
      %v4907 = vrot.slane %v4905, 4
      %v4908 = vor.u32 %v4907, %v4903
      %v4909 = vrot.slane %v4908, 4
      %v4911 = vshll.u32 %v4692, 16
      %v4913 = vrot.slane %v4911, 5
      %v4914 = vsel %vm407, %v4909, %v4913
      %v4916 = vshrl.u32 %v4693, 16
      %v4918 = vrot.slane %v4916, 4
      %v4919 = vshll.u32 %v4693, 16
      %v4921 = vrot.slane %v4919, 5
      %v4922 = vor.u32 %v4918, %v4921
      %v4923 = vrot.slane %v4922, 4
      %v4925 = vshll.u32 %v4694, 16
      %v4927 = vrot.slane %v4925, 5
      %v4928 = vsel %vm407, %v4923, %v4927
      %v4929 = vshrl.u32 %v4694, 16
      %v4931 = vrot.slane %v4929, 4
      %v4932 = vor.u32 %v4931, %v4927
      %v4933 = vrot.slane %v4932, 4
      %v4935 = vshll.u32 %v4695, 16
      %v4937 = vrot.slane %v4935, 5
      %v4938 = vsel %vm407, %v4933, %v4937
      %v4940 = vshrl.u32 %v4696, 16
      %v4942 = vrot.slane %v4940, 4
      %v4943 = vshll.u32 %v4696, 16
      %v4945 = vrot.slane %v4943, 5
      %v4946 = vor.u32 %v4942, %v4945
      %v4947 = vrot.slane %v4946, 4
      %v4949 = vshll.u32 %v4697, 16
      %v4951 = vrot.slane %v4949, 5
      %v4952 = vsel %vm407, %v4947, %v4951
      %v4953 = vshrl.u32 %v4697, 16
      %v4955 = vrot.slane %v4953, 4
      %v4956 = vor.u32 %v4955, %v4951
      %v4957 = vrot.slane %v4956, 4
      %v4959 = vshll.u32 %v4698, 16
      %v4961 = vrot.slane %v4959, 5
      %v4962 = vsel %vm407, %v4957, %v4961
      %v4964 = vshrl.u32 %v4699, 16
      %v4966 = vrot.slane %v4964, 4
      %v4967 = vshll.u32 %v4699, 16
      %v4969 = vrot.slane %v4967, 5
      %v4970 = vor.u32 %v4966, %v4969
      %v4971 = vrot.slane %v4970, 4
      %v4973 = vshll.u32 %v4700, 16
      %v4975 = vrot.slane %v4973, 5
      %v4976 = vsel %vm407, %v4971, %v4975
      %v4977 = vshrl.u32 %v4700, 16
      %v4979 = vrot.slane %v4977, 4
      %v4980 = vor.u32 %v4979, %v4975
      %v4981 = vrot.slane %v4980, 4
      %v4983 = vshll.u32 %v4701, 16
      %v4985 = vrot.slane %v4983, 5
      %v4986 = vsel %vm407, %v4981, %v4985
      %v4988 = vshrl.u32 %v4702, 16
      %v4990 = vrot.slane %v4988, 4
      %v4991 = vshll.u32 %v4702, 16
      %v4993 = vrot.slane %v4991, 5
      %v4994 = vor.u32 %v4990, %v4993
      %v4995 = vrot.slane %v4994, 4
      %v4997 = vshll.u32 %v4703, 16
      %v4999 = vrot.slane %v4997, 5
      %v5000 = vsel %vm407, %v4995, %v4999
      %v5001 = vshrl.u32 %v4703, 16
      %v5003 = vrot.slane %v5001, 4
      %v5004 = vor.u32 %v5003, %v4999
      %v5005 = vrot.slane %v5004, 4
      %v5007 = vshll.u32 %v4704, 16
      %v5009 = vrot.slane %v5007, 5
      %v5010 = vsel %vm407, %v5005, %v5009
      %v5012 = vshrl.u32 %v4705, 16
      %v5014 = vrot.slane %v5012, 4
      %v5015 = vshll.u32 %v4705, 16
      %v5017 = vrot.slane %v5015, 5
      %v5018 = vor.u32 %v5014, %v5017
      %v5019 = vrot.slane %v5018, 4
      %v5021 = vshll.u32 %v4706, 16
      %v5023 = vrot.slane %v5021, 5
      %v5024 = vsel %vm407, %v5019, %v5023
      %v5025 = vshrl.u32 %v4706, 16
      %v5027 = vrot.slane %v5025, 4
      %v5028 = vor.u32 %v5027, %v5023
      %v5029 = vrot.slane %v5028, 4
      %v5031 = vshll.u32 %v4707, 16
      %v5033 = vrot.slane %v5031, 5
      %v5034 = vsel %vm407, %v5029, %v5033
      %v5036 = vshrl.u32 %v4708, 16
      %v5038 = vrot.slane %v5036, 4
      %v5039 = vshll.u32 %v4708, 16
      %v5041 = vrot.slane %v5039, 5
      %v5042 = vor.u32 %v5038, %v5041
      %v5043 = vrot.slane %v5042, 4
      %v5045 = vshll.u32 %v4709, 16
      %v5047 = vrot.slane %v5045, 5
      %v5048 = vsel %vm407, %v5043, %v5047
      %v5049 = vshrl.u32 %v4709, 16
      %v5051 = vrot.slane %v5049, 4
      %v5052 = vor.u32 %v5051, %v5047
      %v5053 = vrot.slane %v5052, 4
      %v5055 = vshll.u32 %v4710, 16
      %v5057 = vrot.slane %v5055, 5
      %v5058 = vsel %vm407, %v5053, %v5057
      %v5060 = vshrl.u32 %v4711, 16
      %v5062 = vrot.slane %v5060, 4
      %v5063 = vshll.u32 %v4711, 16
      %v5065 = vrot.slane %v5063, 5
      %v5066 = vor.u32 %v5062, %v5065
      %v5067 = vrot.slane %v5066, 4
      %v5069 = vshll.u32 %v4712, 16
      %v5071 = vrot.slane %v5069, 5
      %v5072 = vsel %vm407, %v5067, %v5071
      %v5073 = vshrl.u32 %v4712, 16
      %v5075 = vrot.slane %v5073, 4
      %v5076 = vor.u32 %v5075, %v5071
      %v5077 = vrot.slane %v5076, 4
      %v5079 = vshll.u32 %v4713, 16
      %v5081 = vrot.slane %v5079, 5
      %v5082 = vsel %vm407, %v5077, %v5081
      %v5084 = vshrl.u32 %v4714, 16
      %v5086 = vrot.slane %v5084, 4
      %v5087 = vshll.u32 %v4714, 16
      %v5089 = vrot.slane %v5087, 5
      %v5090 = vor.u32 %v5086, %v5089
      %v5091 = vrot.slane %v5090, 4
      %v5093 = vshll.u32 %v4715, 16
      %v5095 = vrot.slane %v5093, 5
      %v5096 = vsel %vm407, %v5091, %v5095
      %v5097 = vshrl.u32 %v4715, 16
      %v5099 = vrot.slane %v5097, 4
      %v5100 = vor.u32 %v5099, %v5095
      %v5101 = vrot.slane %v5100, 4
      %v5103 = vshll.u32 %v4716, 16
      %v5105 = vrot.slane %v5103, 5
      %v5106 = vsel %vm407, %v5101, %v5105
      %v5108 = vshrl.u32 %v4717, 16
      %v5110 = vrot.slane %v5108, 4
      %v5111 = vshll.u32 %v4717, 16
      %v5113 = vrot.slane %v5111, 5
      %v5114 = vor.u32 %v5110, %v5113
      %v5115 = vrot.slane %v5114, 4
      %v5117 = vshll.u32 %v4718, 16
      %v5119 = vrot.slane %v5117, 5
      %v5120 = vsel %vm407, %v5115, %v5119
      %v5121 = vshrl.u32 %v4718, 16
      %v5123 = vrot.slane %v5121, 4
      %v5124 = vor.u32 %v5123, %v5119
      %v5125 = vrot.slane %v5124, 4
      %v5127 = vshll.u32 %v4719, 16
      %v5129 = vrot.slane %v5127, 5
      %v5130 = vsel %vm407, %v5125, %v5129
      %v5132 = vshrl.u32 %v4720, 16
      %v5134 = vrot.slane %v5132, 4
      %v5135 = vshll.u32 %v4720, 16
      %v5137 = vrot.slane %v5135, 5
      %v5138 = vor.u32 %v5134, %v5137
      %v5139 = vrot.slane %v5138, 4
      %v5141 = vshll.u32 %v4721, 16
      %v5143 = vrot.slane %v5141, 5
      %v5144 = vsel %vm407, %v5139, %v5143
      %v5145 = vshrl.u32 %v4721, 16
      %v5147 = vrot.slane %v5145, 4
      %v5148 = vor.u32 %v5147, %v5143
      %v5149 = vrot.slane %v5148, 4
      %v5151 = vshll.u32 %v4722, 16
      %v5153 = vrot.slane %v5151, 5
      %v5154 = vsel %vm407, %v5149, %v5153
      %v5156 = vshrl.u32 %v4723, 16
      %v5158 = vrot.slane %v5156, 4
      %v5159 = vshll.u32 %v4723, 16
      %v5161 = vrot.slane %v5159, 5
      %v5162 = vor.u32 %v5158, %v5161
      %v5163 = vrot.slane %v5162, 4
      %v5165 = vshll.u32 %v4724, 16
      %v5167 = vrot.slane %v5165, 5
      %v5168 = vsel %vm407, %v5163, %v5167
      %v5169 = vshrl.u32 %v4724, 16
      %v5171 = vrot.slane %v5169, 4
      %v5172 = vor.u32 %v5171, %v5167
      %v5173 = vrot.slane %v5172, 4
      %v5175 = vshll.u32 %v4725, 16
      %v5177 = vrot.slane %v5175, 5
      %v5178 = vsel %vm407, %v5173, %v5177
      %v5180 = vshrl.u32 %v4726, 16
      %v5182 = vrot.slane %v5180, 4
      %v5183 = vshll.u32 %v4726, 16
      %v5185 = vrot.slane %v5183, 5
      %v5186 = vor.u32 %v5182, %v5185
      %v5187 = vrot.slane %v5186, 4
      %v5189 = vshll.u32 %v4727, 16
      %v5191 = vrot.slane %v5189, 5
      %v5192 = vsel %vm407, %v5187, %v5191
      %v5193 = vshrl.u32 %v4727, 16
      %v5195 = vrot.slane %v5193, 4
      %v5196 = vor.u32 %v5195, %v5191
      %v5197 = vrot.slane %v5196, 4
      %v5199 = vshll.u32 %v4728, 16
      %v5201 = vrot.slane %v5199, 5
      %v5202 = vsel %vm407, %v5197, %v5201
      %v5204 = vshrl.u32 %v4729, 16
      %v5206 = vrot.slane %v5204, 4
      %v5207 = vshll.u32 %v4729, 16
      %v5209 = vrot.slane %v5207, 5
      %v5210 = vor.u32 %v5206, %v5209
      %v5211 = vrot.slane %v5210, 4
      %v5213 = vshll.u32 %v4730, 16
      %v5215 = vrot.slane %v5213, 5
      %v5216 = vsel %vm407, %v5211, %v5215
      %v5217 = vshrl.u32 %v4730, 16
      %v5219 = vrot.slane %v5217, 4
      %v5220 = vor.u32 %v5219, %v5215
      %v5221 = vrot.slane %v5220, 4
      %v5223 = vshll.u32 %v4731, 16
      %v5225 = vrot.slane %v5223, 5
      %v5226 = vsel %vm407, %v5221, %v5225
      %v5228 = vshrl.u32 %v4732, 16
      %v5230 = vrot.slane %v5228, 4
      %v5231 = vshll.u32 %v4732, 16
      %v5233 = vrot.slane %v5231, 5
      %v5234 = vor.u32 %v5230, %v5233
      %v5235 = vrot.slane %v5234, 4
      %v5237 = vshll.u32 %v4733, 16
      %v5239 = vrot.slane %v5237, 5
      %v5240 = vsel %vm407, %v5235, %v5239
      %v5241 = vshrl.u32 %v4733, 16
      %v5243 = vrot.slane %v5241, 4
      %v5244 = vor.u32 %v5243, %v5239
      %v5245 = vrot.slane %v5244, 4
      %v5247 = vshll.u32 %v4734, 16
      %v5249 = vrot.slane %v5247, 5
      %v5250 = vsel %vm407, %v5245, %v5249
      %v5252 = vshrl.u32 %v4735, 16
      %v5254 = vrot.slane %v5252, 4
      %v5255 = vshll.u32 %v4735, 16
      %v5257 = vrot.slane %v5255, 5
      %v5258 = vor.u32 %v5254, %v5257
      %v5259 = vrot.slane %v5258, 4
      %v5261 = vshll.u32 %v4736, 16
      %v5263 = vrot.slane %v5261, 5
      %v5264 = vsel %vm407, %v5259, %v5263
      %v5265 = vshrl.u32 %v4736, 16
      %v5267 = vrot.slane %v5265, 4
      %v5268 = vor.u32 %v5267, %v5263
      %v5269 = vrot.slane %v5268, 4
      %v5271 = vshll.u32 %v4737, 16
      %v5273 = vrot.slane %v5271, 5
      %v5274 = vsel %vm407, %v5269, %v5273
      %v5276 = vshrl.u32 %v4738, 16
      %v5278 = vrot.slane %v5276, 4
      %v5279 = vshll.u32 %v4738, 16
      %v5281 = vrot.slane %v5279, 5
      %v5282 = vor.u32 %v5278, %v5281
      %v5283 = vrot.slane %v5282, 4
      %v5285 = vshll.u32 %v4739, 16
      %v5287 = vrot.slane %v5285, 5
      %v5288 = vsel %vm407, %v5283, %v5287
      %v5289 = vshrl.u32 %v4739, 16
      %v5291 = vrot.slane %v5289, 4
      %v5292 = vor.u32 %v5291, %v5287
      %v5293 = vrot.slane %v5292, 4
      %v5295 = vshll.u32 %v4740, 16
      %v5297 = vrot.slane %v5295, 5
      %v5298 = vsel %vm407, %v5293, %v5297
      %v5300 = vshrl.u32 %v4741, 16
      %v5302 = vrot.slane %v5300, 4
      %v5303 = vshll.u32 %v4741, 16
      %v5305 = vrot.slane %v5303, 5
      %v5306 = vor.u32 %v5302, %v5305
      %v5307 = vrot.slane %v5306, 4
      %v5309 = vshll.u32 %v4742, 16
      %v5311 = vrot.slane %v5309, 5
      %v5312 = vsel %vm407, %v5307, %v5311
      %v5313 = vshrl.u32 %v4742, 16
      %v5315 = vrot.slane %v5313, 4
      %v5316 = vor.u32 %v5315, %v5311
      %v5317 = vrot.slane %v5316, 4
      %v5319 = vshll.u32 %v4743, 16
      %v5321 = vrot.slane %v5319, 5
      %v5322 = vsel %vm407, %v5317, %v5321
      %v5324 = vshrl.u32 %v4744, 16
      %v5326 = vrot.slane %v5324, 4
      %v5327 = vshll.u32 %v4744, 16
      %v5329 = vrot.slane %v5327, 5
      %v5330 = vor.u32 %v5326, %v5329
      %v5331 = vrot.slane %v5330, 4
      %v5333 = vshll.u32 %v4745, 16
      %v5335 = vrot.slane %v5333, 5
      %v5336 = vsel %vm407, %v5331, %v5335
      %v5337 = vshrl.u32 %v4745, 16
      %v5339 = vrot.slane %v5337, 4
      %v5340 = vor.u32 %v5339, %v5335
      %v5341 = vrot.slane %v5340, 4
      %v5343 = vshll.u32 %v4746, 16
      %v5345 = vrot.slane %v5343, 5
      %v5346 = vsel %vm407, %v5341, %v5345
      %v5348 = vshrl.u32 %v4747, 16
      %v5350 = vrot.slane %v5348, 4
      %v5351 = vshll.u32 %v4747, 16
      %v5353 = vrot.slane %v5351, 5
      %v5354 = vor.u32 %v5350, %v5353
      %v5355 = vrot.slane %v5354, 4
      %v5357 = vshll.u32 %v4748, 16
      %v5359 = vrot.slane %v5357, 5
      %v5360 = vsel %vm407, %v5355, %v5359
      %v5361 = vshrl.u32 %v4748, 16
      %v5363 = vrot.slane %v5361, 4
      %v5364 = vor.u32 %v5363, %v5359
      %v5365 = vrot.slane %v5364, 4
      %v5367 = vshll.u32 %v4749, 16
      %v5369 = vrot.slane %v5367, 5
      %v5370 = vsel %vm407, %v5365, %v5369
      %v5372 = vshrl.u32 %v4750, 16
      %v5374 = vrot.slane %v5372, 4
      %v5375 = vshll.u32 %v4750, 16
      %v5377 = vrot.slane %v5375, 5
      %v5378 = vor.u32 %v5374, %v5377
      %v5379 = vrot.slane %v5378, 4
      %v5381 = vshll.u32 %v4751, 16
      %v5383 = vrot.slane %v5381, 5
      %v5384 = vsel %vm407, %v5379, %v5383
      %v5385 = vshrl.u32 %v4751, 16
      %v5387 = vrot.slane %v5385, 4
      %v5388 = vor.u32 %v5387, %v5383
      %v5389 = vrot.slane %v5388, 4
      %v5391 = vshll.u32 %v4752, 16
      %v5393 = vrot.slane %v5391, 5
      %v5394 = vsel %vm407, %v5389, %v5393
      %v5396 = vshrl.u32 %v4753, 16
      %v5398 = vrot.slane %v5396, 4
      %v5399 = vshll.u32 %v4753, 16
      %v5401 = vrot.slane %v5399, 5
      %v5402 = vor.u32 %v5398, %v5401
      %v5403 = vrot.slane %v5402, 4
      %v5405 = vshll.u32 %v4754, 16
      %v5407 = vrot.slane %v5405, 5
      %v5408 = vsel %vm407, %v5403, %v5407
      %v5409 = vshrl.u32 %v4754, 16
      %v5411 = vrot.slane %v5409, 4
      %v5412 = vor.u32 %v5411, %v5407
      %v5413 = vrot.slane %v5412, 4
      %v5415 = vshll.u32 %v4755, 16
      %v5417 = vrot.slane %v5415, 5
      %v5418 = vsel %vm407, %v5413, %v5417
      %v5420 = vshrl.u32 %v4756, 16
      %v5422 = vrot.slane %v5420, 4
      %v5423 = vshll.u32 %v4756, 16
      %v5425 = vrot.slane %v5423, 5
      %v5426 = vor.u32 %v5422, %v5425
      %v5427 = vrot.slane %v5426, 4
      %v5429 = vshll.u32 %v4757, 16
      %v5431 = vrot.slane %v5429, 5
      %v5432 = vsel %vm407, %v5427, %v5431
      %v5433 = vshrl.u32 %v4757, 16
      %v5435 = vrot.slane %v5433, 4
      %v5436 = vor.u32 %v5435, %v5431
      %v5437 = vrot.slane %v5436, 4
      %v5439 = vshll.u32 %v4758, 16
      %v5441 = vrot.slane %v5439, 5
      %v5442 = vsel %vm407, %v5437, %v5441
      %v5444 = vshrl.u32 %v4759, 16
      %v5446 = vrot.slane %v5444, 4
      %v5447 = vshll.u32 %v4759, 16
      %v5449 = vrot.slane %v5447, 5
      %v5450 = vor.u32 %v5446, %v5449
      %v5451 = vrot.slane %v5450, 4
      %v5453 = vshll.u32 %v4760, 16
      %v5455 = vrot.slane %v5453, 5
      %v5456 = vsel %vm407, %v5451, %v5455
      %v5457 = vshrl.u32 %v4760, 16
      %v5459 = vrot.slane %v5457, 4
      %v5460 = vor.u32 %v5459, %v5455
      %v5461 = vrot.slane %v5460, 4
      %v5463 = vshll.u32 %v4761, 16
      %v5465 = vrot.slane %v5463, 5
      %v5466 = vsel %vm407, %v5461, %v5465
      %v5468 = vshrl.u32 %v4762, 16
      %v5470 = vrot.slane %v5468, 4
      %v5471 = vshll.u32 %v4762, 16
      %v5473 = vrot.slane %v5471, 5
      %v5474 = vor.u32 %v5470, %v5473
      %v5475 = vrot.slane %v5474, 4
      %v5477 = vshll.u32 %v4763, 16
      %v5479 = vrot.slane %v5477, 5
      %v5480 = vsel %vm407, %v5475, %v5479
      %v5481 = vshrl.u32 %v4763, 16
      %v5483 = vrot.slane %v5481, 4
      %v5484 = vor.u32 %v5483, %v5479
      %v5485 = vrot.slane %v5484, 4
      %v5487 = vshll.u32 %v4764, 16
      %v5489 = vrot.slane %v5487, 5
      %v5490 = vsel %vm407, %v5485, %v5489
      %v5492 = vshrl.u32 %v4765, 16
      %v5494 = vrot.slane %v5492, 4
      %v5495 = vshll.u32 %v4765, 16
      %v5497 = vrot.slane %v5495, 5
      %v5498 = vor.u32 %v5494, %v5497
      %v5499 = vrot.slane %v5498, 4
      %v5501 = vshll.u32 %v4766, 16
      %v5503 = vrot.slane %v5501, 5
      %v5504 = vsel %vm407, %v5499, %v5503
      %v5505 = vshrl.u32 %v4766, 16
      %v5507 = vrot.slane %v5505, 4
      %v5508 = vor.u32 %v5507, %v5503
      %v5509 = vrot.slane %v5508, 4
      %v5511 = vshll.u32 %v4767, 16
      %v5513 = vrot.slane %v5511, 5
      %v5514 = vsel %vm407, %v5509, %v5513
      %v5516 = vshrl.u32 %v4768, 16
      %v5518 = vrot.slane %v5516, 4
      %v5519 = vshll.u32 %v4768, 16
      %v5521 = vrot.slane %v5519, 5
      %v5522 = vor.u32 %v5518, %v5521
      %v5523 = vrot.slane %v5522, 4
      %v5525 = vshll.u32 %v4769, 16
      %v5527 = vrot.slane %v5525, 5
      %v5528 = vsel %vm407, %v5523, %v5527
      %v5529 = vshrl.u32 %v4769, 16
      %v5531 = vrot.slane %v5529, 4
      %v5532 = vor.u32 %v5531, %v5527
      %v5533 = vrot.slane %v5532, 4
      %v5535 = vshll.u32 %v4770, 16
      %v5537 = vrot.slane %v5535, 5
      %v5538 = vsel %vm407, %v5533, %v5537
      %5539 = vrot.lane.b32.xlu0 %v4784, 28
      %v5540 = vpop.permute.xlu0 %5539
      %5541 = vrot.lane.b32.xlu0 %v4794, 28
      %v5542 = vpop.permute.xlu0 %5541
      %5543 = vrot.lane.b32.xlu0 %v4808, 28
      %v5544 = vpop.permute.xlu0 %5543
      %5545 = vrot.lane.b32.xlu0 %v4818, 28
      %v5546 = vpop.permute.xlu0 %5545
      %5547 = vrot.lane.b32.xlu0 %v4832, 28
      %v5548 = vpop.permute.xlu0 %5547
      %5549 = vrot.lane.b32.xlu0 %v4842, 28
      %v5550 = vpop.permute.xlu0 %5549
      %5551 = vrot.lane.b32.xlu0 %v4856, 28
      %v5552 = vpop.permute.xlu0 %5551
      %5553 = vrot.lane.b32.xlu0 %v4866, 28
      %v5554 = vpop.permute.xlu0 %5553
      %5555 = vrot.lane.b32.xlu0 %v4880, 28
      %v5556 = vpop.permute.xlu0 %5555
      %5557 = vrot.lane.b32.xlu0 %v4890, 28
      %v5558 = vpop.permute.xlu0 %5557
      %5559 = vrot.lane.b32.xlu0 %v4904, 28
      %v5560 = vpop.permute.xlu0 %5559
      %5561 = vrot.lane.b32.xlu0 %v4914, 28
      %v5562 = vpop.permute.xlu0 %5561
      %5563 = vrot.lane.b32.xlu0 %v4928, 28
      %v5564 = vpop.permute.xlu0 %5563
      %5565 = vrot.lane.b32.xlu0 %v4938, 28
      %v5566 = vpop.permute.xlu0 %5565
      %5567 = vrot.lane.b32.xlu0 %v4952, 28
      %v5568 = vpop.permute.xlu0 %5567
      %5569 = vrot.lane.b32.xlu0 %v4962, 28
      %v5570 = vpop.permute.xlu0 %5569
      %5571 = vrot.lane.b32.xlu0 %v4976, 28
      %v5572 = vpop.permute.xlu0 %5571
      %5573 = vrot.lane.b32.xlu0 %v4986, 28
      %v5574 = vpop.permute.xlu0 %5573
      %5575 = vrot.lane.b32.xlu0 %v5000, 28
      %v5576 = vpop.permute.xlu0 %5575
      %5577 = vrot.lane.b32.xlu0 %v5010, 28
      %v5578 = vpop.permute.xlu0 %5577
      %5579 = vrot.lane.b32.xlu0 %v5024, 28
      %v5580 = vpop.permute.xlu0 %5579
      %5581 = vrot.lane.b32.xlu0 %v5034, 28
      %v5582 = vpop.permute.xlu0 %5581
      %5583 = vrot.lane.b32.xlu0 %v5048, 28
      %v5584 = vpop.permute.xlu0 %5583
      %5585 = vrot.lane.b32.xlu0 %v5058, 28
      %v5586 = vpop.permute.xlu0 %5585
      %5587 = vrot.lane.b32.xlu0 %v5072, 28
      %v5588 = vpop.permute.xlu0 %5587
      %5589 = vrot.lane.b32.xlu0 %v5082, 28
      %v5590 = vpop.permute.xlu0 %5589
      %5591 = vrot.lane.b32.xlu0 %v5096, 28
      %v5592 = vpop.permute.xlu0 %5591
      %5593 = vrot.lane.b32.xlu0 %v5106, 28
      %v5594 = vpop.permute.xlu0 %5593
      %5595 = vrot.lane.b32.xlu0 %v5120, 28
      %v5596 = vpop.permute.xlu0 %5595
      %5597 = vrot.lane.b32.xlu0 %v5130, 28
      %v5598 = vpop.permute.xlu0 %5597
      %5599 = vrot.lane.b32.xlu0 %v5144, 28
      %v5600 = vpop.permute.xlu0 %5599
      %5601 = vrot.lane.b32.xlu0 %v5154, 28
      %v5602 = vpop.permute.xlu0 %5601
      %5603 = vrot.lane.b32.xlu0 %v5168, 28
      %v5604 = vpop.permute.xlu0 %5603
      %5605 = vrot.lane.b32.xlu0 %v5178, 28
      %v5606 = vpop.permute.xlu0 %5605
      %5607 = vrot.lane.b32.xlu0 %v5192, 28
      %v5608 = vpop.permute.xlu0 %5607
      %5609 = vrot.lane.b32.xlu0 %v5202, 28
      %v5610 = vpop.permute.xlu0 %5609
      %5611 = vrot.lane.b32.xlu0 %v5216, 28
      %v5612 = vpop.permute.xlu0 %5611
      %5613 = vrot.lane.b32.xlu0 %v5226, 28
      %v5614 = vpop.permute.xlu0 %5613
      %5615 = vrot.lane.b32.xlu0 %v5240, 28
      %v5616 = vpop.permute.xlu0 %5615
      %5617 = vrot.lane.b32.xlu0 %v5250, 28
      %v5618 = vpop.permute.xlu0 %5617
      %5619 = vrot.lane.b32.xlu0 %v5264, 28
      %v5620 = vpop.permute.xlu0 %5619
      %5621 = vrot.lane.b32.xlu0 %v5274, 28
      %v5622 = vpop.permute.xlu0 %5621
      %5623 = vrot.lane.b32.xlu0 %v5288, 28
      %v5624 = vpop.permute.xlu0 %5623
      %5625 = vrot.lane.b32.xlu0 %v5298, 28
      %v5626 = vpop.permute.xlu0 %5625
      %5627 = vrot.lane.b32.xlu0 %v5312, 28
      %v5628 = vpop.permute.xlu0 %5627
      %5629 = vrot.lane.b32.xlu0 %v5322, 28
      %v5630 = vpop.permute.xlu0 %5629
      %5631 = vrot.lane.b32.xlu0 %v5336, 28
      %v5632 = vpop.permute.xlu0 %5631
      %5633 = vrot.lane.b32.xlu0 %v5346, 28
      %v5634 = vpop.permute.xlu0 %5633
      %5635 = vrot.lane.b32.xlu0 %v5360, 28
      %v5636 = vpop.permute.xlu0 %5635
      %5637 = vrot.lane.b32.xlu0 %v5370, 28
      %v5638 = vpop.permute.xlu0 %5637
      %5639 = vrot.lane.b32.xlu0 %v5384, 28
      %v5640 = vpop.permute.xlu0 %5639
      %5641 = vrot.lane.b32.xlu0 %v5394, 28
      %v5642 = vpop.permute.xlu0 %5641
      %5643 = vrot.lane.b32.xlu0 %v5408, 28
      %v5644 = vpop.permute.xlu0 %5643
      %5645 = vrot.lane.b32.xlu0 %v5418, 28
      %v5646 = vpop.permute.xlu0 %5645
      %5647 = vrot.lane.b32.xlu0 %v5432, 28
      %v5648 = vpop.permute.xlu0 %5647
      %5649 = vrot.lane.b32.xlu0 %v5442, 28
      %v5650 = vpop.permute.xlu0 %5649
      %5651 = vrot.lane.b32.xlu0 %v5456, 28
      %v5652 = vpop.permute.xlu0 %5651
      %5653 = vrot.lane.b32.xlu0 %v5466, 28
      %v5654 = vpop.permute.xlu0 %5653
      %5655 = vrot.lane.b32.xlu0 %v5480, 28
      %v5656 = vpop.permute.xlu0 %5655
      %5657 = vrot.lane.b32.xlu0 %v5490, 28
      %v5658 = vpop.permute.xlu0 %5657
      %5659 = vrot.lane.b32.xlu0 %v5504, 28
      %v5660 = vpop.permute.xlu0 %5659
      %5661 = vrot.lane.b32.xlu0 %v5514, 28
      %v5662 = vpop.permute.xlu0 %5661
      %5663 = vrot.lane.b32.xlu0 %v5528, 28
      %v5664 = vpop.permute.xlu0 %5663
      %5665 = vrot.lane.b32.xlu0 %v5538, 28
      %v5666 = vpop.permute.xlu0 %5665
      %vm5731 = vcmask 257248
      %5732 = vst.msk [vmem:[#allocation2] sm:$0xf] %vm5731, %v5540
      %5733 = vst.msk [vmem:[#allocation2 + $0x4] sm:$0xf] %vm5731, %v5542
      %5734 = vst.msk [vmem:[#allocation2 + $0x8] sm:$0xf] %vm5731, %v5544
      %5735 = vst.msk [vmem:[#allocation2 + $0xc] sm:$0xf] %vm5731, %v5546
      %5736 = vst.msk [vmem:[#allocation2 + $0x10] sm:$0xf] %vm5731, %v5548
      %5737 = vst.msk [vmem:[#allocation2 + $0x14] sm:$0xf] %vm5731, %v5550
      %5738 = vst.msk [vmem:[#allocation2 + $0x18] sm:$0xf] %vm5731, %v5552
      %5739 = vst.msk [vmem:[#allocation2 + $0x1c] sm:$0xf] %vm5731, %v5554
      %5740 = vst.msk [vmem:[#allocation2 + $0x20] sm:$0xf] %vm5731, %v5556
      %5741 = vst.msk [vmem:[#allocation2 + $0x24] sm:$0xf] %vm5731, %v5558
      %5742 = vst.msk [vmem:[#allocation2 + $0x28] sm:$0xf] %vm5731, %v5560
      %5743 = vst.msk [vmem:[#allocation2 + $0x2c] sm:$0xf] %vm5731, %v5562
      %5744 = vst.msk [vmem:[#allocation2 + $0x30] sm:$0xf] %vm5731, %v5564
      %5745 = vst.msk [vmem:[#allocation2 + $0x34] sm:$0xf] %vm5731, %v5566
      %5746 = vst.msk [vmem:[#allocation2 + $0x38] sm:$0xf] %vm5731, %v5568
      %5747 = vst.msk [vmem:[#allocation2 + $0x3c] sm:$0xf] %vm5731, %v5570
      %5748 = vst.msk [vmem:[#allocation2 + $0x40] sm:$0xf] %vm5731, %v5572
      %5749 = vst.msk [vmem:[#allocation2 + $0x44] sm:$0xf] %vm5731, %v5574
      %5750 = vst.msk [vmem:[#allocation2 + $0x48] sm:$0xf] %vm5731, %v5576
      %5751 = vst.msk [vmem:[#allocation2 + $0x4c] sm:$0xf] %vm5731, %v5578
      %5752 = vst.msk [vmem:[#allocation2 + $0x50] sm:$0xf] %vm5731, %v5580
      %5753 = vst.msk [vmem:[#allocation2 + $0x54] sm:$0xf] %vm5731, %v5582
      %5754 = vst.msk [vmem:[#allocation2 + $0x58] sm:$0xf] %vm5731, %v5584
      %5755 = vst.msk [vmem:[#allocation2 + $0x5c] sm:$0xf] %vm5731, %v5586
      %5756 = vst.msk [vmem:[#allocation2 + $0x60] sm:$0xf] %vm5731, %v5588
      %5757 = vst.msk [vmem:[#allocation2 + $0x64] sm:$0xf] %vm5731, %v5590
      %5758 = vst.msk [vmem:[#allocation2 + $0x68] sm:$0xf] %vm5731, %v5592
      %5759 = vst.msk [vmem:[#allocation2 + $0x6c] sm:$0xf] %vm5731, %v5594
      %5760 = vst.msk [vmem:[#allocation2 + $0x70] sm:$0xf] %vm5731, %v5596
      %5761 = vst.msk [vmem:[#allocation2 + $0x74] sm:$0xf] %vm5731, %v5598
      %5762 = vst.msk [vmem:[#allocation2 + $0x78] sm:$0xf] %vm5731, %v5600
      %5763 = vst.msk [vmem:[#allocation2 + $0x7c] sm:$0xf] %vm5731, %v5602
      %5764 = vst.msk [vmem:[#allocation2 + $0x80] sm:$0xf] %vm5731, %v5604
      %5765 = vst.msk [vmem:[#allocation2 + $0x84] sm:$0xf] %vm5731, %v5606
      %5766 = vst.msk [vmem:[#allocation2 + $0x88] sm:$0xf] %vm5731, %v5608
      %5767 = vst.msk [vmem:[#allocation2 + $0x8c] sm:$0xf] %vm5731, %v5610
      %5768 = vst.msk [vmem:[#allocation2 + $0x90] sm:$0xf] %vm5731, %v5612
      %5769 = vst.msk [vmem:[#allocation2 + $0x94] sm:$0xf] %vm5731, %v5614
      %5770 = vst.msk [vmem:[#allocation2 + $0x98] sm:$0xf] %vm5731, %v5616
      %5771 = vst.msk [vmem:[#allocation2 + $0x9c] sm:$0xf] %vm5731, %v5618
      %5772 = vst.msk [vmem:[#allocation2 + $0xa0] sm:$0xf] %vm5731, %v5620
      %5773 = vst.msk [vmem:[#allocation2 + $0xa4] sm:$0xf] %vm5731, %v5622
      %5774 = vst.msk [vmem:[#allocation2 + $0xa8] sm:$0xf] %vm5731, %v5624
      %5775 = vst.msk [vmem:[#allocation2 + $0xac] sm:$0xf] %vm5731, %v5626
      %5776 = vst.msk [vmem:[#allocation2 + $0xb0] sm:$0xf] %vm5731, %v5628
      %5777 = vst.msk [vmem:[#allocation2 + $0xb4] sm:$0xf] %vm5731, %v5630
      %5778 = vst.msk [vmem:[#allocation2 + $0xb8] sm:$0xf] %vm5731, %v5632
      %5779 = vst.msk [vmem:[#allocation2 + $0xbc] sm:$0xf] %vm5731, %v5634
      %5780 = vst.msk [vmem:[#allocation2 + $0xc0] sm:$0xf] %vm5731, %v5636
      %5781 = vst.msk [vmem:[#allocation2 + $0xc4] sm:$0xf] %vm5731, %v5638
      %5782 = vst.msk [vmem:[#allocation2 + $0xc8] sm:$0xf] %vm5731, %v5640
      %5783 = vst.msk [vmem:[#allocation2 + $0xcc] sm:$0xf] %vm5731, %v5642
      %5784 = vst.msk [vmem:[#allocation2 + $0xd0] sm:$0xf] %vm5731, %v5644
      %5785 = vst.msk [vmem:[#allocation2 + $0xd4] sm:$0xf] %vm5731, %v5646
      %5786 = vst.msk [vmem:[#allocation2 + $0xd8] sm:$0xf] %vm5731, %v5648
      %5787 = vst.msk [vmem:[#allocation2 + $0xdc] sm:$0xf] %vm5731, %v5650
      %5788 = vst.msk [vmem:[#allocation2 + $0xe0] sm:$0xf] %vm5731, %v5652
      %5789 = vst.msk [vmem:[#allocation2 + $0xe4] sm:$0xf] %vm5731, %v5654
      %5790 = vst.msk [vmem:[#allocation2 + $0xe8] sm:$0xf] %vm5731, %v5656
      %5791 = vst.msk [vmem:[#allocation2 + $0xec] sm:$0xf] %vm5731, %v5658
      %5792 = vst.msk [vmem:[#allocation2 + $0xf0] sm:$0xf] %vm5731, %v5660
      %5793 = vst.msk [vmem:[#allocation2 + $0xf4] sm:$0xf] %vm5731, %v5662
      %5794 = vst.msk [vmem:[#allocation2 + $0xf8] sm:$0xf] %vm5731, %v5664
      %5795 = vst.msk [vmem:[#allocation2 + $0xfc] sm:$0xf] %vm5731, %v5666
      %v5796 = vld [vmem:[%s4289] sm:$0xe]
      %v5797 = vld [vmem:[%s4289 + $0x4] sm:$0xf]
      %v5798 = vld [vmem:[%s4289 + $0x8] sm:$0x1]
      %v5799 = vld [vmem:[%s4289 + $0xc] sm:$0xe]
      %v5800 = vld [vmem:[%s4289 + $0x10] sm:$0xf]
      %v5801 = vld [vmem:[%s4289 + $0x14] sm:$0x1]
      %v5802 = vld [vmem:[%s4289 + $0x18] sm:$0xe]
      %v5803 = vld [vmem:[%s4289 + $0x1c] sm:$0xf]
      %v5804 = vld [vmem:[%s4289 + $0x20] sm:$0x1]
      %v5805 = vld [vmem:[%s4289 + $0x24] sm:$0xe]
      %v5806 = vld [vmem:[%s4289 + $0x28] sm:$0xf]
      %v5807 = vld [vmem:[%s4289 + $0x2c] sm:$0x1]
      %v5808 = vld [vmem:[%s4289 + $0x30] sm:$0xe]
      %v5809 = vld [vmem:[%s4289 + $0x34] sm:$0xf]
      %v5810 = vld [vmem:[%s4289 + $0x38] sm:$0x1]
      %v5811 = vld [vmem:[%s4289 + $0x3c] sm:$0xe]
      %v5812 = vld [vmem:[%s4289 + $0x40] sm:$0xf]
      %v5813 = vld [vmem:[%s4289 + $0x44] sm:$0x1]
      %v5814 = vld [vmem:[%s4289 + $0x48] sm:$0xe]
      %v5815 = vld [vmem:[%s4289 + $0x4c] sm:$0xf]
      %v5816 = vld [vmem:[%s4289 + $0x50] sm:$0x1]
      %v5817 = vld [vmem:[%s4289 + $0x54] sm:$0xe]
      %v5818 = vld [vmem:[%s4289 + $0x58] sm:$0xf]
      %v5819 = vld [vmem:[%s4289 + $0x5c] sm:$0x1]
      %v5820 = vld [vmem:[%s4289 + $0x60] sm:$0xe]
      %v5821 = vld [vmem:[%s4289 + $0x64] sm:$0xf]
      %v5822 = vld [vmem:[%s4289 + $0x68] sm:$0x1]
      %v5823 = vld [vmem:[%s4289 + $0x6c] sm:$0xe]
      %v5824 = vld [vmem:[%s4289 + $0x70] sm:$0xf]
      %v5825 = vld [vmem:[%s4289 + $0x74] sm:$0x1]
      %v5826 = vld [vmem:[%s4289 + $0x78] sm:$0xe]
      %v5827 = vld [vmem:[%s4289 + $0x7c] sm:$0xf]
      %v5828 = vld [vmem:[%s4289 + $0x80] sm:$0x1]
      %v5829 = vld [vmem:[%s4289 + $0x84] sm:$0xe]
      %v5830 = vld [vmem:[%s4289 + $0x88] sm:$0xf]
      %v5831 = vld [vmem:[%s4289 + $0x8c] sm:$0x1]
      %v5832 = vld [vmem:[%s4289 + $0x90] sm:$0xe]
      %v5833 = vld [vmem:[%s4289 + $0x94] sm:$0xf]
      %v5834 = vld [vmem:[%s4289 + $0x98] sm:$0x1]
      %v5835 = vld [vmem:[%s4289 + $0x9c] sm:$0xe]
      %v5836 = vld [vmem:[%s4289 + $0xa0] sm:$0xf]
      %v5837 = vld [vmem:[%s4289 + $0xa4] sm:$0x1]
      %v5838 = vld [vmem:[%s4289 + $0xa8] sm:$0xe]
      %v5839 = vld [vmem:[%s4289 + $0xac] sm:$0xf]
      %v5840 = vld [vmem:[%s4289 + $0xb0] sm:$0x1]
      %v5841 = vld [vmem:[%s4289 + $0xb4] sm:$0xe]
      %v5842 = vld [vmem:[%s4289 + $0xb8] sm:$0xf]
      %v5843 = vld [vmem:[%s4289 + $0xbc] sm:$0x1]
      %v5844 = vld [vmem:[%s4289 + $0xd8] sm:$0xe]
      %v5845 = vld [vmem:[%s4289 + $0xdc] sm:$0xf]
      %v5846 = vld [vmem:[%s4289 + $0xe0] sm:$0x1]
      %v5847 = vld [vmem:[%s4289 + $0xe4] sm:$0xe]
      %v5848 = vld [vmem:[%s4289 + $0xe8] sm:$0xf]
      %v5849 = vld [vmem:[%s4289 + $0xec] sm:$0x1]
      %v5850 = vld [vmem:[%s4289 + $0xf0] sm:$0xe]
      %v5851 = vld [vmem:[%s4289 + $0xf4] sm:$0xf]
      %v5852 = vld [vmem:[%s4289 + $0xf8] sm:$0x1]
      %v5853 = vld [vmem:[%s4289 + $0xfc] sm:$0xe]
      %v5854 = vld [vmem:[%s4289 + $0x100] sm:$0xf]
      %v5855 = vld [vmem:[%s4289 + $0x104] sm:$0x1]
      %v5856 = vld [vmem:[%s4289 + $0x108] sm:$0xe]
      %v5857 = vld [vmem:[%s4289 + $0x10c] sm:$0xf]
      %v5858 = vld [vmem:[%s4289 + $0x110] sm:$0x1]
      %v5859 = vld [vmem:[%s4289 + $0x114] sm:$0xe]
      %v5860 = vld [vmem:[%s4289 + $0x118] sm:$0xf]
      %v5861 = vld [vmem:[%s4289 + $0x11c] sm:$0x1]
      %v5862 = vld [vmem:[%s4289 + $0x120] sm:$0xe]
      %v5863 = vld [vmem:[%s4289 + $0x124] sm:$0xf]
      %v5864 = vld [vmem:[%s4289 + $0x128] sm:$0x1]
      %v5865 = vld [vmem:[%s4289 + $0x12c] sm:$0xe]
      %v5866 = vld [vmem:[%s4289 + $0x130] sm:$0xf]
      %v5867 = vld [vmem:[%s4289 + $0x134] sm:$0x1]
      %v5868 = vld [vmem:[%s4289 + $0x138] sm:$0xe]
      %v5869 = vld [vmem:[%s4289 + $0x13c] sm:$0xf]
      %v5870 = vld [vmem:[%s4289 + $0x140] sm:$0x1]
      %v5871 = vld [vmem:[%s4289 + $0x144] sm:$0xe]
      %v5872 = vld [vmem:[%s4289 + $0x148] sm:$0xf]
      %v5873 = vld [vmem:[%s4289 + $0x14c] sm:$0x1]
      %v5874 = vld [vmem:[%s4289 + $0x150] sm:$0xe]
      %v5875 = vld [vmem:[%s4289 + $0x154] sm:$0xf]
      %v5876 = vld [vmem:[%s4289 + $0x158] sm:$0x1]
      %v5877 = vld [vmem:[%s4289 + $0x15c] sm:$0xe]
      %v5878 = vld [vmem:[%s4289 + $0x160] sm:$0xf]
      %v5879 = vld [vmem:[%s4289 + $0x164] sm:$0x1]
      %v5880 = vld [vmem:[%s4289 + $0x168] sm:$0xe]
      %v5881 = vld [vmem:[%s4289 + $0x16c] sm:$0xf]
      %v5882 = vld [vmem:[%s4289 + $0x170] sm:$0x1]
      %v5883 = vld [vmem:[%s4289 + $0x174] sm:$0xe]
      %v5884 = vld [vmem:[%s4289 + $0x178] sm:$0xf]
      %v5885 = vld [vmem:[%s4289 + $0x17c] sm:$0x1]
      %v5886 = vld [vmem:[%s4289 + $0x180] sm:$0xe]
      %v5887 = vld [vmem:[%s4289 + $0x184] sm:$0xf]
      %v5888 = vld [vmem:[%s4289 + $0x188] sm:$0x1]
      %v5889 = vld [vmem:[%s4289 + $0x18c] sm:$0xe]
      %v5890 = vld [vmem:[%s4289 + $0x190] sm:$0xf]
      %v5891 = vld [vmem:[%s4289 + $0x194] sm:$0x1]
      %v5988 = vrot.slane %v5796, 5
      %v5989 = vrot.slane %v5988, 4
      %v5990 = vrot.slane %v5797, 5
      %v5991 = vsel %vm1627, %v5989, %v5990
      %v5992 = vrot.slane %v5990, 4
      %v5993 = vrot.slane %v5798, 5
      %v5994 = vsel %vm1627, %v5992, %v5993
      %v5995 = vrot.slane %v5799, 5
      %v5996 = vrot.slane %v5995, 4
      %v5997 = vrot.slane %v5800, 5
      %v5998 = vsel %vm1627, %v5996, %v5997
      %v5999 = vrot.slane %v5997, 4
      %v6000 = vrot.slane %v5801, 5
      %v6001 = vsel %vm1627, %v5999, %v6000
      %v6002 = vrot.slane %v5802, 5
      %v6003 = vrot.slane %v6002, 4
      %v6004 = vrot.slane %v5803, 5
      %v6005 = vsel %vm1627, %v6003, %v6004
      %v6006 = vrot.slane %v6004, 4
      %v6007 = vrot.slane %v5804, 5
      %v6008 = vsel %vm1627, %v6006, %v6007
      %v6009 = vrot.slane %v5805, 5
      %v6010 = vrot.slane %v6009, 4
      %v6011 = vrot.slane %v5806, 5
      %v6012 = vsel %vm1627, %v6010, %v6011
      %v6013 = vrot.slane %v6011, 4
      %v6014 = vrot.slane %v5807, 5
      %v6015 = vsel %vm1627, %v6013, %v6014
      %v6016 = vrot.slane %v5808, 5
      %v6017 = vrot.slane %v6016, 4
      %v6018 = vrot.slane %v5809, 5
      %v6019 = vsel %vm1627, %v6017, %v6018
      %v6020 = vrot.slane %v6018, 4
      %v6021 = vrot.slane %v5810, 5
      %v6022 = vsel %vm1627, %v6020, %v6021
      %v6023 = vrot.slane %v5811, 5
      %v6024 = vrot.slane %v6023, 4
      %v6025 = vrot.slane %v5812, 5
      %v6026 = vsel %vm1627, %v6024, %v6025
      %v6027 = vrot.slane %v6025, 4
      %v6028 = vrot.slane %v5813, 5
      %v6029 = vsel %vm1627, %v6027, %v6028
      %v6030 = vrot.slane %v5814, 5
      %v6031 = vrot.slane %v6030, 4
      %v6032 = vrot.slane %v5815, 5
      %v6033 = vsel %vm1627, %v6031, %v6032
      %v6034 = vrot.slane %v6032, 4
      %v6035 = vrot.slane %v5816, 5
      %v6036 = vsel %vm1627, %v6034, %v6035
      %v6037 = vrot.slane %v5817, 5
      %v6038 = vrot.slane %v6037, 4
      %v6039 = vrot.slane %v5818, 5
      %v6040 = vsel %vm1627, %v6038, %v6039
      %v6041 = vrot.slane %v6039, 4
      %v6042 = vrot.slane %v5819, 5
      %v6043 = vsel %vm1627, %v6041, %v6042
      %v6044 = vrot.slane %v5820, 5
      %v6045 = vrot.slane %v6044, 4
      %v6046 = vrot.slane %v5821, 5
      %v6047 = vsel %vm1627, %v6045, %v6046
      %v6048 = vrot.slane %v6046, 4
      %v6049 = vrot.slane %v5822, 5
      %v6050 = vsel %vm1627, %v6048, %v6049
      %v6051 = vrot.slane %v5823, 5
      %v6052 = vrot.slane %v6051, 4
      %v6053 = vrot.slane %v5824, 5
      %v6054 = vsel %vm1627, %v6052, %v6053
      %v6055 = vrot.slane %v6053, 4
      %v6056 = vrot.slane %v5825, 5
      %v6057 = vsel %vm1627, %v6055, %v6056
      %v6058 = vrot.slane %v5826, 5
      %v6059 = vrot.slane %v6058, 4
      %v6060 = vrot.slane %v5827, 5
      %v6061 = vsel %vm1627, %v6059, %v6060
      %v6062 = vrot.slane %v6060, 4
      %v6063 = vrot.slane %v5828, 5
      %v6064 = vsel %vm1627, %v6062, %v6063
      %v6065 = vrot.slane %v5829, 5
      %v6066 = vrot.slane %v6065, 4
      %v6067 = vrot.slane %v5830, 5
      %v6068 = vsel %vm1627, %v6066, %v6067
      %v6069 = vrot.slane %v6067, 4
      %v6070 = vrot.slane %v5831, 5
      %v6071 = vsel %vm1627, %v6069, %v6070
      %v6072 = vrot.slane %v5832, 5
      %v6073 = vrot.slane %v6072, 4
      %v6074 = vrot.slane %v5833, 5
      %v6075 = vsel %vm1627, %v6073, %v6074
      %v6076 = vrot.slane %v6074, 4
      %v6077 = vrot.slane %v5834, 5
      %v6078 = vsel %vm1627, %v6076, %v6077
      %v6079 = vrot.slane %v5835, 5
      %v6080 = vrot.slane %v6079, 4
      %v6081 = vrot.slane %v5836, 5
      %v6082 = vsel %vm1627, %v6080, %v6081
      %v6083 = vrot.slane %v6081, 4
      %v6084 = vrot.slane %v5837, 5
      %v6085 = vsel %vm1627, %v6083, %v6084
      %v6086 = vrot.slane %v5838, 5
      %v6087 = vrot.slane %v6086, 4
      %v6088 = vrot.slane %v5839, 5
      %v6089 = vsel %vm1627, %v6087, %v6088
      %v6090 = vrot.slane %v6088, 4
      %v6091 = vrot.slane %v5840, 5
      %v6092 = vsel %vm1627, %v6090, %v6091
      %v6093 = vrot.slane %v5841, 5
      %v6094 = vrot.slane %v6093, 4
      %v6095 = vrot.slane %v5842, 5
      %v6096 = vsel %vm1627, %v6094, %v6095
      %v6097 = vrot.slane %v6095, 4
      %v6098 = vrot.slane %v5843, 5
      %v6099 = vsel %vm1627, %v6097, %v6098
      %v6100 = vrot.slane %v5844, 5
      %v6101 = vrot.slane %v6100, 4
      %v6102 = vrot.slane %v5845, 5
      %v6103 = vsel %vm1627, %v6101, %v6102
      %v6104 = vrot.slane %v6102, 4
      %v6105 = vrot.slane %v5846, 5
      %v6106 = vsel %vm1627, %v6104, %v6105
      %v6107 = vrot.slane %v5847, 5
      %v6108 = vrot.slane %v6107, 4
      %v6109 = vrot.slane %v5848, 5
      %v6110 = vsel %vm1627, %v6108, %v6109
      %v6111 = vrot.slane %v6109, 4
      %v6112 = vrot.slane %v5849, 5
      %v6113 = vsel %vm1627, %v6111, %v6112
      %v6114 = vrot.slane %v5850, 5
      %v6115 = vrot.slane %v6114, 4
      %v6116 = vrot.slane %v5851, 5
      %v6117 = vsel %vm1627, %v6115, %v6116
      %v6118 = vrot.slane %v6116, 4
      %v6119 = vrot.slane %v5852, 5
      %v6120 = vsel %vm1627, %v6118, %v6119
      %v6121 = vrot.slane %v5853, 5
      %v6122 = vrot.slane %v6121, 4
      %v6123 = vrot.slane %v5854, 5
      %v6124 = vsel %vm1627, %v6122, %v6123
      %v6125 = vrot.slane %v6123, 4
      %v6126 = vrot.slane %v5855, 5
      %v6127 = vsel %vm1627, %v6125, %v6126
      %v6128 = vrot.slane %v5856, 5
      %v6129 = vrot.slane %v6128, 4
      %v6130 = vrot.slane %v5857, 5
      %v6131 = vsel %vm1627, %v6129, %v6130
      %v6132 = vrot.slane %v6130, 4
      %v6133 = vrot.slane %v5858, 5
      %v6134 = vsel %vm1627, %v6132, %v6133
      %v6135 = vrot.slane %v5859, 5
      %v6136 = vrot.slane %v6135, 4
      %v6137 = vrot.slane %v5860, 5
      %v6138 = vsel %vm1627, %v6136, %v6137
      %v6139 = vrot.slane %v6137, 4
      %v6140 = vrot.slane %v5861, 5
      %v6141 = vsel %vm1627, %v6139, %v6140
      %v6142 = vrot.slane %v5862, 5
      %v6143 = vrot.slane %v6142, 4
      %v6144 = vrot.slane %v5863, 5
      %v6145 = vsel %vm1627, %v6143, %v6144
      %v6146 = vrot.slane %v6144, 4
      %v6147 = vrot.slane %v5864, 5
      %v6148 = vsel %vm1627, %v6146, %v6147
      %v6149 = vrot.slane %v5865, 5
      %v6150 = vrot.slane %v6149, 4
      %v6151 = vrot.slane %v5866, 5
      %v6152 = vsel %vm1627, %v6150, %v6151
      %v6153 = vrot.slane %v6151, 4
      %v6154 = vrot.slane %v5867, 5
      %v6155 = vsel %vm1627, %v6153, %v6154
      %v6156 = vrot.slane %v5868, 5
      %v6157 = vrot.slane %v6156, 4
      %v6158 = vrot.slane %v5869, 5
      %v6159 = vsel %vm1627, %v6157, %v6158
      %v6160 = vrot.slane %v6158, 4
      %v6161 = vrot.slane %v5870, 5
      %v6162 = vsel %vm1627, %v6160, %v6161
      %v6163 = vrot.slane %v5871, 5
      %v6164 = vrot.slane %v6163, 4
      %v6165 = vrot.slane %v5872, 5
      %v6166 = vsel %vm1627, %v6164, %v6165
      %v6167 = vrot.slane %v6165, 4
      %v6168 = vrot.slane %v5873, 5
      %v6169 = vsel %vm1627, %v6167, %v6168
      %v6170 = vrot.slane %v5874, 5
      %v6171 = vrot.slane %v6170, 4
      %v6172 = vrot.slane %v5875, 5
      %v6173 = vsel %vm1627, %v6171, %v6172
      %v6174 = vrot.slane %v6172, 4
      %v6175 = vrot.slane %v5876, 5
      %v6176 = vsel %vm1627, %v6174, %v6175
      %v6177 = vrot.slane %v5877, 5
      %v6178 = vrot.slane %v6177, 4
      %v6179 = vrot.slane %v5878, 5
      %v6180 = vsel %vm1627, %v6178, %v6179
      %v6181 = vrot.slane %v6179, 4
      %v6182 = vrot.slane %v5879, 5
      %v6183 = vsel %vm1627, %v6181, %v6182
      %v6184 = vrot.slane %v5880, 5
      %v6185 = vrot.slane %v6184, 4
      %v6186 = vrot.slane %v5881, 5
      %v6187 = vsel %vm1627, %v6185, %v6186
      %v6188 = vrot.slane %v6186, 4
      %v6189 = vrot.slane %v5882, 5
      %v6190 = vsel %vm1627, %v6188, %v6189
      %v6191 = vrot.slane %v5883, 5
      %v6192 = vrot.slane %v6191, 4
      %v6193 = vrot.slane %v5884, 5
      %v6194 = vsel %vm1627, %v6192, %v6193
      %v6195 = vrot.slane %v6193, 4
      %v6196 = vrot.slane %v5885, 5
      %v6197 = vsel %vm1627, %v6195, %v6196
      %v6198 = vrot.slane %v5886, 5
      %v6199 = vrot.slane %v6198, 4
      %v6200 = vrot.slane %v5887, 5
      %v6201 = vsel %vm1627, %v6199, %v6200
      %v6202 = vrot.slane %v6200, 4
      %v6203 = vrot.slane %v5888, 5
      %v6204 = vsel %vm1627, %v6202, %v6203
      %v6205 = vrot.slane %v5889, 5
      %v6206 = vrot.slane %v6205, 4
      %v6207 = vrot.slane %v5890, 5
      %v6208 = vsel %vm1627, %v6206, %v6207
      %v6209 = vrot.slane %v6207, 4
      %v6210 = vrot.slane %v5891, 5
      %v6211 = vsel %vm1627, %v6209, %v6210
      %6212 = vrot.lane.b32.xlu0 %v5991, 32
      %v6213 = vpop.permute.xlu0 %6212
      %6214 = vrot.lane.b32.xlu0 %v5994, 32
      %v6215 = vpop.permute.xlu0 %6214
      %6216 = vrot.lane.b32.xlu0 %v5998, 32
      %v6217 = vpop.permute.xlu0 %6216
      %6218 = vrot.lane.b32.xlu0 %v6001, 32
      %v6219 = vpop.permute.xlu0 %6218
      %6220 = vrot.lane.b32.xlu0 %v6005, 32
      %v6221 = vpop.permute.xlu0 %6220
      %6222 = vrot.lane.b32.xlu0 %v6008, 32
      %v6223 = vpop.permute.xlu0 %6222
      %6224 = vrot.lane.b32.xlu0 %v6012, 32
      %v6225 = vpop.permute.xlu0 %6224
      %6226 = vrot.lane.b32.xlu0 %v6015, 32
      %v6227 = vpop.permute.xlu0 %6226
      %6228 = vrot.lane.b32.xlu0 %v6019, 32
      %v6229 = vpop.permute.xlu0 %6228
      %6230 = vrot.lane.b32.xlu0 %v6022, 32
      %v6231 = vpop.permute.xlu0 %6230
      %6232 = vrot.lane.b32.xlu0 %v6026, 32
      %v6233 = vpop.permute.xlu0 %6232
      %6234 = vrot.lane.b32.xlu0 %v6029, 32
      %v6235 = vpop.permute.xlu0 %6234
      %6236 = vrot.lane.b32.xlu0 %v6033, 32
      %v6237 = vpop.permute.xlu0 %6236
      %6238 = vrot.lane.b32.xlu0 %v6036, 32
      %v6239 = vpop.permute.xlu0 %6238
      %6240 = vrot.lane.b32.xlu0 %v6040, 32
      %v6241 = vpop.permute.xlu0 %6240
      %6242 = vrot.lane.b32.xlu0 %v6043, 32
      %v6243 = vpop.permute.xlu0 %6242
      %6244 = vrot.lane.b32.xlu0 %v6047, 32
      %v6245 = vpop.permute.xlu0 %6244
      %6246 = vrot.lane.b32.xlu0 %v6050, 32
      %v6247 = vpop.permute.xlu0 %6246
      %6248 = vrot.lane.b32.xlu0 %v6054, 32
      %v6249 = vpop.permute.xlu0 %6248
      %6250 = vrot.lane.b32.xlu0 %v6057, 32
      %v6251 = vpop.permute.xlu0 %6250
      %6252 = vrot.lane.b32.xlu0 %v6061, 32
      %v6253 = vpop.permute.xlu0 %6252
      %6254 = vrot.lane.b32.xlu0 %v6064, 32
      %v6255 = vpop.permute.xlu0 %6254
      %6256 = vrot.lane.b32.xlu0 %v6068, 32
      %v6257 = vpop.permute.xlu0 %6256
      %6258 = vrot.lane.b32.xlu0 %v6071, 32
      %v6259 = vpop.permute.xlu0 %6258
      %6260 = vrot.lane.b32.xlu0 %v6075, 32
      %v6261 = vpop.permute.xlu0 %6260
      %6262 = vrot.lane.b32.xlu0 %v6078, 32
      %v6263 = vpop.permute.xlu0 %6262
      %6264 = vrot.lane.b32.xlu0 %v6082, 32
      %v6265 = vpop.permute.xlu0 %6264
      %6266 = vrot.lane.b32.xlu0 %v6085, 32
      %v6267 = vpop.permute.xlu0 %6266
      %6268 = vrot.lane.b32.xlu0 %v6089, 32
      %v6269 = vpop.permute.xlu0 %6268
      %6270 = vrot.lane.b32.xlu0 %v6092, 32
      %v6271 = vpop.permute.xlu0 %6270
      %6272 = vrot.lane.b32.xlu0 %v6096, 32
      %v6273 = vpop.permute.xlu0 %6272
      %6274 = vrot.lane.b32.xlu0 %v6099, 32
      %v6275 = vpop.permute.xlu0 %6274
      %6276 = vrot.lane.b32.xlu0 %v6103, 32
      %v6277 = vpop.permute.xlu0 %6276
      %6278 = vrot.lane.b32.xlu0 %v6106, 32
      %v6279 = vpop.permute.xlu0 %6278
      %6280 = vrot.lane.b32.xlu0 %v6110, 32
      %v6281 = vpop.permute.xlu0 %6280
      %6282 = vrot.lane.b32.xlu0 %v6113, 32
      %v6283 = vpop.permute.xlu0 %6282
      %6284 = vrot.lane.b32.xlu0 %v6117, 32
      %v6285 = vpop.permute.xlu0 %6284
      %6286 = vrot.lane.b32.xlu0 %v6120, 32
      %v6287 = vpop.permute.xlu0 %6286
      %6288 = vrot.lane.b32.xlu0 %v6124, 32
      %v6289 = vpop.permute.xlu0 %6288
      %6290 = vrot.lane.b32.xlu0 %v6127, 32
      %v6291 = vpop.permute.xlu0 %6290
      %6292 = vrot.lane.b32.xlu0 %v6131, 32
      %v6293 = vpop.permute.xlu0 %6292
      %6294 = vrot.lane.b32.xlu0 %v6134, 32
      %v6295 = vpop.permute.xlu0 %6294
      %6296 = vrot.lane.b32.xlu0 %v6138, 32
      %v6297 = vpop.permute.xlu0 %6296
      %6298 = vrot.lane.b32.xlu0 %v6141, 32
      %v6299 = vpop.permute.xlu0 %6298
      %6300 = vrot.lane.b32.xlu0 %v6145, 32
      %v6301 = vpop.permute.xlu0 %6300
      %6302 = vrot.lane.b32.xlu0 %v6148, 32
      %v6303 = vpop.permute.xlu0 %6302
      %6304 = vrot.lane.b32.xlu0 %v6152, 32
      %v6305 = vpop.permute.xlu0 %6304
      %6306 = vrot.lane.b32.xlu0 %v6155, 32
      %v6307 = vpop.permute.xlu0 %6306
      %6308 = vrot.lane.b32.xlu0 %v6159, 32
      %v6309 = vpop.permute.xlu0 %6308
      %6310 = vrot.lane.b32.xlu0 %v6162, 32
      %v6311 = vpop.permute.xlu0 %6310
      %6312 = vrot.lane.b32.xlu0 %v6166, 32
      %v6313 = vpop.permute.xlu0 %6312
      %6314 = vrot.lane.b32.xlu0 %v6169, 32
      %v6315 = vpop.permute.xlu0 %6314
      %6316 = vrot.lane.b32.xlu0 %v6173, 32
      %v6317 = vpop.permute.xlu0 %6316
      %6318 = vrot.lane.b32.xlu0 %v6176, 32
      %v6319 = vpop.permute.xlu0 %6318
      %6320 = vrot.lane.b32.xlu0 %v6180, 32
      %v6321 = vpop.permute.xlu0 %6320
      %6322 = vrot.lane.b32.xlu0 %v6183, 32
      %v6323 = vpop.permute.xlu0 %6322
      %6324 = vrot.lane.b32.xlu0 %v6187, 32
      %v6325 = vpop.permute.xlu0 %6324
      %6326 = vrot.lane.b32.xlu0 %v6190, 32
      %v6327 = vpop.permute.xlu0 %6326
      %6328 = vrot.lane.b32.xlu0 %v6194, 32
      %v6329 = vpop.permute.xlu0 %6328
      %6330 = vrot.lane.b32.xlu0 %v6197, 32
      %v6331 = vpop.permute.xlu0 %6330
      %6332 = vrot.lane.b32.xlu0 %v6201, 32
      %v6333 = vpop.permute.xlu0 %6332
      %6334 = vrot.lane.b32.xlu0 %v6204, 32
      %v6335 = vpop.permute.xlu0 %6334
      %6336 = vrot.lane.b32.xlu0 %v6208, 32
      %v6337 = vpop.permute.xlu0 %6336
      %6338 = vrot.lane.b32.xlu0 %v6211, 32
      %v6339 = vpop.permute.xlu0 %6338
      %vm6404 = vcmask 290048
      %6405 = vst.msk [vmem:[#allocation2] sm:$0xf] %vm6404, %v6213
      %6406 = vst.msk [vmem:[#allocation2 + $0x4] sm:$0xf] %vm6404, %v6215
      %6407 = vst.msk [vmem:[#allocation2 + $0x8] sm:$0xf] %vm6404, %v6217
      %6408 = vst.msk [vmem:[#allocation2 + $0xc] sm:$0xf] %vm6404, %v6219
      %6409 = vst.msk [vmem:[#allocation2 + $0x10] sm:$0xf] %vm6404, %v6221
      %6410 = vst.msk [vmem:[#allocation2 + $0x14] sm:$0xf] %vm6404, %v6223
      %6411 = vst.msk [vmem:[#allocation2 + $0x18] sm:$0xf] %vm6404, %v6225
      %6412 = vst.msk [vmem:[#allocation2 + $0x1c] sm:$0xf] %vm6404, %v6227
      %6413 = vst.msk [vmem:[#allocation2 + $0x20] sm:$0xf] %vm6404, %v6229
      %6414 = vst.msk [vmem:[#allocation2 + $0x24] sm:$0xf] %vm6404, %v6231
      %6415 = vst.msk [vmem:[#allocation2 + $0x28] sm:$0xf] %vm6404, %v6233
      %6416 = vst.msk [vmem:[#allocation2 + $0x2c] sm:$0xf] %vm6404, %v6235
      %6417 = vst.msk [vmem:[#allocation2 + $0x30] sm:$0xf] %vm6404, %v6237
      %6418 = vst.msk [vmem:[#allocation2 + $0x34] sm:$0xf] %vm6404, %v6239
      %6419 = vst.msk [vmem:[#allocation2 + $0x38] sm:$0xf] %vm6404, %v6241
      %6420 = vst.msk [vmem:[#allocation2 + $0x3c] sm:$0xf] %vm6404, %v6243
      %6421 = vst.msk [vmem:[#allocation2 + $0x40] sm:$0xf] %vm6404, %v6245
      %6422 = vst.msk [vmem:[#allocation2 + $0x44] sm:$0xf] %vm6404, %v6247
      %6423 = vst.msk [vmem:[#allocation2 + $0x48] sm:$0xf] %vm6404, %v6249
      %6424 = vst.msk [vmem:[#allocation2 + $0x4c] sm:$0xf] %vm6404, %v6251
      %6425 = vst.msk [vmem:[#allocation2 + $0x50] sm:$0xf] %vm6404, %v6253
      %6426 = vst.msk [vmem:[#allocation2 + $0x54] sm:$0xf] %vm6404, %v6255
      %6427 = vst.msk [vmem:[#allocation2 + $0x58] sm:$0xf] %vm6404, %v6257
      %6428 = vst.msk [vmem:[#allocation2 + $0x5c] sm:$0xf] %vm6404, %v6259
      %6429 = vst.msk [vmem:[#allocation2 + $0x60] sm:$0xf] %vm6404, %v6261
      %6430 = vst.msk [vmem:[#allocation2 + $0x64] sm:$0xf] %vm6404, %v6263
      %6431 = vst.msk [vmem:[#allocation2 + $0x68] sm:$0xf] %vm6404, %v6265
      %6432 = vst.msk [vmem:[#allocation2 + $0x6c] sm:$0xf] %vm6404, %v6267
      %6433 = vst.msk [vmem:[#allocation2 + $0x70] sm:$0xf] %vm6404, %v6269
      %6434 = vst.msk [vmem:[#allocation2 + $0x74] sm:$0xf] %vm6404, %v6271
      %6435 = vst.msk [vmem:[#allocation2 + $0x78] sm:$0xf] %vm6404, %v6273
      %6436 = vst.msk [vmem:[#allocation2 + $0x7c] sm:$0xf] %vm6404, %v6275
      %6437 = vst.msk [vmem:[#allocation2 + $0x80] sm:$0xf] %vm6404, %v6277
      %6438 = vst.msk [vmem:[#allocation2 + $0x84] sm:$0xf] %vm6404, %v6279
      %6439 = vst.msk [vmem:[#allocation2 + $0x88] sm:$0xf] %vm6404, %v6281
      %6440 = vst.msk [vmem:[#allocation2 + $0x8c] sm:$0xf] %vm6404, %v6283
      %6441 = vst.msk [vmem:[#allocation2 + $0x90] sm:$0xf] %vm6404, %v6285
      %6442 = vst.msk [vmem:[#allocation2 + $0x94] sm:$0xf] %vm6404, %v6287
      %6443 = vst.msk [vmem:[#allocation2 + $0x98] sm:$0xf] %vm6404, %v6289
      %6444 = vst.msk [vmem:[#allocation2 + $0x9c] sm:$0xf] %vm6404, %v6291
      %6445 = vst.msk [vmem:[#allocation2 + $0xa0] sm:$0xf] %vm6404, %v6293
      %6446 = vst.msk [vmem:[#allocation2 + $0xa4] sm:$0xf] %vm6404, %v6295
      %6447 = vst.msk [vmem:[#allocation2 + $0xa8] sm:$0xf] %vm6404, %v6297
      %6448 = vst.msk [vmem:[#allocation2 + $0xac] sm:$0xf] %vm6404, %v6299
      %6449 = vst.msk [vmem:[#allocation2 + $0xb0] sm:$0xf] %vm6404, %v6301
      %6450 = vst.msk [vmem:[#allocation2 + $0xb4] sm:$0xf] %vm6404, %v6303
      %6451 = vst.msk [vmem:[#allocation2 + $0xb8] sm:$0xf] %vm6404, %v6305
      %6452 = vst.msk [vmem:[#allocation2 + $0xbc] sm:$0xf] %vm6404, %v6307
      %6453 = vst.msk [vmem:[#allocation2 + $0xc0] sm:$0xf] %vm6404, %v6309
      %6454 = vst.msk [vmem:[#allocation2 + $0xc4] sm:$0xf] %vm6404, %v6311
      %6455 = vst.msk [vmem:[#allocation2 + $0xc8] sm:$0xf] %vm6404, %v6313
      %6456 = vst.msk [vmem:[#allocation2 + $0xcc] sm:$0xf] %vm6404, %v6315
      %6457 = vst.msk [vmem:[#allocation2 + $0xd0] sm:$0xf] %vm6404, %v6317
      %6458 = vst.msk [vmem:[#allocation2 + $0xd4] sm:$0xf] %vm6404, %v6319
      %6459 = vst.msk [vmem:[#allocation2 + $0xd8] sm:$0xf] %vm6404, %v6321
      %6460 = vst.msk [vmem:[#allocation2 + $0xdc] sm:$0xf] %vm6404, %v6323
      %6461 = vst.msk [vmem:[#allocation2 + $0xe0] sm:$0xf] %vm6404, %v6325
      %6462 = vst.msk [vmem:[#allocation2 + $0xe4] sm:$0xf] %vm6404, %v6327
      %6463 = vst.msk [vmem:[#allocation2 + $0xe8] sm:$0xf] %vm6404, %v6329
      %6464 = vst.msk [vmem:[#allocation2 + $0xec] sm:$0xf] %vm6404, %v6331
      %6465 = vst.msk [vmem:[#allocation2 + $0xf0] sm:$0xf] %vm6404, %v6333
      %6466 = vst.msk [vmem:[#allocation2 + $0xf4] sm:$0xf] %vm6404, %v6335
      %6467 = vst.msk [vmem:[#allocation2 + $0xf8] sm:$0xf] %vm6404, %v6337
      %6468 = vst.msk [vmem:[#allocation2 + $0xfc] sm:$0xf] %vm6404, %v6339
      %v6469 = vld [vmem:[#allocation2] sm:$0xf]
      %v6470 = vld [vmem:[#allocation2 + $0x4] sm:$0xf]
      %v6471 = vld [vmem:[#allocation2 + $0x8] sm:$0xf]
      %v6472 = vld [vmem:[#allocation2 + $0xc] sm:$0xf]
      %v6473 = vld [vmem:[#allocation2 + $0x10] sm:$0xf]
      %v6474 = vld [vmem:[#allocation2 + $0x14] sm:$0xf]
      %v6475 = vld [vmem:[#allocation2 + $0x18] sm:$0xf]
      %v6476 = vld [vmem:[#allocation2 + $0x1c] sm:$0xf]
      %v6477 = vld [vmem:[#allocation2 + $0x20] sm:$0xf]
      %v6478 = vld [vmem:[#allocation2 + $0x24] sm:$0xf]
      %v6479 = vld [vmem:[#allocation2 + $0x28] sm:$0xf]
      %v6480 = vld [vmem:[#allocation2 + $0x2c] sm:$0xf]
      %v6481 = vld [vmem:[#allocation2 + $0x30] sm:$0xf]
      %v6482 = vld [vmem:[#allocation2 + $0x34] sm:$0xf]
      %v6483 = vld [vmem:[#allocation2 + $0x38] sm:$0xf]
      %v6484 = vld [vmem:[#allocation2 + $0x3c] sm:$0xf]
      %v6485 = vld [vmem:[#allocation2 + $0x40] sm:$0xf]
      %v6486 = vld [vmem:[#allocation2 + $0x44] sm:$0xf]
      %v6487 = vld [vmem:[#allocation2 + $0x48] sm:$0xf]
      %v6488 = vld [vmem:[#allocation2 + $0x4c] sm:$0xf]
      %v6489 = vld [vmem:[#allocation2 + $0x50] sm:$0xf]
      %v6490 = vld [vmem:[#allocation2 + $0x54] sm:$0xf]
      %v6491 = vld [vmem:[#allocation2 + $0x58] sm:$0xf]
      %v6492 = vld [vmem:[#allocation2 + $0x5c] sm:$0xf]
      %v6493 = vld [vmem:[#allocation2 + $0x60] sm:$0xf]
      %v6494 = vld [vmem:[#allocation2 + $0x64] sm:$0xf]
      %v6495 = vld [vmem:[#allocation2 + $0x68] sm:$0xf]
      %v6496 = vld [vmem:[#allocation2 + $0x6c] sm:$0xf]
      %v6497 = vld [vmem:[#allocation2 + $0x70] sm:$0xf]
      %v6498 = vld [vmem:[#allocation2 + $0x74] sm:$0xf]
      %v6499 = vld [vmem:[#allocation2 + $0x78] sm:$0xf]
      %v6500 = vld [vmem:[#allocation2 + $0x7c] sm:$0xf]
      %v6501 = vld [vmem:[#allocation2 + $0x80] sm:$0xf]
      %v6502 = vld [vmem:[#allocation2 + $0x84] sm:$0xf]
      %v6503 = vld [vmem:[#allocation2 + $0x88] sm:$0xf]
      %v6504 = vld [vmem:[#allocation2 + $0x8c] sm:$0xf]
      %v6505 = vld [vmem:[#allocation2 + $0x90] sm:$0xf]
      %v6506 = vld [vmem:[#allocation2 + $0x94] sm:$0xf]
      %v6507 = vld [vmem:[#allocation2 + $0x98] sm:$0xf]
      %v6508 = vld [vmem:[#allocation2 + $0x9c] sm:$0xf]
      %v6509 = vld [vmem:[#allocation2 + $0xa0] sm:$0xf]
      %v6510 = vld [vmem:[#allocation2 + $0xa4] sm:$0xf]
      %v6511 = vld [vmem:[#allocation2 + $0xa8] sm:$0xf]
      %v6512 = vld [vmem:[#allocation2 + $0xac] sm:$0xf]
      %v6513 = vld [vmem:[#allocation2 + $0xb0] sm:$0xf]
      %v6514 = vld [vmem:[#allocation2 + $0xb4] sm:$0xf]
      %v6515 = vld [vmem:[#allocation2 + $0xb8] sm:$0xf]
      %v6516 = vld [vmem:[#allocation2 + $0xbc] sm:$0xf]
      %v6517 = vld [vmem:[#allocation2 + $0xc0] sm:$0xf]
      %v6518 = vld [vmem:[#allocation2 + $0xc4] sm:$0xf]
      %v6519 = vld [vmem:[#allocation2 + $0xc8] sm:$0xf]
      %v6520 = vld [vmem:[#allocation2 + $0xcc] sm:$0xf]
      %v6521 = vld [vmem:[#allocation2 + $0xd0] sm:$0xf]
      %v6522 = vld [vmem:[#allocation2 + $0xd4] sm:$0xf]
      %v6523 = vld [vmem:[#allocation2 + $0xd8] sm:$0xf]
      %v6524 = vld [vmem:[#allocation2 + $0xdc] sm:$0xf]
      %v6525 = vld [vmem:[#allocation2 + $0xe0] sm:$0xf]
      %v6526 = vld [vmem:[#allocation2 + $0xe4] sm:$0xf]
      %v6527 = vld [vmem:[#allocation2 + $0xe8] sm:$0xf]
      %v6528 = vld [vmem:[#allocation2 + $0xec] sm:$0xf]
      %v6529 = vld [vmem:[#allocation2 + $0xf0] sm:$0xf]
      %v6530 = vld [vmem:[#allocation2 + $0xf4] sm:$0xf]
      %v6531 = vld [vmem:[#allocation2 + $0xf8] sm:$0xf]
      %v6532 = vld [vmem:[#allocation2 + $0xfc] sm:$0xf]
      %v6533 = vld [vmem:[%s1] sm:$0xf]
      %v6534 = vld [vmem:[%s1 + $0x4] sm:$0xf]
      %v6535 = vld [vmem:[%s1 + $0x8] sm:$0xf]
      %v6536 = vld [vmem:[%s1 + $0xc] sm:$0xf]
      %v6537 = vld [vmem:[%s1 + $0x10] sm:$0x3]
      %v6538 = vld [vmem:[%s2] sm:$0x1]
      %v6540 = vlaneseq
      %v6541 = vshrl.u32 %v6540, 7
      %v6542 = vsub.s32 0, %v6541
      %v6543 = vrot.slane %v6538, %v6542
      %v6609 = vunpack.c.l.b16 %v6469
      %v6610 = vunpack.c.l.b16 %v6470
      %v6611 = vunpack.c.l.b16 %v6471
      %v6612 = vunpack.c.l.b16 %v6472
      %v6613 = vunpack.c.l.b16 %v6473
      %v6614 = vunpack.c.l.b16 %v6474
      %v6615 = vunpack.c.l.b16 %v6475
      %v6616 = vunpack.c.l.b16 %v6476
      %v6617 = vunpack.c.l.b16 %v6477
      %v6618 = vunpack.c.l.b16 %v6478
      %v6619 = vunpack.c.l.b16 %v6479
      %v6620 = vunpack.c.l.b16 %v6480
      %v6621 = vunpack.c.l.b16 %v6481
      %v6622 = vunpack.c.l.b16 %v6482
      %v6623 = vunpack.c.l.b16 %v6483
      %v6624 = vunpack.c.l.b16 %v6484
      %v6625 = vunpack.c.l.b16 %v6485
      %v6626 = vunpack.c.l.b16 %v6486
      %v6627 = vunpack.c.l.b16 %v6487
      %v6628 = vunpack.c.l.b16 %v6488
      %v6629 = vunpack.c.l.b16 %v6489
      %v6630 = vunpack.c.l.b16 %v6490
      %v6631 = vunpack.c.l.b16 %v6491
      %v6632 = vunpack.c.l.b16 %v6492
      %v6633 = vunpack.c.l.b16 %v6493
      %v6634 = vunpack.c.l.b16 %v6494
      %v6635 = vunpack.c.l.b16 %v6495
      %v6636 = vunpack.c.l.b16 %v6496
      %v6637 = vunpack.c.l.b16 %v6497
      %v6638 = vunpack.c.l.b16 %v6498
      %v6639 = vunpack.c.l.b16 %v6499
      %v6640 = vunpack.c.l.b16 %v6500
      %v6641 = vunpack.c.l.b16 %v6501
      %v6642 = vunpack.c.l.b16 %v6502
      %v6643 = vunpack.c.l.b16 %v6503
      %v6644 = vunpack.c.l.b16 %v6504
      %v6645 = vunpack.c.l.b16 %v6505
      %v6646 = vunpack.c.l.b16 %v6506
      %v6647 = vunpack.c.l.b16 %v6507
      %v6648 = vunpack.c.l.b16 %v6508
      %v6649 = vunpack.c.l.b16 %v6509
      %v6650 = vunpack.c.l.b16 %v6510
      %v6651 = vunpack.c.l.b16 %v6511
      %v6652 = vunpack.c.l.b16 %v6512
      %v6653 = vunpack.c.l.b16 %v6513
      %v6654 = vunpack.c.l.b16 %v6514
      %v6655 = vunpack.c.l.b16 %v6515
      %v6656 = vunpack.c.l.b16 %v6516
      %v6657 = vunpack.c.l.b16 %v6517
      %v6658 = vunpack.c.l.b16 %v6518
      %v6659 = vunpack.c.l.b16 %v6519
      %v6660 = vunpack.c.l.b16 %v6520
      %v6661 = vunpack.c.l.b16 %v6521
      %v6662 = vunpack.c.l.b16 %v6522
      %v6663 = vunpack.c.l.b16 %v6523
      %v6664 = vunpack.c.l.b16 %v6524
      %v6665 = vunpack.c.l.b16 %v6525
      %v6666 = vunpack.c.l.b16 %v6526
      %v6667 = vunpack.c.l.b16 %v6527
      %v6668 = vunpack.c.l.b16 %v6528
      %v6669 = vunpack.c.l.b16 %v6529
      %v6670 = vunpack.c.l.b16 %v6530
      %v6671 = vunpack.c.l.b16 %v6531
      %v6672 = vunpack.c.l.b16 %v6532
      %v6673 = vpack.c.b16 %v6610, %v6609
      %v6674 = vpack.c.b16 %v6612, %v6611
      %v6675 = vpack.c.b16 %v6614, %v6613
      %v6676 = vpack.c.b16 %v6616, %v6615
      %v6677 = vpack.c.b16 %v6618, %v6617
      %v6678 = vpack.c.b16 %v6620, %v6619
      %v6679 = vpack.c.b16 %v6622, %v6621
      %v6680 = vpack.c.b16 %v6624, %v6623
      %v6681 = vpack.c.b16 %v6626, %v6625
      %v6682 = vpack.c.b16 %v6628, %v6627
      %v6683 = vpack.c.b16 %v6630, %v6629
      %v6684 = vpack.c.b16 %v6632, %v6631
      %v6685 = vpack.c.b16 %v6634, %v6633
      %v6686 = vpack.c.b16 %v6636, %v6635
      %v6687 = vpack.c.b16 %v6638, %v6637
      %v6688 = vpack.c.b16 %v6640, %v6639
      %v6689 = vpack.c.b16 %v6642, %v6641
      %v6690 = vpack.c.b16 %v6644, %v6643
      %v6691 = vpack.c.b16 %v6646, %v6645
      %v6692 = vpack.c.b16 %v6648, %v6647
      %v6693 = vpack.c.b16 %v6650, %v6649
      %v6694 = vpack.c.b16 %v6652, %v6651
      %v6695 = vpack.c.b16 %v6654, %v6653
      %v6696 = vpack.c.b16 %v6656, %v6655
      %v6697 = vpack.c.b16 %v6658, %v6657
      %v6698 = vpack.c.b16 %v6660, %v6659
      %v6699 = vpack.c.b16 %v6662, %v6661
      %v6700 = vpack.c.b16 %v6664, %v6663
      %v6701 = vpack.c.b16 %v6666, %v6665
      %v6702 = vpack.c.b16 %v6668, %v6667
      %v6703 = vpack.c.b16 %v6670, %v6669
      %v6704 = vpack.c.b16 %v6672, %v6671
      %v6710 = vunpack.c.l.b16 %v6533
      %v6711 = vunpack.c.l.b16 %v6534
      %v6712 = vunpack.c.l.b16 %v6535
      %v6713 = vunpack.c.l.b16 %v6536
      %v6714 = vunpack.c.l.b16 %v6537
      %v6715 = vpack.c.b16 %v6711, %v6710
      %v6716 = vpack.c.b16 %v6713, %v6712
      %v6717 = vpack.c.b16 %v6714, %v6714
      %vm6720 = vcmask 293888
      %v6722 = vsel %vm6720, %v6673, 0
      %v6725 = vsel %vm6720, %v6674, 0
      %v6728 = vsel %vm6720, %v6675, 0
      %v6731 = vsel %vm6720, %v6676, 0
      %v6734 = vsel %vm6720, %v6677, 0
      %v6737 = vsel %vm6720, %v6678, 0
      %v6740 = vsel %vm6720, %v6679, 0
      %v6743 = vsel %vm6720, %v6680, 0
      %v6746 = vsel %vm6720, %v6681, 0
      %v6749 = vsel %vm6720, %v6682, 0
      %v6752 = vsel %vm6720, %v6683, 0
      %v6755 = vsel %vm6720, %v6684, 0
      %v6758 = vsel %vm6720, %v6685, 0
      %v6761 = vsel %vm6720, %v6686, 0
      %v6764 = vsel %vm6720, %v6687, 0
      %v6767 = vsel %vm6720, %v6688, 0
      %v6770 = vsel %vm6720, %v6689, 0
      %v6773 = vsel %vm6720, %v6690, 0
      %v6776 = vsel %vm6720, %v6691, 0
      %v6779 = vsel %vm6720, %v6692, 0
      %v6782 = vsel %vm6720, %v6693, 0
      %v6785 = vsel %vm6720, %v6694, 0
      %v6788 = vsel %vm6720, %v6695, 0
      %v6791 = vsel %vm6720, %v6696, 0
      %v6794 = vsel %vm6720, %v6697, 0
      %v6797 = vsel %vm6720, %v6698, 0
      %v6800 = vsel %vm6720, %v6699, 0
      %v6803 = vsel %vm6720, %v6700, 0
      %v6806 = vsel %vm6720, %v6701, 0
      %v6809 = vsel %vm6720, %v6702, 0
      %v6812 = vsel %vm6720, %v6703, 0
      %v6815 = vsel %vm6720, %v6704, 0
      %vm6817 = vcmask 1041408
      %v6819 = vsel %vm6817, %v6717, 0
      %6821 = vmatprep.subr.bf16.mxu0 0
      %6822 = vmatpush1.bf16.msra.mxu0 0
      %6823 = vmatprep.subr.bf16.mxu0 0
      %6824 = vmatpush1.bf16.msra.mxu0 0
      %6825 = vmatprep.subr.bf16.mxu0 0
      %6826 = vmatpush1.bf16.msra.mxu0 0
      %6827 = vmatprep.subr.bf16.mxu0 0
      %6828 = vmatpush1.bf16.msra.mxu0 0
      %6829 = vmatprep.subr.bf16.mxu0 0
      %6830 = vmatpush1.bf16.msra.mxu0 0
      %6831 = vmatprep.subr.bf16.mxu0 0
      %6832 = vmatpush1.bf16.msra.mxu0 %v6819
      %6833 = vmatprep.subr.bf16.mxu0 0
      %6834 = vmatpush1.bf16.msra.mxu0 %v6716
      %6835 = vmatprep.subr.bf16.mxu0 0
      %6836 = vmatpush1.bf16.msra.mxu0 %v6715
      %6837 = vmatprep.subr.bf16.mxu0 0
      %6838 = vmatpush2.bf16.msra.mxu0 0
      %6839 = vmatprep.subr.bf16.mxu0 0
      %6840 = vmatpush2.bf16.msra.mxu0 0
      %6841 = vmatprep.subr.bf16.mxu0 0
      %6842 = vmatpush2.bf16.msra.mxu0 0
      %6843 = vmatprep.subr.bf16.mxu0 0
      %6844 = vmatpush2.bf16.msra.mxu0 0
      %6845 = vmatprep.subr.bf16.mxu0 0
      %6846 = vmatpush2.bf16.msra.mxu0 0
      %6847 = vmatprep.subr.bf16.mxu0 0
      %6848 = vmatpush2.bf16.msra.mxu0 0
      %6849 = vmatprep.subr.bf16.mxu0 0
      %6850 = vmatpush2.bf16.msra.mxu0 0
      %6851 = vmatprep.subr.bf16.mxu0 0
      %6852 = vmatpush2.bf16.msra.mxu0 0
      %6853 = vmatprep.mubr.bf16.mxu0 0
      %6854 = vmatmul.mubr.bf16.gmra.mxu0 %v6722
      %v6855 = vpop.f32.mrf.mxu0
      %v6856 = vadd.f32 %v6543, %v6855
      %v6857 = vpop.f32.mrf.mxu0
      %v6858 = vpop.f32.mrf.mxu0
      %v6859 = vadd.f32 %v6543, %v6858
      %v6860 = vpop.f32.mrf.mxu0
      %6861 = vmatprep.mubr.bf16.mxu0 0
      %6862 = vmatmul.mubr.bf16.gmra.mxu0 %v6725
      %v6863 = vpop.f32.mrf.mxu0
      %v6864 = vadd.f32 %v6543, %v6863
      %v6865 = vpop.f32.mrf.mxu0
      %v6866 = vpop.f32.mrf.mxu0
      %v6867 = vadd.f32 %v6543, %v6866
      %v6868 = vpop.f32.mrf.mxu0
      %6869 = vmatprep.mubr.bf16.mxu0 0
      %6870 = vmatmul.mubr.bf16.gmra.mxu0 %v6728
      %v6871 = vpop.f32.mrf.mxu0
      %v6872 = vadd.f32 %v6543, %v6871
      %v6873 = vpop.f32.mrf.mxu0
      %v6874 = vpop.f32.mrf.mxu0
      %v6875 = vadd.f32 %v6543, %v6874
      %v6876 = vpop.f32.mrf.mxu0
      %6877 = vmatprep.mubr.bf16.mxu0 0
      %6878 = vmatmul.mubr.bf16.gmra.mxu0 %v6731
      %v6879 = vpop.f32.mrf.mxu0
      %v6880 = vadd.f32 %v6543, %v6879
      %v6881 = vpop.f32.mrf.mxu0
      %v6882 = vpop.f32.mrf.mxu0
      %v6883 = vadd.f32 %v6543, %v6882
      %v6884 = vpop.f32.mrf.mxu0
      %6885 = vmatprep.mubr.bf16.mxu0 0
      %6886 = vmatmul.mubr.bf16.gmra.mxu0 %v6734
      %v6887 = vpop.f32.mrf.mxu0
      %v6888 = vadd.f32 %v6543, %v6887
      %v6889 = vpop.f32.mrf.mxu0
      %v6890 = vpop.f32.mrf.mxu0
      %v6891 = vadd.f32 %v6543, %v6890
      %v6892 = vpop.f32.mrf.mxu0
      %6893 = vmatprep.mubr.bf16.mxu0 0
      %6894 = vmatmul.mubr.bf16.gmra.mxu0 %v6737
      %v6895 = vpop.f32.mrf.mxu0
      %v6896 = vadd.f32 %v6543, %v6895
      %v6897 = vpop.f32.mrf.mxu0
      %v6898 = vpop.f32.mrf.mxu0
      %v6899 = vadd.f32 %v6543, %v6898
      %v6900 = vpop.f32.mrf.mxu0
      %6901 = vmatprep.mubr.bf16.mxu0 0
      %6902 = vmatmul.mubr.bf16.gmra.mxu0 %v6740
      %v6903 = vpop.f32.mrf.mxu0
      %v6904 = vadd.f32 %v6543, %v6903
      %v6905 = vpop.f32.mrf.mxu0
      %v6906 = vpop.f32.mrf.mxu0
      %v6907 = vadd.f32 %v6543, %v6906
      %v6908 = vpop.f32.mrf.mxu0
      %6909 = vmatprep.mubr.bf16.mxu0 0
      %6910 = vmatmul.mubr.bf16.gmra.mxu0 %v6743
      %v6911 = vpop.f32.mrf.mxu0
      %v6912 = vadd.f32 %v6543, %v6911
      %v6913 = vpop.f32.mrf.mxu0
      %v6914 = vpop.f32.mrf.mxu0
      %v6915 = vadd.f32 %v6543, %v6914
      %v6916 = vpop.f32.mrf.mxu0
      %6917 = vmatprep.mubr.bf16.mxu0 0
      %6918 = vmatmul.mubr.bf16.gmra.mxu0 %v6746
      %v6919 = vpop.f32.mrf.mxu0
      %v6920 = vadd.f32 %v6543, %v6919
      %v6921 = vpop.f32.mrf.mxu0
      %v6922 = vpop.f32.mrf.mxu0
      %v6923 = vadd.f32 %v6543, %v6922
      %v6924 = vpop.f32.mrf.mxu0
      %6925 = vmatprep.mubr.bf16.mxu0 0
      %6926 = vmatmul.mubr.bf16.gmra.mxu0 %v6749
      %v6927 = vpop.f32.mrf.mxu0
      %v6928 = vadd.f32 %v6543, %v6927
      %v6929 = vpop.f32.mrf.mxu0
      %v6930 = vpop.f32.mrf.mxu0
      %v6931 = vadd.f32 %v6543, %v6930
      %v6932 = vpop.f32.mrf.mxu0
      %6933 = vmatprep.mubr.bf16.mxu0 0
      %6934 = vmatmul.mubr.bf16.gmra.mxu0 %v6752
      %v6935 = vpop.f32.mrf.mxu0
      %v6936 = vadd.f32 %v6543, %v6935
      %v6937 = vpop.f32.mrf.mxu0
      %v6938 = vpop.f32.mrf.mxu0
      %v6939 = vadd.f32 %v6543, %v6938
      %v6940 = vpop.f32.mrf.mxu0
      %6941 = vmatprep.mubr.bf16.mxu0 0
      %6942 = vmatmul.mubr.bf16.gmra.mxu0 %v6755
      %v6943 = vpop.f32.mrf.mxu0
      %v6944 = vadd.f32 %v6543, %v6943
      %v6945 = vpop.f32.mrf.mxu0
      %v6946 = vpop.f32.mrf.mxu0
      %v6947 = vadd.f32 %v6543, %v6946
      %v6948 = vpop.f32.mrf.mxu0
      %6949 = vmatprep.mubr.bf16.mxu0 0
      %6950 = vmatmul.mubr.bf16.gmra.mxu0 %v6758
      %v6951 = vpop.f32.mrf.mxu0
      %v6952 = vadd.f32 %v6543, %v6951
      %v6953 = vpop.f32.mrf.mxu0
      %v6954 = vpop.f32.mrf.mxu0
      %v6955 = vadd.f32 %v6543, %v6954
      %v6956 = vpop.f32.mrf.mxu0
      %6957 = vmatprep.mubr.bf16.mxu0 0
      %6958 = vmatmul.mubr.bf16.gmra.mxu0 %v6761
      %v6959 = vpop.f32.mrf.mxu0
      %v6960 = vadd.f32 %v6543, %v6959
      %v6961 = vpop.f32.mrf.mxu0
      %v6962 = vpop.f32.mrf.mxu0
      %v6963 = vadd.f32 %v6543, %v6962
      %v6964 = vpop.f32.mrf.mxu0
      %6965 = vmatprep.mubr.bf16.mxu0 0
      %6966 = vmatmul.mubr.bf16.gmra.mxu0 %v6764
      %v6967 = vpop.f32.mrf.mxu0
      %v6968 = vadd.f32 %v6543, %v6967
      %v6969 = vpop.f32.mrf.mxu0
      %v6970 = vpop.f32.mrf.mxu0
      %v6971 = vadd.f32 %v6543, %v6970
      %v6972 = vpop.f32.mrf.mxu0
      %6973 = vmatprep.mubr.bf16.mxu0 0
      %6974 = vmatmul.mubr.bf16.gmra.mxu0 %v6767
      %v6975 = vpop.f32.mrf.mxu0
      %v6976 = vadd.f32 %v6543, %v6975
      %v6977 = vpop.f32.mrf.mxu0
      %v6978 = vpop.f32.mrf.mxu0
      %v6979 = vadd.f32 %v6543, %v6978
      %v6980 = vpop.f32.mrf.mxu0
      %6981 = vmatprep.mubr.bf16.mxu0 0
      %6982 = vmatmul.mubr.bf16.gmra.mxu0 %v6770
      %v6983 = vpop.f32.mrf.mxu0
      %v6984 = vadd.f32 %v6543, %v6983
      %v6985 = vpop.f32.mrf.mxu0
      %v6986 = vpop.f32.mrf.mxu0
      %v6987 = vadd.f32 %v6543, %v6986
      %v6988 = vpop.f32.mrf.mxu0
      %6989 = vmatprep.mubr.bf16.mxu0 0
      %6990 = vmatmul.mubr.bf16.gmra.mxu0 %v6773
      %v6991 = vpop.f32.mrf.mxu0
      %v6992 = vadd.f32 %v6543, %v6991
      %v6993 = vpop.f32.mrf.mxu0
      %v6994 = vpop.f32.mrf.mxu0
      %v6995 = vadd.f32 %v6543, %v6994
      %v6996 = vpop.f32.mrf.mxu0
      %6997 = vmatprep.mubr.bf16.mxu0 0
      %6998 = vmatmul.mubr.bf16.gmra.mxu0 %v6776
      %v6999 = vpop.f32.mrf.mxu0
      %v7000 = vadd.f32 %v6543, %v6999
      %v7001 = vpop.f32.mrf.mxu0
      %v7002 = vpop.f32.mrf.mxu0
      %v7003 = vadd.f32 %v6543, %v7002
      %v7004 = vpop.f32.mrf.mxu0
      %7005 = vmatprep.mubr.bf16.mxu0 0
      %7006 = vmatmul.mubr.bf16.gmra.mxu0 %v6779
      %v7007 = vpop.f32.mrf.mxu0
      %v7008 = vadd.f32 %v6543, %v7007
      %v7009 = vpop.f32.mrf.mxu0
      %v7010 = vpop.f32.mrf.mxu0
      %v7011 = vadd.f32 %v6543, %v7010
      %v7012 = vpop.f32.mrf.mxu0
      %7013 = vmatprep.mubr.bf16.mxu0 0
      %7014 = vmatmul.mubr.bf16.gmra.mxu0 %v6782
      %v7015 = vpop.f32.mrf.mxu0
      %v7016 = vadd.f32 %v6543, %v7015
      %v7017 = vpop.f32.mrf.mxu0
      %v7018 = vpop.f32.mrf.mxu0
      %v7019 = vadd.f32 %v6543, %v7018
      %v7020 = vpop.f32.mrf.mxu0
      %7021 = vmatprep.mubr.bf16.mxu0 0
      %7022 = vmatmul.mubr.bf16.gmra.mxu0 %v6785
      %v7023 = vpop.f32.mrf.mxu0
      %v7024 = vadd.f32 %v6543, %v7023
      %v7025 = vpop.f32.mrf.mxu0
      %v7026 = vpop.f32.mrf.mxu0
      %v7027 = vadd.f32 %v6543, %v7026
      %v7028 = vpop.f32.mrf.mxu0
      %7029 = vmatprep.mubr.bf16.mxu0 0
      %7030 = vmatmul.mubr.bf16.gmra.mxu0 %v6788
      %v7031 = vpop.f32.mrf.mxu0
      %v7032 = vadd.f32 %v6543, %v7031
      %v7033 = vpop.f32.mrf.mxu0
      %v7034 = vpop.f32.mrf.mxu0
      %v7035 = vadd.f32 %v6543, %v7034
      %v7036 = vpop.f32.mrf.mxu0
      %7037 = vmatprep.mubr.bf16.mxu0 0
      %7038 = vmatmul.mubr.bf16.gmra.mxu0 %v6791
      %v7039 = vpop.f32.mrf.mxu0
      %v7040 = vadd.f32 %v6543, %v7039
      %v7041 = vpop.f32.mrf.mxu0
      %v7042 = vpop.f32.mrf.mxu0
      %v7043 = vadd.f32 %v6543, %v7042
      %v7044 = vpop.f32.mrf.mxu0
      %7045 = vmatprep.mubr.bf16.mxu0 0
      %7046 = vmatmul.mubr.bf16.gmra.mxu0 %v6794
      %v7047 = vpop.f32.mrf.mxu0
      %v7048 = vadd.f32 %v6543, %v7047
      %v7049 = vpop.f32.mrf.mxu0
      %v7050 = vpop.f32.mrf.mxu0
      %v7051 = vadd.f32 %v6543, %v7050
      %v7052 = vpop.f32.mrf.mxu0
      %7053 = vmatprep.mubr.bf16.mxu0 0
      %7054 = vmatmul.mubr.bf16.gmra.mxu0 %v6797
      %v7055 = vpop.f32.mrf.mxu0
      %v7056 = vadd.f32 %v6543, %v7055
      %v7057 = vpop.f32.mrf.mxu0
      %v7058 = vpop.f32.mrf.mxu0
      %v7059 = vadd.f32 %v6543, %v7058
      %v7060 = vpop.f32.mrf.mxu0
      %7061 = vmatprep.mubr.bf16.mxu0 0
      %7062 = vmatmul.mubr.bf16.gmra.mxu0 %v6800
      %v7063 = vpop.f32.mrf.mxu0
      %v7064 = vadd.f32 %v6543, %v7063
      %v7065 = vpop.f32.mrf.mxu0
      %v7066 = vpop.f32.mrf.mxu0
      %v7067 = vadd.f32 %v6543, %v7066
      %v7068 = vpop.f32.mrf.mxu0
      %7069 = vmatprep.mubr.bf16.mxu0 0
      %7070 = vmatmul.mubr.bf16.gmra.mxu0 %v6803
      %v7071 = vpop.f32.mrf.mxu0
      %v7072 = vadd.f32 %v6543, %v7071
      %v7073 = vpop.f32.mrf.mxu0
      %v7074 = vpop.f32.mrf.mxu0
      %v7075 = vadd.f32 %v6543, %v7074
      %v7076 = vpop.f32.mrf.mxu0
      %7077 = vmatprep.mubr.bf16.mxu0 0
      %7078 = vmatmul.mubr.bf16.gmra.mxu0 %v6806
      %v7079 = vpop.f32.mrf.mxu0
      %v7080 = vadd.f32 %v6543, %v7079
      %v7081 = vpop.f32.mrf.mxu0
      %v7082 = vpop.f32.mrf.mxu0
      %v7083 = vadd.f32 %v6543, %v7082
      %v7084 = vpop.f32.mrf.mxu0
      %7085 = vmatprep.mubr.bf16.mxu0 0
      %7086 = vmatmul.mubr.bf16.gmra.mxu0 %v6809
      %v7087 = vpop.f32.mrf.mxu0
      %v7088 = vadd.f32 %v6543, %v7087
      %v7089 = vpop.f32.mrf.mxu0
      %v7090 = vpop.f32.mrf.mxu0
      %v7091 = vadd.f32 %v6543, %v7090
      %v7092 = vpop.f32.mrf.mxu0
      %7093 = vmatprep.mubr.bf16.mxu0 0
      %7094 = vmatmul.mubr.bf16.gmra.mxu0 %v6812
      %v7095 = vpop.f32.mrf.mxu0
      %v7096 = vadd.f32 %v6543, %v7095
      %v7097 = vpop.f32.mrf.mxu0
      %v7098 = vpop.f32.mrf.mxu0
      %v7099 = vadd.f32 %v6543, %v7098
      %v7100 = vpop.f32.mrf.mxu0
      %7101 = vmatprep.mubr.bf16.mxu0 0
      %7102 = vmatmul.mubr.bf16.gmra.mxu0 %v6815
      %v7103 = vpop.f32.mrf.mxu0
      %v7104 = vadd.f32 %v6543, %v7103
      %v7105 = vpop.f32.mrf.mxu0
      %v7106 = vpop.f32.mrf.mxu0
      %v7107 = vadd.f32 %v6543, %v7106
      %v7108 = vpop.f32.mrf.mxu0
      %7109 = vdwg.mxu0
      %vm7110 = vcmask 64512
      %7111 = vst.msk [vmem:[%s177] sm:$0xff] %vm7110, %v6856
      %7112 = vst.msk [vmem:[%s177 + $0x8] sm:$0xff] %vm7110, %v6859
      %7113 = vst.msk [vmem:[%s177 + $0x10] sm:$0xff] %vm7110, %v6864
      %7114 = vst.msk [vmem:[%s177 + $0x18] sm:$0xff] %vm7110, %v6867
      %7115 = vst.msk [vmem:[%s177 + $0x20] sm:$0xff] %vm7110, %v6872
      %7116 = vst.msk [vmem:[%s177 + $0x28] sm:$0xff] %vm7110, %v6875
      %7117 = vst.msk [vmem:[%s177 + $0x30] sm:$0xff] %vm7110, %v6880
      %7118 = vst.msk [vmem:[%s177 + $0x38] sm:$0xff] %vm7110, %v6883
      %7119 = vst.msk [vmem:[%s177 + $0x40] sm:$0xff] %vm7110, %v6888
      %7120 = vst.msk [vmem:[%s177 + $0x48] sm:$0xff] %vm7110, %v6891
      %7121 = vst.msk [vmem:[%s177 + $0x50] sm:$0xff] %vm7110, %v6896
      %7122 = vst.msk [vmem:[%s177 + $0x58] sm:$0xff] %vm7110, %v6899
      %7123 = vst.msk [vmem:[%s177 + $0x60] sm:$0xff] %vm7110, %v6904
      %7124 = vst.msk [vmem:[%s177 + $0x68] sm:$0xff] %vm7110, %v6907
      %7125 = vst.msk [vmem:[%s177 + $0x70] sm:$0xff] %vm7110, %v6912
      %7126 = vst.msk [vmem:[%s177 + $0x78] sm:$0xff] %vm7110, %v6915
      %7127 = vst.msk [vmem:[%s177 + $0x80] sm:$0xff] %vm7110, %v6920
      %7128 = vst.msk [vmem:[%s177 + $0x88] sm:$0xff] %vm7110, %v6923
      %7129 = vst.msk [vmem:[%s177 + $0x90] sm:$0xff] %vm7110, %v6928
      %7130 = vst.msk [vmem:[%s177 + $0x98] sm:$0xff] %vm7110, %v6931
      %7131 = vst.msk [vmem:[%s177 + $0xa0] sm:$0xff] %vm7110, %v6936
      %7132 = vst.msk [vmem:[%s177 + $0xa8] sm:$0xff] %vm7110, %v6939
      %7133 = vst.msk [vmem:[%s177 + $0xb0] sm:$0xff] %vm7110, %v6944
      %7134 = vst.msk [vmem:[%s177 + $0xb8] sm:$0xff] %vm7110, %v6947
      %7135 = vst.msk [vmem:[%s177 + $0xc0] sm:$0xff] %vm7110, %v6952
      %7136 = vst.msk [vmem:[%s177 + $0xc8] sm:$0xff] %vm7110, %v6955
      %7137 = vst.msk [vmem:[%s177 + $0xd0] sm:$0xff] %vm7110, %v6960
      %7138 = vst.msk [vmem:[%s177 + $0xd8] sm:$0xff] %vm7110, %v6963
      %7139 = vst.msk [vmem:[%s177 + $0xe0] sm:$0xff] %vm7110, %v6968
      %7140 = vst.msk [vmem:[%s177 + $0xe8] sm:$0xff] %vm7110, %v6971
      %7141 = vst.msk [vmem:[%s177 + $0xf0] sm:$0xff] %vm7110, %v6976
      %7142 = vst.msk [vmem:[%s177 + $0xf8] sm:$0xff] %vm7110, %v6979
      %7143 = vst.msk [vmem:[%s177 + $0x100] sm:$0xff] %vm7110, %v6984
      %7144 = vst.msk [vmem:[%s177 + $0x108] sm:$0xff] %vm7110, %v6987
      %7145 = vst.msk [vmem:[%s177 + $0x110] sm:$0xff] %vm7110, %v6992
      %7146 = vst.msk [vmem:[%s177 + $0x118] sm:$0xff] %vm7110, %v6995
      %7147 = vst.msk [vmem:[%s177 + $0x120] sm:$0xff] %vm7110, %v7000
      %7148 = vst.msk [vmem:[%s177 + $0x128] sm:$0xff] %vm7110, %v7003
      %7149 = vst.msk [vmem:[%s177 + $0x130] sm:$0xff] %vm7110, %v7008
      %7150 = vst.msk [vmem:[%s177 + $0x138] sm:$0xff] %vm7110, %v7011
      %7151 = vst.msk [vmem:[%s177 + $0x140] sm:$0xff] %vm7110, %v7016
      %7152 = vst.msk [vmem:[%s177 + $0x148] sm:$0xff] %vm7110, %v7019
      %7153 = vst.msk [vmem:[%s177 + $0x150] sm:$0xff] %vm7110, %v7024
      %7154 = vst.msk [vmem:[%s177 + $0x158] sm:$0xff] %vm7110, %v7027
      %7155 = vst.msk [vmem:[%s177 + $0x160] sm:$0xff] %vm7110, %v7032
      %7156 = vst.msk [vmem:[%s177 + $0x168] sm:$0xff] %vm7110, %v7035
      %7157 = vst.msk [vmem:[%s177 + $0x170] sm:$0xff] %vm7110, %v7040
      %7158 = vst.msk [vmem:[%s177 + $0x178] sm:$0xff] %vm7110, %v7043
      %7159 = vst.msk [vmem:[%s177 + $0x180] sm:$0xff] %vm7110, %v7048
      %7160 = vst.msk [vmem:[%s177 + $0x188] sm:$0xff] %vm7110, %v7051
      %7161 = vst.msk [vmem:[%s177 + $0x190] sm:$0xff] %vm7110, %v7056
      %7162 = vst.msk [vmem:[%s177 + $0x198] sm:$0xff] %vm7110, %v7059
      %7163 = vst.msk [vmem:[%s177 + $0x1a0] sm:$0xff] %vm7110, %v7064
      %7164 = vst.msk [vmem:[%s177 + $0x1a8] sm:$0xff] %vm7110, %v7067
      %7165 = vst.msk [vmem:[%s177 + $0x1b0] sm:$0xff] %vm7110, %v7072
      %7166 = vst.msk [vmem:[%s177 + $0x1b8] sm:$0xff] %vm7110, %v7075
      %7167 = vst.msk [vmem:[%s177 + $0x1c0] sm:$0xff] %vm7110, %v7080
      %7168 = vst.msk [vmem:[%s177 + $0x1c8] sm:$0xff] %vm7110, %v7083
      %7169 = vst.msk [vmem:[%s177 + $0x1d0] sm:$0xff] %vm7110, %v7088
      %7170 = vst.msk [vmem:[%s177 + $0x1d8] sm:$0xff] %vm7110, %v7091
      %7171 = vst.msk [vmem:[%s177 + $0x1e0] sm:$0xff] %vm7110, %v7096
      %7172 = vst.msk [vmem:[%s177 + $0x1e8] sm:$0xff] %vm7110, %v7099
      %7173 = vst.msk [vmem:[%s177 + $0x1f0] sm:$0xff] %vm7110, %v7104
      %7174 = vst.msk [vmem:[%s177 + $0x1f8] sm:$0xff] %vm7110, %v7107
      %s7175 = smul.u32 2, %s14
      %p7176 = scmp.lt.s32.totalorder %s7175, 3
      %s7177 = scalar_select %p7176, %s7175, 3
      %s7178 = smul.addr %s7177, 32
      %s7179 = smul.addr %s7178, 8
      %s7180 = scalar_lea.vmem %s3, %s7179
      // Predicated region
      $region33: #{tpu_custom_call.1} parent=31 // pred_check
        %p7181 = pneg %p100
      $region34: #{tpu_custom_call.1} parent=31 // pred_check_branch
        %7183 = sbr.rel (%p7181) target = $region36
      $region35: #{tpu_custom_call.1} parent=31 // pred_region
        %s7184 = smul.u32 2, %s14
      $region36: #{tpu_custom_call.1} parent=31 // pred_fallthru
        _
    $region32: #{tpu_custom_call.1} parent=5 // pred_fallthru
      _
    %p7185 = scmp.le.s32.totalorder 2, %s9
    // Predicated region
    $region37: #{tpu_custom_call.1} parent=5 // pred_check
      %p7186 = pneg %p7185
    $region38: #{tpu_custom_call.1} parent=5 // pred_check_branch
      %7188 = sbr.rel (%p7186) target = $region40
    $region39: #{tpu_custom_call.1} parent=5 // pred_region
      %s7189 = ssub.s32 %s9, 2
      // Predicated region
      $region41: #{tpu_custom_call.1} parent=39 // pred_check
        %p7190 = pneg %p106
      $region42: #{tpu_custom_call.1} parent=39 // pred_check_branch
        %7192 = sbr.rel (%p7190) target = $region44
      $region43: #{tpu_custom_call.1} parent=39 // pred_region
        %s7193 = smul.u32 2, %s15
        %p7194 = scmp.lt.s32.totalorder %s7193, 3
        %s7195 = scalar_select %p7194, %s7193, 3
        %s7196 = smul.addr %s7195, 32
        %s7197 = smul.addr %s7196, 8
        %s7198 = scalar_lea.vmem %s3, %s7197
      $region44: #{tpu_custom_call.1} parent=39 // pred_fallthru
        _
    $region40: #{tpu_custom_call.1} parent=5 // pred_fallthru
      _
  $region6: #{tpu_custom_call.1} parent=0 // loop_footer
    %s13 = sadd.s32 1, %s9
  $region7: #{tpu_custom_call.1} parent=0 // loop_footer_branch
    %8 = sbr.rel target = $region3
  $region8: #{tpu_custom_call.1} parent=0 // loop_exit
    _

</llo_original>
